<compile_context>
chip_gen: v7x
topology: tpu7x:2x2x1
jax: 0.10.0
libtpu: 0.0.40
codegen_flags: <defaults>
</compile_context>

<pallas_src>
import jax
import jax.numpy as jnp
from jax import lax
from jax.experimental import pallas as pl
from jax.experimental.pallas import tpu as pltpu

NUM_CLASSES = 10
BN_EPS = 1e-5
VMEM_LIMIT = 32 * 1024 * 1024


# ----------------------------- Pallas kernels -----------------------------

def _conv1_relu_pool_kernel(w_ref, p_ref, b_ref, s_ref, o_ref):
    # Per image i:
    #   w: (O, K) bf16 (resident), p: (1, K, M) bf16, b: (O, 1) f32 (resident),
    #   s: (M, Mp) bf16 pool matrix (resident), o: (1, O, Mp) bf16.
    y = jnp.dot(w_ref[...], p_ref[0], preferred_element_type=jnp.float32)
    y = jnp.maximum(y + b_ref[...], 0.0)                     # bias + ReLU (f32)
    # Fused 2x2/stride-2 average pool as a bf16 column-selection matmul.
    pooled = jnp.dot(y.astype(jnp.bfloat16), s_ref[...],
                     preferred_element_type=jnp.float32)
    o_ref[0] = pooled.astype(jnp.bfloat16)


def _conv2_bn_relu_pool_fc_kernel(w2_ref, p2_ref, b2_ref, s2_ref,
                                  w1r_ref, fb1_ref, w2t_ref, fb2_ref, o_ref):
    # Per image i: conv2 (BN folded) + ReLU + pool + FC1 + ReLU + FC2 +
    # log_softmax, all in one grid step.  All weight blocks are VMEM-resident.
    y = jnp.dot(w2_ref[...], p2_ref[0], preferred_element_type=jnp.float32)
    y = jnp.maximum(y + b2_ref[...], 0.0)                    # (12, 144)
    a2 = jnp.dot(y.astype(jnp.bfloat16), s2_ref[...],
                 preferred_element_type=jnp.float32)         # (12, 36)

    # FC1 over the NCHW-flattened vector without an in-kernel reshape:
    # z1[j] = sum_{c,p} a2[c,p] * fc1_w[j, c*36+p], accumulated channel-wise.
    n_ch = w1r_ref.shape[0]
    z1 = jnp.zeros((1, w1r_ref.shape[2]), jnp.float32)
    for c in range(n_ch):
        z1 = z1 + jnp.dot(a2[c:c + 1, :].astype(jnp.bfloat16), w1r_ref[c],
                          preferred_element_type=jnp.float32)
    z1 = jnp.maximum(z1 + fb1_ref[...], 0.0)                 # (1, 50)

    logits = jnp.dot(z1.astype(jnp.bfloat16), w2t_ref[...],
                     preferred_element_type=jnp.float32) + fb2_ref[...]
    m = jnp.max(logits, axis=-1, keepdims=True)
    lse = jnp.log(jnp.sum(jnp.exp(logits - m), axis=-1, keepdims=True)) + m
    o_ref[0] = logits - lse                                  # (1, 10)


# ----------------------------- Pallas wrappers -----------------------------

def conv1_relu_pool(patches, w_mat, b, pool_s):
    # patches: (N, K, M) bf16; w_mat: (O, K); pool_s: (M, Mp) bf16.
    N, K, M = patches.shape
    O = w_mat.shape[0]
    Mp = pool_s.shape[1]
    return pl.pallas_call(
        _conv1_relu_pool_kernel,
        out_shape=jax.ShapeDtypeStruct((N, O, Mp), jnp.bfloat16),
        grid=(N,),
        in_specs=[pl.BlockSpec((O, K), lambda i: (0, 0)),
                  pl.BlockSpec((1, K, M), lambda i: (i, 0, 0)),
                  pl.BlockSpec((O, 1), lambda i: (0, 0)),
                  pl.BlockSpec((M, Mp), lambda i: (0, 0))],
        out_specs=pl.BlockSpec((1, O, Mp), lambda i: (i, 0, 0)),
        compiler_params=pltpu.CompilerParams(
            dimension_semantics=("parallel",),
            vmem_limit_bytes=VMEM_LIMIT),
    )(w_mat.astype(jnp.bfloat16), patches,
      b.reshape(O, 1).astype(jnp.float32), pool_s)


def conv2_bn_relu_pool_classifier(patches, w2f, b2f, pool_s, w1r, fb1, w2t, fb2):
    # patches: (N, K, M) bf16; w2f: (O, K); pool_s: (M, Mp) bf16;
    # w1r: (O, Mp, H); w2t: (H, C).
    N, K, M = patches.shape
    O = w2f.shape[0]
    Mp = pool_s.shape[1]
    H = w1r.shape[2]
    C = w2t.shape[1]
    out = pl.pallas_call(
        _conv2_bn_relu_pool_fc_kernel,
        out_shape=jax.ShapeDtypeStruct((N, 1, C), jnp.float32),
        grid=(N,),
        in_specs=[pl.BlockSpec((O, K), lambda i: (0, 0)),
                  pl.BlockSpec((1, K, M), lambda i: (i, 0, 0)),
                  pl.BlockSpec((O, 1), lambda i: (0, 0)),
                  pl.BlockSpec((M, Mp), lambda i: (0, 0)),
                  pl.BlockSpec((O, Mp, H), lambda i: (0, 0, 0)),
                  pl.BlockSpec((1, H), lambda i: (0, 0)),
                  pl.BlockSpec((H, C), lambda i: (0, 0)),
                  pl.BlockSpec((1, C), lambda i: (0, 0))],
        out_specs=pl.BlockSpec((1, 1, C), lambda i: (i, 0, 0)),
        compiler_params=pltpu.CompilerParams(
            dimension_semantics=("parallel",),
            vmem_limit_bytes=VMEM_LIMIT),
    )(w2f.astype(jnp.bfloat16), patches,
      b2f.reshape(O, 1).astype(jnp.float32), pool_s,
      w1r.astype(jnp.bfloat16), fb1.reshape(1, H).astype(jnp.float32),
      w2t.astype(jnp.bfloat16), fb2.reshape(1, C).astype(jnp.float32))
    return out.reshape(N, C)


# ----------------------------- JAX glue (fused under jit) -----------------------------

def _im2col_nkm(x, kh, kw):
    # x: (N, C, H, W) -> patches (N, C*kh*kw, Ho*Wo); row order (c, kh, kw)
    # matches PyTorch OIHW weight flattening, column order (ho, wo).
    N, C, H, W = x.shape
    Ho, Wo = H - kh + 1, W - kw + 1
    slabs = [x[:, :, i:i + Ho, j:j + Wo]
             for i in range(kh) for j in range(kw)]
    p = jnp.stack(slabs, axis=2)                   # (N, C, kh*kw, Ho, Wo)
    return p.reshape(N, C * kh * kw, Ho * Wo), Ho, Wo


def _pool_select_matrix(ho, wo):
    # Batch-independent (Ho*Wo, Hp*Wp) matrix with 0.25 entries implementing a
    # 2x2/stride-2 average pool as a right-matmul on (O, Ho*Wo) conv output.
    hp, wp = ho // 2, wo // 2
    ph = jnp.repeat(jnp.eye(hp, dtype=jnp.float32), 2, axis=0)   # (ho, hp)
    pw = jnp.repeat(jnp.eye(wp, dtype=jnp.float32), 2, axis=0)   # (wo, wp)
    return (0.25 * jnp.kron(ph, pw)).astype(jnp.bfloat16)        # exact in bf16


# ----------------------------- full forward -----------------------------

def convnet_forward(x, p):
    N = x.shape[0]
    xb = x.astype(jnp.bfloat16)

    # features: Conv2d(3->6, k5) -> ReLU -> AvgPool2  (kernel 1, grid over N)
    p1, ho1, wo1 = _im2col_nkm(xb, 5, 5)                        # (N, 75, 784)
    s1 = _pool_select_matrix(ho1, wo1)                          # (784, 196)
    a1 = conv1_relu_pool(p1, p["conv1_w"].reshape(6, -1),
                         p["conv1_b"], s1)                      # (N, 6, 196) bf16
    a1 = a1.reshape(N, 6, ho1 // 2, wo1 // 2)                   # contiguous

    # Conv2d(6->12, k3) -> BatchNorm2d (running stats folded) -> ReLU ->
    # AvgPool2 -> flatten -> Linear(432,50) -> Dropout(eval) -> ReLU ->
    # Linear(50,10) -> log_softmax   (kernel 2, grid over N)
    scale = p["bn_gamma"] / jnp.sqrt(p["bn_var"] + BN_EPS)
    w2f = (p["conv2_w"] * scale[:, None, None, None]).reshape(12, -1)
    b2f = (p["conv2_b"] - p["bn_mean"]) * scale + p["bn_beta"]

    p2, ho2, wo2 = _im2col_nkm(a1, 3, 3)                        # (N, 54, 144)
    s2 = _pool_select_matrix(ho2, wo2)                          # (144, 36)
    hw2 = (ho2 // 2) * (wo2 // 2)                                # 36
    # Pre-permute fc1_w so the kernel consumes a2's (c, hw) layout directly:
    # w1r[c, p, j] = fc1_w[j, c*36 + p]  (PyTorch NCHW flatten order).
    w1r = p["fc1_w"].reshape(50, 12, hw2).transpose(1, 2, 0)    # (12, 36, 50)

    return conv2_bn_relu_pool_classifier(p2, w2f, b2f, s2, w1r, p["fc1_b"],
                                         p["fc2_w"].T, p["fc2_b"])


# ----------------------------- parameters -----------------------------

def init_params(key):
    ks = jax.random.split(key, 12)

    def u(k, shape, fan_in):
        bound = 1.0 / jnp.sqrt(jnp.float32(fan_in))
        return jax.random.uniform(k, shape, jnp.float32, -bound, bound)

    p = {}
    p["conv1_w"] = u(ks[0], (6, 3, 5, 5), 3 * 5 * 5)
    p["conv1_b"] = u(ks[1], (6,), 3 * 5 * 5)
    p["conv2_w"] = u(ks[2], (12, 6, 3, 3), 6 * 3 * 3)
    p["conv2_b"] = u(ks[3], (12,), 6 * 3 * 3)
    p["bn_gamma"] = 1.0 + 0.1 * jax.random.normal(ks[4], (12,), jnp.float32)
    p["bn_beta"] = 0.1 * jax.random.normal(ks[5], (12,), jnp.float32)
    p["bn_mean"] = 0.1 * jax.random.normal(ks[6], (12,), jnp.float32)
    p["bn_var"] = jax.random.uniform(ks[7], (12,), jnp.float32, 0.5, 1.5)
    p["fc1_w"] = u(ks[8], (50, 12 * 6 * 6), 12 * 6 * 6)
    p["fc1_b"] = u(ks[9], (50,), 12 * 6 * 6)
    p["fc2_w"] = u(ks[10], (NUM_CLASSES, 50), 50)
    p["fc2_b"] = u(ks[11], (NUM_CLASSES,), 50)
    return p


# ----------------------------- pure-JAX reference -----------------------------

def _pool_ref(x):
    N, C, H, W = x.shape
    return x.reshape(N, C, H // 2, 2, W // 2, 2).mean(axis=(3, 5))


def reference_forward(x, p):
    dn = ("NCHW", "OIHW", "NCHW")
    hp = lax.Precision.HIGHEST
    h = lax.conv_general_dilated(x, p["conv1_w"], (1, 1), "VALID",
                                 dimension_numbers=dn, precision=hp)
    h = jnp.maximum(h + p["conv1_b"][None, :, None, None], 0.0)
    h = _pool_ref(h)
    h = lax.conv_general_dilated(h, p["conv2_w"], (1, 1), "VALID",
                                 dimension_numbers=dn, precision=hp)
    h = h + p["conv2_b"][None, :, None, None]
    h = (h - p["bn_mean"][None, :, None, None]) / jnp.sqrt(
        p["bn_var"] + BN_EPS)[None, :, None, None]
    h = h * p["bn_gamma"][None, :, None, None] + p["bn_beta"][None, :, None, None]
    h = jnp.maximum(h, 0.0)
    h = _pool_ref(h)
    h = h.reshape(h.shape[0], -1)
    h = jnp.maximum(jnp.dot(h, p["fc1_w"].T, precision=hp) + p["fc1_b"], 0.0)
    logits = jnp.dot(h, p["fc2_w"].T, precision=hp) + p["fc2_b"]
    return jax.nn.log_softmax(logits, axis=-1)


# ----------------------------- main -----------------------------

if __name__ == "__main__":
    key = jax.random.PRNGKey(0)
    k_x, k_p = jax.random.split(key)
    # Input must be (N, 3, 32, 32): 32 -> conv5 -> 28 -> pool -> 14 -> conv3
    # -> 12 -> pool -> 6, giving the 12*6*6 = 432 classifier input.
    x = jax.random.normal(k_x, (2, 3, 32, 32), jnp.float32)
    params = init_params(k_p)

    fwd = jax.jit(convnet_forward)
    out = jax.block_until_ready(fwd(x, params))

    assert out.shape == (2, NUM_CLASSES), out.shape
    # log_softmax rows must exponentiate to a probability distribution
    assert bool(jnp.allclose(jnp.exp(out).sum(axis=-1), 1.0, atol=1e-3))
    ref = reference_forward(x, params)
    assert bool(jnp.allclose(out, ref, atol=5e-2, rtol=1e-3)), float(
        jnp.max(jnp.abs(out - ref)))

    print("KERNEL_OK")
</pallas_src>

<mosaic_0001>
module attributes {stable_mosaic.version = 11 : i64} {
  func.func @_conv1_relu_pool_kernel(%arg0: i32, %arg1: memref<6x75xbf16, #tpu.memory_space<vmem>>, %arg2: memref<1x75x784xbf16, #tpu.memory_space<vmem>>, %arg3: memref<6x1xf32, #tpu.memory_space<vmem>>, %arg4: memref<784x196xbf16, #tpu.memory_space<vmem>>, %arg5: memref<1x6x196xbf16, #tpu.memory_space<vmem>>) attributes {dimension_semantics = [#tpu.dimension_semantics<parallel>], iteration_bounds = array<i64: 2>, scalar_prefetch = 0 : i64, scratch_operands = 0 : i64, tpu.core_type = #tpu.core_type<tc>, window_params = [{pipeline_mode = #tpu.pipeline_mode<synchronous>, transform_indices = @transform_0, window_bounds = array<i64: 6, 75>}, {transform_indices = @transform_1, window_bounds = array<i64: 1, 75, 784>}, {pipeline_mode = #tpu.pipeline_mode<synchronous>, transform_indices = @transform_2, window_bounds = array<i64: 6, 1>}, {pipeline_mode = #tpu.pipeline_mode<synchronous>, transform_indices = @transform_3, window_bounds = array<i64: 784, 196>}, {transform_indices = @transform_4, window_bounds = array<i64: 1, 6, 196>}]} {
    %c0 = arith.constant 0 : index
    %c0_0 = arith.constant 0 : index
    %0 = vector.load %arg1[%c0, %c0_0] : memref<6x75xbf16, #tpu.memory_space<vmem>>, vector<6x75xbf16>
    %c0_1 = arith.constant 0 : index
    %c0_2 = arith.constant 0 : index
    %c0_3 = arith.constant 0 : index
    %1 = vector.load %arg2[%c0_1, %c0_2, %c0_3] : memref<1x75x784xbf16, #tpu.memory_space<vmem>>, vector<1x75x784xbf16>
    %2 = vector.shape_cast %1 : vector<1x75x784xbf16> to vector<75x784xbf16>
    %cst = arith.constant dense<0.000000e+00> : vector<6x784xf32>
    %3 = tpu.matmul %0, %2, %cst {dimension_numbers = #tpu.dot_dimension_numbers<[1], [0], [0], [1], [0, 0, 1, 1], [], []>} : vector<6x75xbf16>, vector<75x784xbf16>, vector<6x784xf32> -> vector<6x784xf32>
    %c0_4 = arith.constant 0 : index
    %c0_5 = arith.constant 0 : index
    %4 = vector.load %arg3[%c0_4, %c0_5] : memref<6x1xf32, #tpu.memory_space<vmem>>, vector<6x1xf32>
    %5 = vector.broadcast %4 : vector<6x1xf32> to vector<6x784xf32>
    %6 = arith.addf %3, %5 : vector<6x784xf32>
    %cst_6 = arith.constant 0.000000e+00 : f32
    %7 = vector.broadcast %cst_6 : f32 to vector<6x784xf32>
    %8 = arith.maximumf %6, %7 : vector<6x784xf32>
    %9 = arith.truncf %8 : vector<6x784xf32> to vector<6x784xbf16>
    %c0_7 = arith.constant 0 : index
    %c0_8 = arith.constant 0 : index
    %10 = vector.load %arg4[%c0_7, %c0_8] : memref<784x196xbf16, #tpu.memory_space<vmem>>, vector<784x196xbf16>
    %cst_9 = arith.constant dense<0.000000e+00> : vector<6x196xf32>
    %11 = tpu.matmul %9, %10, %cst_9 {dimension_numbers = #tpu.dot_dimension_numbers<[1], [0], [0], [1], [0, 0, 1, 1], [], []>} : vector<6x784xbf16>, vector<784x196xbf16>, vector<6x196xf32> -> vector<6x196xf32>
    %12 = arith.truncf %11 : vector<6x196xf32> to vector<6x196xbf16>
    %c0_10 = arith.constant 0 : index
    %c0_11 = arith.constant 0 : index
    %c0_12 = arith.constant 0 : index
    %13 = vector.load %arg5[%c0_10, %c0_11, %c0_12] : memref<1x6x196xbf16, #tpu.memory_space<vmem>>, vector<1x6x196xbf16>
    %14 = vector.shape_cast %13 : vector<1x6x196xbf16> to vector<6x196xbf16>
    %15 = vector.shape_cast %12 : vector<6x196xbf16> to vector<1x6x196xbf16>
    tpu.vector_store %arg5[%c0_10, %c0_11, %c0_12], %15 {strides = array<i32>} : memref<1x6x196xbf16, #tpu.memory_space<vmem>>, vector<1x6x196xbf16>,
    return
  }
  func.func @transform_0(%arg0: i32) -> (i32, i32) {
    %c0_i32 = arith.constant 0 : i32
    %c0_i32_0 = arith.constant 0 : i32
    %c0_i32_1 = arith.constant 0 : i32
    return %c0_i32, %c0_i32_0 : i32, i32
  }
  func.func @transform_1(%arg0: i32) -> (i32, i32, i32) {
    %c0_i32 = arith.constant 0 : i32
    %c0_i32_0 = arith.constant 0 : i32
    %c0_i32_1 = arith.constant 0 : i32
    return %arg0, %c0_i32, %c0_i32_0 : i32, i32, i32
  }
  func.func @transform_2(%arg0: i32) -> (i32, i32) {
    %c0_i32 = arith.constant 0 : i32
    %c0_i32_0 = arith.constant 0 : i32
    %c0_i32_1 = arith.constant 0 : i32
    return %c0_i32, %c0_i32_0 : i32, i32
  }
  func.func @transform_3(%arg0: i32) -> (i32, i32) {
    %c0_i32 = arith.constant 0 : i32
    %c0_i32_0 = arith.constant 0 : i32
    %c0_i32_1 = arith.constant 0 : i32
    return %c0_i32, %c0_i32_0 : i32, i32
  }
  func.func @transform_4(%arg0: i32) -> (i32, i32, i32) {
    %c0_i32 = arith.constant 0 : i32
    %c0_i32_0 = arith.constant 0 : i32
    %c0_i32_1 = arith.constant 0 : i32
    return %arg0, %c0_i32, %c0_i32_0 : i32, i32, i32
  }
}

module attributes {stable_mosaic.version = 11 : i64} {
  func.func @_conv2_bn_relu_pool_fc_kernel(%arg0: i32, %arg1: memref<12x54xbf16, #tpu.memory_space<vmem>>, %arg2: memref<1x54x144xbf16, #tpu.memory_space<vmem>>, %arg3: memref<12x1xf32, #tpu.memory_space<vmem>>, %arg4: memref<144x36xbf16, #tpu.memory_space<vmem>>, %arg5: memref<12x36x50xbf16, #tpu.memory_space<vmem>>, %arg6: memref<1x50xf32, #tpu.memory_space<vmem>>, %arg7: memref<50x10xbf16, #tpu.memory_space<vmem>>, %arg8: memref<1x10xf32, #tpu.memory_space<vmem>>, %arg9: memref<1x1x10xf32, #tpu.memory_space<vmem>>) attributes {dimension_semantics = [#tpu.dimension_semantics<parallel>], iteration_bounds = array<i64: 2>, scalar_prefetch = 0 : i64, scratch_operands = 0 : i64, tpu.core_type = #tpu.core_type<tc>, window_params = [{pipeline_mode = #tpu.pipeline_mode<synchronous>, transform_indices = @transform_0, window_bounds = array<i64: 12, 54>}, {transform_indices = @transform_1, window_bounds = array<i64: 1, 54, 144>}, {pipeline_mode = #tpu.pipeline_mode<synchronous>, transform_indices = @transform_2, window_bounds = array<i64: 12, 1>}, {pipeline_mode = #tpu.pipeline_mode<synchronous>, transform_indices = @transform_3, window_bounds = array<i64: 144, 36>}, {pipeline_mode = #tpu.pipeline_mode<synchronous>, transform_indices = @transform_4, window_bounds = array<i64: 12, 36, 50>}, {pipeline_mode = #tpu.pipeline_mode<synchronous>, transform_indices = @transform_5, window_bounds = array<i64: 1, 50>}, {pipeline_mode = #tpu.pipeline_mode<synchronous>, transform_indices = @transform_6, window_bounds = array<i64: 50, 10>}, {pipeline_mode = #tpu.pipeline_mode<synchronous>, transform_indices = @transform_7, window_bounds = array<i64: 1, 10>}, {transform_indices = @transform_8, window_bounds = array<i64: 1, 1, 10>}]} {
    %c0 = arith.constant 0 : index
    %c0_0 = arith.constant 0 : index
    %0 = vector.load %arg1[%c0, %c0_0] : memref<12x54xbf16, #tpu.memory_space<vmem>>, vector<12x54xbf16>
    %c0_1 = arith.constant 0 : index
    %c0_2 = arith.constant 0 : index
    %c0_3 = arith.constant 0 : index
    %1 = vector.load %arg2[%c0_1, %c0_2, %c0_3] : memref<1x54x144xbf16, #tpu.memory_space<vmem>>, vector<1x54x144xbf16>
    %2 = vector.shape_cast %1 : vector<1x54x144xbf16> to vector<54x144xbf16>
    %cst = arith.constant dense<0.000000e+00> : vector<12x144xf32>
    %3 = tpu.matmul %0, %2, %cst {dimension_numbers = #tpu.dot_dimension_numbers<[1], [0], [0], [1], [0, 0, 1, 1], [], []>} : vector<12x54xbf16>, vector<54x144xbf16>, vector<12x144xf32> -> vector<12x144xf32>
    %c0_4 = arith.constant 0 : index
    %c0_5 = arith.constant 0 : index
    %4 = vector.load %arg3[%c0_4, %c0_5] : memref<12x1xf32, #tpu.memory_space<vmem>>, vector<12x1xf32>
    %5 = vector.broadcast %4 : vector<12x1xf32> to vector<12x144xf32>
    %6 = arith.addf %3, %5 : vector<12x144xf32>
    %cst_6 = arith.constant 0.000000e+00 : f32
    %7 = vector.broadcast %cst_6 : f32 to vector<12x144xf32>
    %8 = arith.maximumf %6, %7 : vector<12x144xf32>
    %9 = arith.truncf %8 : vector<12x144xf32> to vector<12x144xbf16>
    %c0_7 = arith.constant 0 : index
    %c0_8 = arith.constant 0 : index
    %10 = vector.load %arg4[%c0_7, %c0_8] : memref<144x36xbf16, #tpu.memory_space<vmem>>, vector<144x36xbf16>
    %cst_9 = arith.constant dense<0.000000e+00> : vector<12x36xf32>
    %11 = tpu.matmul %9, %10, %cst_9 {dimension_numbers = #tpu.dot_dimension_numbers<[1], [0], [0], [1], [0, 0, 1, 1], [], []>} : vector<12x144xbf16>, vector<144x36xbf16>, vector<12x36xf32> -> vector<12x36xf32>
    %cst_10 = arith.constant 0.000000e+00 : f32
    %12 = vector.broadcast %cst_10 : f32 to vector<1x50xf32>
    %13 = vector.extract_strided_slice %11 {offsets = [0, 0], sizes = [1, 36], strides = [1, 1]} : vector<12x36xf32> to vector<1x36xf32>
    %14 = arith.truncf %13 : vector<1x36xf32> to vector<1x36xbf16>
    %c0_11 = arith.constant 0 : index
    %c0_12 = arith.constant 0 : index
    %c0_13 = arith.constant 0 : index
    %15 = vector.load %arg5[%c0_11, %c0_12, %c0_13] : memref<12x36x50xbf16, #tpu.memory_space<vmem>>, vector<1x36x50xbf16>
    %16 = vector.shape_cast %15 : vector<1x36x50xbf16> to vector<36x50xbf16>
    %cst_14 = arith.constant dense<0.000000e+00> : vector<1x50xf32>
    %17 = tpu.matmul %14, %16, %cst_14 {dimension_numbers = #tpu.dot_dimension_numbers<[1], [0], [0], [1], [0, 0, 1, 1], [], []>} : vector<1x36xbf16>, vector<36x50xbf16>, vector<1x50xf32> -> vector<1x50xf32>
    %18 = arith.addf %12, %17 : vector<1x50xf32>
    %19 = vector.extract_strided_slice %11 {offsets = [1, 0], sizes = [1, 36], strides = [1, 1]} : vector<12x36xf32> to vector<1x36xf32>
    %20 = arith.truncf %19 : vector<1x36xf32> to vector<1x36xbf16>
    %c1 = arith.constant 1 : index
    %c0_15 = arith.constant 0 : index
    %c0_16 = arith.constant 0 : index
    %21 = vector.load %arg5[%c1, %c0_15, %c0_16] : memref<12x36x50xbf16, #tpu.memory_space<vmem>>, vector<1x36x50xbf16>
    %22 = vector.shape_cast %21 : vector<1x36x50xbf16> to vector<36x50xbf16>
    %cst_17 = arith.constant dense<0.000000e+00> : vector<1x50xf32>
    %23 = tpu.matmul %20, %22, %cst_17 {dimension_numbers = #tpu.dot_dimension_numbers<[1], [0], [0], [1], [0, 0, 1, 1], [], []>} : vector<1x36xbf16>, vector<36x50xbf16>, vector<1x50xf32> -> vector<1x50xf32>
    %24 = arith.addf %18, %23 : vector<1x50xf32>
    %25 = vector.extract_strided_slice %11 {offsets = [2, 0], sizes = [1, 36], strides = [1, 1]} : vector<12x36xf32> to vector<1x36xf32>
    %26 = arith.truncf %25 : vector<1x36xf32> to vector<1x36xbf16>
    %c2 = arith.constant 2 : index
    %c0_18 = arith.constant 0 : index
    %c0_19 = arith.constant 0 : index
    %27 = vector.load %arg5[%c2, %c0_18, %c0_19] : memref<12x36x50xbf16, #tpu.memory_space<vmem>>, vector<1x36x50xbf16>
    %28 = vector.shape_cast %27 : vector<1x36x50xbf16> to vector<36x50xbf16>
    %cst_20 = arith.constant dense<0.000000e+00> : vector<1x50xf32>
    %29 = tpu.matmul %26, %28, %cst_20 {dimension_numbers = #tpu.dot_dimension_numbers<[1], [0], [0], [1], [0, 0, 1, 1], [], []>} : vector<1x36xbf16>, vector<36x50xbf16>, vector<1x50xf32> -> vector<1x50xf32>
    %30 = arith.addf %24, %29 : vector<1x50xf32>
    %31 = vector.extract_strided_slice %11 {offsets = [3, 0], sizes = [1, 36], strides = [1, 1]} : vector<12x36xf32> to vector<1x36xf32>
    %32 = arith.truncf %31 : vector<1x36xf32> to vector<1x36xbf16>
    %c3 = arith.constant 3 : index
    %c0_21 = arith.constant 0 : index
    %c0_22 = arith.constant 0 : index
    %33 = vector.load %arg5[%c3, %c0_21, %c0_22] : memref<12x36x50xbf16, #tpu.memory_space<vmem>>, vector<1x36x50xbf16>
    %34 = vector.shape_cast %33 : vector<1x36x50xbf16> to vector<36x50xbf16>
    %cst_23 = arith.constant dense<0.000000e+00> : vector<1x50xf32>
    %35 = tpu.matmul %32, %34, %cst_23 {dimension_numbers = #tpu.dot_dimension_numbers<[1], [0], [0], [1], [0, 0, 1, 1], [], []>} : vector<1x36xbf16>, vector<36x50xbf16>, vector<1x50xf32> -> vector<1x50xf32>
    %36 = arith.addf %30, %35 : vector<1x50xf32>
    %37 = vector.extract_strided_slice %11 {offsets = [4, 0], sizes = [1, 36], strides = [1, 1]} : vector<12x36xf32> to vector<1x36xf32>
    %38 = arith.truncf %37 : vector<1x36xf32> to vector<1x36xbf16>
    %c4 = arith.constant 4 : index
    %c0_24 = arith.constant 0 : index
    %c0_25 = arith.constant 0 : index
    %39 = vector.load %arg5[%c4, %c0_24, %c0_25] : memref<12x36x50xbf16, #tpu.memory_space<vmem>>, vector<1x36x50xbf16>
    %40 = vector.shape_cast %39 : vector<1x36x50xbf16> to vector<36x50xbf16>
    %cst_26 = arith.constant dense<0.000000e+00> : vector<1x50xf32>
    %41 = tpu.matmul %38, %40, %cst_26 {dimension_numbers = #tpu.dot_dimension_numbers<[1], [0], [0], [1], [0, 0, 1, 1], [], []>} : vector<1x36xbf16>, vector<36x50xbf16>, vector<1x50xf32> -> vector<1x50xf32>
    %42 = arith.addf %36, %41 : vector<1x50xf32>
    %43 = vector.extract_strided_slice %11 {offsets = [5, 0], sizes = [1, 36], strides = [1, 1]} : vector<12x36xf32> to vector<1x36xf32>
    %44 = arith.truncf %43 : vector<1x36xf32> to vector<1x36xbf16>
    %c5 = arith.constant 5 : index
    %c0_27 = arith.constant 0 : index
    %c0_28 = arith.constant 0 : index
    %45 = vector.load %arg5[%c5, %c0_27, %c0_28] : memref<12x36x50xbf16, #tpu.memory_space<vmem>>, vector<1x36x50xbf16>
    %46 = vector.shape_cast %45 : vector<1x36x50xbf16> to vector<36x50xbf16>
    %cst_29 = arith.constant dense<0.000000e+00> : vector<1x50xf32>
    %47 = tpu.matmul %44, %46, %cst_29 {dimension_numbers = #tpu.dot_dimension_numbers<[1], [0], [0], [1], [0, 0, 1, 1], [], []>} : vector<1x36xbf16>, vector<36x50xbf16>, vector<1x50xf32> -> vector<1x50xf32>
    %48 = arith.addf %42, %47 : vector<1x50xf32>
    %49 = vector.extract_strided_slice %11 {offsets = [6, 0], sizes = [1, 36], strides = [1, 1]} : vector<12x36xf32> to vector<1x36xf32>
    %50 = arith.truncf %49 : vector<1x36xf32> to vector<1x36xbf16>
    %c6 = arith.constant 6 : index
    %c0_30 = arith.constant 0 : index
    %c0_31 = arith.constant 0 : index
    %51 = vector.load %arg5[%c6, %c0_30, %c0_31] : memref<12x36x50xbf16, #tpu.memory_space<vmem>>, vector<1x36x50xbf16>
    %52 = vector.shape_cast %51 : vector<1x36x50xbf16> to vector<36x50xbf16>
    %cst_32 = arith.constant dense<0.000000e+00> : vector<1x50xf32>
    %53 = tpu.matmul %50, %52, %cst_32 {dimension_numbers = #tpu.dot_dimension_numbers<[1], [0], [0], [1], [0, 0, 1, 1], [], []>} : vector<1x36xbf16>, vector<36x50xbf16>, vector<1x50xf32> -> vector<1x50xf32>
    %54 = arith.addf %48, %53 : vector<1x50xf32>
    %55 = vector.extract_strided_slice %11 {offsets = [7, 0], sizes = [1, 36], strides = [1, 1]} : vector<12x36xf32> to vector<1x36xf32>
    %56 = arith.truncf %55 : vector<1x36xf32> to vector<1x36xbf16>
    %c7 = arith.constant 7 : index
    %c0_33 = arith.constant 0 : index
    %c0_34 = arith.constant 0 : index
    %57 = vector.load %arg5[%c7, %c0_33, %c0_34] : memref<12x36x50xbf16, #tpu.memory_space<vmem>>, vector<1x36x50xbf16>
    %58 = vector.shape_cast %57 : vector<1x36x50xbf16> to vector<36x50xbf16>
    %cst_35 = arith.constant dense<0.000000e+00> : vector<1x50xf32>
    %59 = tpu.matmul %56, %58, %cst_35 {dimension_numbers = #tpu.dot_dimension_numbers<[1], [0], [0], [1], [0, 0, 1, 1], [], []>} : vector<1x36xbf16>, vector<36x50xbf16>, vector<1x50xf32> -> vector<1x50xf32>
    %60 = arith.addf %54, %59 : vector<1x50xf32>
    %61 = vector.extract_strided_slice %11 {offsets = [8, 0], sizes = [1, 36], strides = [1, 1]} : vector<12x36xf32> to vector<1x36xf32>
    %62 = arith.truncf %61 : vector<1x36xf32> to vector<1x36xbf16>
    %c8 = arith.constant 8 : index
    %c0_36 = arith.constant 0 : index
    %c0_37 = arith.constant 0 : index
    %63 = vector.load %arg5[%c8, %c0_36, %c0_37] : memref<12x36x50xbf16, #tpu.memory_space<vmem>>, vector<1x36x50xbf16>
    %64 = vector.shape_cast %63 : vector<1x36x50xbf16> to vector<36x50xbf16>
    %cst_38 = arith.constant dense<0.000000e+00> : vector<1x50xf32>
    %65 = tpu.matmul %62, %64, %cst_38 {dimension_numbers = #tpu.dot_dimension_numbers<[1], [0], [0], [1], [0, 0, 1, 1], [], []>} : vector<1x36xbf16>, vector<36x50xbf16>, vector<1x50xf32> -> vector<1x50xf32>
    %66 = arith.addf %60, %65 : vector<1x50xf32>
    %67 = vector.extract_strided_slice %11 {offsets = [9, 0], sizes = [1, 36], strides = [1, 1]} : vector<12x36xf32> to vector<1x36xf32>
    %68 = arith.truncf %67 : vector<1x36xf32> to vector<1x36xbf16>
    %c9 = arith.constant 9 : index
    %c0_39 = arith.constant 0 : index
    %c0_40 = arith.constant 0 : index
    %69 = vector.load %arg5[%c9, %c0_39, %c0_40] : memref<12x36x50xbf16, #tpu.memory_space<vmem>>, vector<1x36x50xbf16>
    %70 = vector.shape_cast %69 : vector<1x36x50xbf16> to vector<36x50xbf16>
    %cst_41 = arith.constant dense<0.000000e+00> : vector<1x50xf32>
    %71 = tpu.matmul %68, %70, %cst_41 {dimension_numbers = #tpu.dot_dimension_numbers<[1], [0], [0], [1], [0, 0, 1, 1], [], []>} : vector<1x36xbf16>, vector<36x50xbf16>, vector<1x50xf32> -> vector<1x50xf32>
    %72 = arith.addf %66, %71 : vector<1x50xf32>
    %73 = vector.extract_strided_slice %11 {offsets = [10, 0], sizes = [1, 36], strides = [1, 1]} : vector<12x36xf32> to vector<1x36xf32>
    %74 = arith.truncf %73 : vector<1x36xf32> to vector<1x36xbf16>
    %c10 = arith.constant 10 : index
    %c0_42 = arith.constant 0 : index
    %c0_43 = arith.constant 0 : index
    %75 = vector.load %arg5[%c10, %c0_42, %c0_43] : memref<12x36x50xbf16, #tpu.memory_space<vmem>>, vector<1x36x50xbf16>
    %76 = vector.shape_cast %75 : vector<1x36x50xbf16> to vector<36x50xbf16>
    %cst_44 = arith.constant dense<0.000000e+00> : vector<1x50xf32>
    %77 = tpu.matmul %74, %76, %cst_44 {dimension_numbers = #tpu.dot_dimension_numbers<[1], [0], [0], [1], [0, 0, 1, 1], [], []>} : vector<1x36xbf16>, vector<36x50xbf16>, vector<1x50xf32> -> vector<1x50xf32>
    %78 = arith.addf %72, %77 : vector<1x50xf32>
    %79 = vector.extract_strided_slice %11 {offsets = [11, 0], sizes = [1, 36], strides = [1, 1]} : vector<12x36xf32> to vector<1x36xf32>
    %80 = arith.truncf %79 : vector<1x36xf32> to vector<1x36xbf16>
    %c11 = arith.constant 11 : index
    %c0_45 = arith.constant 0 : index
    %c0_46 = arith.constant 0 : index
    %81 = vector.load %arg5[%c11, %c0_45, %c0_46] : memref<12x36x50xbf16, #tpu.memory_space<vmem>>, vector<1x36x50xbf16>
    %82 = vector.shape_cast %81 : vector<1x36x50xbf16> to vector<36x50xbf16>
    %cst_47 = arith.constant dense<0.000000e+00> : vector<1x50xf32>
    %83 = tpu.matmul %80, %82, %cst_47 {dimension_numbers = #tpu.dot_dimension_numbers<[1], [0], [0], [1], [0, 0, 1, 1], [], []>} : vector<1x36xbf16>, vector<36x50xbf16>, vector<1x50xf32> -> vector<1x50xf32>
    %84 = arith.addf %78, %83 : vector<1x50xf32>
    %c0_48 = arith.constant 0 : index
    %c0_49 = arith.constant 0 : index
    %85 = vector.load %arg6[%c0_48, %c0_49] : memref<1x50xf32, #tpu.memory_space<vmem>>, vector<1x50xf32>
    %86 = arith.addf %84, %85 : vector<1x50xf32>
    %cst_50 = arith.constant 0.000000e+00 : f32
    %87 = vector.broadcast %cst_50 : f32 to vector<1x50xf32>
    %88 = arith.maximumf %86, %87 : vector<1x50xf32>
    %89 = arith.truncf %88 : vector<1x50xf32> to vector<1x50xbf16>
    %c0_51 = arith.constant 0 : index
    %c0_52 = arith.constant 0 : index
    %90 = vector.load %arg7[%c0_51, %c0_52] : memref<50x10xbf16, #tpu.memory_space<vmem>>, vector<50x10xbf16>
    %cst_53 = arith.constant dense<0.000000e+00> : vector<1x10xf32>
    %91 = tpu.matmul %89, %90, %cst_53 {dimension_numbers = #tpu.dot_dimension_numbers<[1], [0], [0], [1], [0, 0, 1, 1], [], []>} : vector<1x50xbf16>, vector<50x10xbf16>, vector<1x10xf32> -> vector<1x10xf32>
    %c0_54 = arith.constant 0 : index
    %c0_55 = arith.constant 0 : index
    %92 = vector.load %arg8[%c0_54, %c0_55] : memref<1x10xf32, #tpu.memory_space<vmem>>, vector<1x10xf32>
    %93 = arith.addf %91, %92 : vector<1x10xf32>
    %cst_56 = arith.constant dense<0xFF800000> : vector<1xf32>
    %94 = vector.multi_reduction <maximumf>, %93, %cst_56 [1] : vector<1x10xf32> to vector<1xf32>
    %95 = vector.shape_cast %94 : vector<1xf32> to vector<1x1xf32>
    %96 = vector.broadcast %95 : vector<1x1xf32> to vector<1x10xf32>
    %97 = arith.subf %93, %96 : vector<1x10xf32>
    %98 = math.exp %97 : vector<1x10xf32>
    %cst_57 = arith.constant dense<0.000000e+00> : vector<1xf32>
    %99 = vector.multi_reduction <add>, %98, %cst_57 [1] : vector<1x10xf32> to vector<1xf32>
    %100 = vector.shape_cast %99 : vector<1xf32> to vector<1x1xf32>
    %101 = math.log %100 : vector<1x1xf32>
    %102 = arith.addf %101, %95 : vector<1x1xf32>
    %103 = vector.broadcast %102 : vector<1x1xf32> to vector<1x10xf32>
    %104 = arith.subf %93, %103 : vector<1x10xf32>
    %c0_58 = arith.constant 0 : index
    %c0_59 = arith.constant 0 : index
    %c0_60 = arith.constant 0 : index
    %105 = vector.load %arg9[%c0_58, %c0_59, %c0_60] : memref<1x1x10xf32, #tpu.memory_space<vmem>>, vector<1x1x10xf32>
    %106 = vector.shape_cast %105 : vector<1x1x10xf32> to vector<1x10xf32>
    %107 = vector.shape_cast %104 : vector<1x10xf32> to vector<1x1x10xf32>
    tpu.vector_store %arg9[%c0_58, %c0_59, %c0_60], %107 {strides = array<i32>} : memref<1x1x10xf32, #tpu.memory_space<vmem>>, vector<1x1x10xf32>,
    return
  }
  func.func @transform_0(%arg0: i32) -> (i32, i32) {
    %c0_i32 = arith.constant 0 : i32
    %c0_i32_0 = arith.constant 0 : i32
    %c0_i32_1 = arith.constant 0 : i32
    return %c0_i32, %c0_i32_0 : i32, i32
  }
  func.func @transform_1(%arg0: i32) -> (i32, i32, i32) {
    %c0_i32 = arith.constant 0 : i32
    %c0_i32_0 = arith.constant 0 : i32
    %c0_i32_1 = arith.constant 0 : i32
    return %arg0, %c0_i32, %c0_i32_0 : i32, i32, i32
  }
  func.func @transform_2(%arg0: i32) -> (i32, i32) {
    %c0_i32 = arith.constant 0 : i32
    %c0_i32_0 = arith.constant 0 : i32
    %c0_i32_1 = arith.constant 0 : i32
    return %c0_i32, %c0_i32_0 : i32, i32
  }
  func.func @transform_3(%arg0: i32) -> (i32, i32) {
    %c0_i32 = arith.constant 0 : i32
    %c0_i32_0 = arith.constant 0 : i32
    %c0_i32_1 = arith.constant 0 : i32
    return %c0_i32, %c0_i32_0 : i32, i32
  }
  func.func @transform_4(%arg0: i32) -> (i32, i32, i32) {
    %c0_i32 = arith.constant 0 : i32
    %c0_i32_0 = arith.constant 0 : i32
    %c0_i32_1 = arith.constant 0 : i32
    %c0_i32_2 = arith.constant 0 : i32
    return %c0_i32, %c0_i32_0, %c0_i32_1 : i32, i32, i32
  }
  func.func @transform_5(%arg0: i32) -> (i32, i32) {
    %c0_i32 = arith.constant 0 : i32
    %c0_i32_0 = arith.constant 0 : i32
    %c0_i32_1 = arith.constant 0 : i32
    return %c0_i32, %c0_i32_0 : i32, i32
  }
  func.func @transform_6(%arg0: i32) -> (i32, i32) {
    %c0_i32 = arith.constant 0 : i32
    %c0_i32_0 = arith.constant 0 : i32
    %c0_i32_1 = arith.constant 0 : i32
    return %c0_i32, %c0_i32_0 : i32, i32
  }
  func.func @transform_7(%arg0: i32) -> (i32, i32) {
    %c0_i32 = arith.constant 0 : i32
    %c0_i32_0 = arith.constant 0 : i32
    %c0_i32_1 = arith.constant 0 : i32
    return %c0_i32, %c0_i32_0 : i32, i32
  }
  func.func @transform_8(%arg0: i32) -> (i32, i32, i32) {
    %c0_i32 = arith.constant 0 : i32
    %c0_i32_0 = arith.constant 0 : i32
    %c0_i32_1 = arith.constant 0 : i32
    return %arg0, %c0_i32, %c0_i32_0 : i32, i32, i32
  }
}

</mosaic_0001>

<llo_original>
// kernel: mul.1
$region0: #{mul.1}
  %s0 = inlined_call_operand.vmem [shape: f32[14,2,14], index: 0, kind: input, shape index: {}]
  %s1 = inlined_call_operand.vmem [shape: f32[28,14], index: 1, kind: output, shape index: {}]
  $region1: #{mul.1} parent=0
    #allocation0 [shape = 'u8[57344]{0}', space=vmem, size = 0xe000, scoped, tag = 'scoped mem for input reshape']
    %s3 = sshllo.u32 0, 2
    %s4 = smul.addr 2, 13
    %s5 = scalar_lea.vmem %s0, %s4
    %v6 = vld [vmem:[%s5] sm:%s3]
    %s7 = scalar_lea.vmem [#allocation0], 104
    %8 = vst [vmem:[%s7] sm:%s3] %v6
    %s9 = smul.addr 2, 12
    %s10 = scalar_lea.vmem %s0, %s9
    %v11 = vld [vmem:[%s10] sm:%s3]
    %s12 = scalar_lea.vmem [#allocation0], 96
    %13 = vst [vmem:[%s12] sm:%s3] %v11
    %s14 = smul.addr 2, 11
    %s15 = scalar_lea.vmem %s0, %s14
    %v16 = vld [vmem:[%s15] sm:%s3]
    %s17 = scalar_lea.vmem [#allocation0], 88
    %18 = vst [vmem:[%s17] sm:%s3] %v16
    %s19 = smul.addr 2, 10
    %s20 = scalar_lea.vmem %s0, %s19
    %v21 = vld [vmem:[%s20] sm:%s3]
    %s22 = scalar_lea.vmem [#allocation0], 80
    %23 = vst [vmem:[%s22] sm:%s3] %v21
    %s24 = smul.addr 2, 9
    %s25 = scalar_lea.vmem %s0, %s24
    %v26 = vld [vmem:[%s25] sm:%s3]
    %s27 = scalar_lea.vmem [#allocation0], 72
    %28 = vst [vmem:[%s27] sm:%s3] %v26
    %s29 = smul.addr 2, 8
    %s30 = scalar_lea.vmem %s0, %s29
    %v31 = vld [vmem:[%s30] sm:%s3]
    %s32 = scalar_lea.vmem [#allocation0], 64
    %33 = vst [vmem:[%s32] sm:%s3] %v31
    %s34 = smul.addr 2, 7
    %s35 = scalar_lea.vmem %s0, %s34
    %v36 = vld [vmem:[%s35] sm:%s3]
    %s37 = scalar_lea.vmem [#allocation0], 56
    %38 = vst [vmem:[%s37] sm:%s3] %v36
    %s39 = smul.addr 2, 6
    %s40 = scalar_lea.vmem %s0, %s39
    %v41 = vld [vmem:[%s40] sm:%s3]
    %s42 = scalar_lea.vmem [#allocation0], 48
    %43 = vst [vmem:[%s42] sm:%s3] %v41
    %s44 = smul.addr 2, 5
    %s45 = scalar_lea.vmem %s0, %s44
    %v46 = vld [vmem:[%s45] sm:%s3]
    %s47 = scalar_lea.vmem [#allocation0], 40
    %48 = vst [vmem:[%s47] sm:%s3] %v46
    %s49 = smul.addr 2, 4
    %s50 = scalar_lea.vmem %s0, %s49
    %v51 = vld [vmem:[%s50] sm:%s3]
    %s52 = scalar_lea.vmem [#allocation0], 32
    %53 = vst [vmem:[%s52] sm:%s3] %v51
    %s54 = smul.addr 2, 3
    %s55 = scalar_lea.vmem %s0, %s54
    %v56 = vld [vmem:[%s55] sm:%s3]
    %s57 = scalar_lea.vmem [#allocation0], 24
    %58 = vst [vmem:[%s57] sm:%s3] %v56
    %s59 = smul.addr 2, 2
    %s60 = scalar_lea.vmem %s0, %s59
    %v61 = vld [vmem:[%s60] sm:%s3]
    %s62 = scalar_lea.vmem [#allocation0], 16
    %63 = vst [vmem:[%s62] sm:%s3] %v61
    %s64 = scalar_lea.vmem %s0, 2
    %v65 = vld [vmem:[%s64] sm:%s3]
    %s66 = scalar_lea.vmem [#allocation0], 8
    %67 = vst [vmem:[%s66] sm:%s3] %v65
    %v68 = vld [vmem:[%s0] sm:%s3]
    %69 = vst [vmem:[#allocation0] sm:%s3] %v68
    %v70 = vld [vmem:[#allocation0] sm:$0x3]
    %vm71 = vcmask 113664
    %72 = vst.msk [vmem:[%s1] sm:$0x3] %vm71, %v70
    %s73 = scalar_lea.vmem [#allocation0], 8
    %v74 = vld [vmem:[%s73] sm:$0x3]
    %vm75 = vcmask 113664
    %s76 = scalar_lea.vmem %s1, 2
    %77 = vst.msk [vmem:[%s76] sm:$0x3] %vm75, %v74
    %s78 = scalar_lea.vmem [#allocation0], 16
    %v79 = vld [vmem:[%s78] sm:$0x3]
    %vm80 = vcmask 113664
    %s81 = scalar_lea.vmem %s1, 4
    %82 = vst.msk [vmem:[%s81] sm:$0x3] %vm80, %v79
    %s83 = scalar_lea.vmem [#allocation0], 24
    %v84 = vld [vmem:[%s83] sm:$0x3]
    %vm85 = vcmask 113664
    %s86 = scalar_lea.vmem %s1, 6
    %87 = vst.msk [vmem:[%s86] sm:$0x3] %vm85, %v84
    %s88 = scalar_lea.vmem [#allocation0], 32
    %v89 = vld [vmem:[%s88] sm:$0x3]
    %vm90 = vcmask 113664
    %s91 = scalar_lea.vmem %s1, 8
    %92 = vst.msk [vmem:[%s91] sm:$0x3] %vm90, %v89
    %s93 = scalar_lea.vmem [#allocation0], 40
    %v94 = vld [vmem:[%s93] sm:$0x3]
    %vm95 = vcmask 113664
    %s96 = scalar_lea.vmem %s1, 10
    %97 = vst.msk [vmem:[%s96] sm:$0x3] %vm95, %v94
    %s98 = scalar_lea.vmem [#allocation0], 48
    %v99 = vld [vmem:[%s98] sm:$0x3]
    %vm100 = vcmask 113664
    %s101 = scalar_lea.vmem %s1, 12
    %102 = vst.msk [vmem:[%s101] sm:$0x3] %vm100, %v99
    %s103 = scalar_lea.vmem [#allocation0], 56
    %v104 = vld [vmem:[%s103] sm:$0x3]
    %vm105 = vcmask 113664
    %s106 = scalar_lea.vmem %s1, 14
    %107 = vst.msk [vmem:[%s106] sm:$0x3] %vm105, %v104
    %s108 = scalar_lea.vmem [#allocation0], 64
    %v109 = vld [vmem:[%s108] sm:$0x3]
    %vm110 = vcmask 113664
    %s111 = scalar_lea.vmem %s1, 16
    %112 = vst.msk [vmem:[%s111] sm:$0x3] %vm110, %v109
    %s113 = scalar_lea.vmem [#allocation0], 72
    %v114 = vld [vmem:[%s113] sm:$0x3]
    %vm115 = vcmask 113664
    %s116 = scalar_lea.vmem %s1, 18
    %117 = vst.msk [vmem:[%s116] sm:$0x3] %vm115, %v114
    %s118 = scalar_lea.vmem [#allocation0], 80
    %v119 = vld [vmem:[%s118] sm:$0x3]
    %vm120 = vcmask 113664
    %s121 = scalar_lea.vmem %s1, 20
    %122 = vst.msk [vmem:[%s121] sm:$0x3] %vm120, %v119
    %s123 = scalar_lea.vmem [#allocation0], 88
    %v124 = vld [vmem:[%s123] sm:$0x3]
    %vm125 = vcmask 113664
    %s126 = scalar_lea.vmem %s1, 22
    %127 = vst.msk [vmem:[%s126] sm:$0x3] %vm125, %v124
    %s128 = scalar_lea.vmem [#allocation0], 96
    %v129 = vld [vmem:[%s128] sm:$0x3]
    %vm130 = vcmask 113664
    %s131 = scalar_lea.vmem %s1, 24
    %132 = vst.msk [vmem:[%s131] sm:$0x3] %vm130, %v129
    %s133 = scalar_lea.vmem [#allocation0], 104
    %v134 = vld [vmem:[%s133] sm:$0x3]
    %vm135 = vcmask 113664
    %s136 = scalar_lea.vmem %s1, 26
    %137 = vst.msk [vmem:[%s136] sm:$0x3] %vm135, %v134

// kernel: convnet_forward.2
$region0: #{convnet_forward.2}
  #allocation0 [shape = 'u32[]', space=smem, size = 0x4, offset = 0x4, fixed_abs, tag = 'smem constant byte address 0x4 - core index']
  #allocation1 [shape = 'u32[144,128]{1,0:T(1,128)}', space=vmem, size = 0x12000, scoped, tag = 'internal scratch']
  %s0 = inlined_call_operand.vmem [shape: bf16[6,75], index: 0, kind: input, shape index: {}]
  %s1 = inlined_call_operand.vmem [shape: bf16[2,75,784], index: 1, kind: input, shape index: {}]
  %s2 = inlined_call_operand.vmem [shape: f32[6,1], index: 2, kind: input, shape index: {}]
  %s3 = inlined_call_operand.vmem [shape: bf16[784,196], index: 3, kind: input, shape index: {}]
  %s4 = inlined_call_operand.vmem [shape: bf16[2,6,196], index: 4, kind: output, shape index: {}]
  %s5 = sld [smem:[#allocation0]]
  $region49: #{convnet_forward.2} parent=0
    _
  %s7 = ssub.s32 1, %s5
  %s8 = scalar_select 0, %s7, %s5
  loop: start=0, step=1, limit=4
  $region2: #{convnet_forward.2} parent=0 // loop_pre_header
    _
  $region3: #{convnet_forward.2} parent=0 // loop_header
    %s10 = sphi 0, %s14
    %p11 = scmp.ge.s32.totalorder %s10, 4
    %s18 = sphi 0, %s18
    %s20 = sphi 0, %s18
    %s21 = sphi 0, %s20
    %s35 = sphi 0, %s21
    %s41 = sphi 0, %s43
    %s44 = sphi 0, %s41
    %s45 = sphi 0, %s44
    %s61 = sphi 0, %s45
    %s65 = sphi 0, %s65
    %s67 = sphi 0, %s65
    %s68 = sphi 0, %s67
    %s82 = sphi 0, %s68
    %s86 = sphi 0, %s86
    %s88 = sphi 0, %s86
    %s89 = sphi 0, %s88
    %s103 = sphi 0, %s89
    %s109 = sphi 0, %s111
    %s112 = sphi 0, %s109
    %s113 = sphi 0, %s112
    %s129 = sphi 0, %s113
  $region4: #{convnet_forward.2} parent=0 // loop_header_branch
    %13 = sbr.rel (%p11) target = $region8
  $region5: #{convnet_forward.2} parent=0 // loop_body
    %s15 = ssub.s32 %s10, 1
    %s16 = ssub.s32 %s10, 2
    %s17 = sadd.s32 %s10, 1
    %s19 = sadd.s32 %s18, 1
    %p22 = scmp.eq.s32.totalorder %s10, 1
    %p23 = scmp.ne.s32.totalorder %s18, %s20
    %p24 = scmp.eq.s32.totalorder %s10, 0
    %p25 = por %p23, %p24
    %p26 = scmp.ne.s32.totalorder %s18, %s20
    %p27 = scmp.eq.s32.totalorder %s15, 1
    %p28 = por %p26, %p27
    %p29 = scmp.ne.s32.totalorder %s20, %s21
    %p30 = scmp.eq.s32.totalorder %s15, 0
    %p31 = por %p29, %p30
    %p32 = scmp.ne.s32.totalorder %s20, %s21
    %p33 = scmp.eq.s32.totalorder %s16, 1
    %p34 = por %p32, %p33
    %p36 = scmp.ne.s32.totalorder %s21, %s35
    %p37 = scmp.eq.s32.totalorder %s16, 0
    %p38 = por %p36, %p37
    %s39 = ssub.s32 %s10, %s17
    %p40 = scmp.eq.s32.totalorder %s39, 0
    %s42 = sadd.s32 %s41, 1
    %s43 = scalar_select %p40, %s41, %s42
    %p46 = pneg %p40
    %p47 = scmp.eq.s32.totalorder %s10, 1
    %p48 = por %p46, %p47
    %p49 = scmp.ne.s32.totalorder %s41, %s44
    %p50 = scmp.eq.s32.totalorder %s10, 0
    %p51 = por %p49, %p50
    %p52 = scmp.ne.s32.totalorder %s41, %s44
    %p53 = scmp.eq.s32.totalorder %s15, 1
    %p54 = por %p52, %p53
    %p55 = scmp.ne.s32.totalorder %s44, %s45
    %p56 = scmp.eq.s32.totalorder %s15, 0
    %p57 = por %p55, %p56
    %p58 = scmp.ne.s32.totalorder %s44, %s45
    %p59 = scmp.eq.s32.totalorder %s16, 1
    %p60 = por %p58, %p59
    %p62 = scmp.ne.s32.totalorder %s45, %s61
    %p63 = scmp.eq.s32.totalorder %s16, 0
    %p64 = por %p62, %p63
    %s66 = sadd.s32 %s65, 1
    %p69 = scmp.eq.s32.totalorder %s10, 1
    %p70 = scmp.ne.s32.totalorder %s65, %s67
    %p71 = scmp.eq.s32.totalorder %s10, 0
    %p72 = por %p70, %p71
    %p73 = scmp.ne.s32.totalorder %s65, %s67
    %p74 = scmp.eq.s32.totalorder %s15, 1
    %p75 = por %p73, %p74
    %p76 = scmp.ne.s32.totalorder %s67, %s68
    %p77 = scmp.eq.s32.totalorder %s15, 0
    %p78 = por %p76, %p77
    %p79 = scmp.ne.s32.totalorder %s67, %s68
    %p80 = scmp.eq.s32.totalorder %s16, 1
    %p81 = por %p79, %p80
    %p83 = scmp.ne.s32.totalorder %s68, %s82
    %p84 = scmp.eq.s32.totalorder %s16, 0
    %p85 = por %p83, %p84
    %s87 = sadd.s32 %s86, 1
    %p90 = scmp.eq.s32.totalorder %s10, 1
    %p91 = scmp.ne.s32.totalorder %s86, %s88
    %p92 = scmp.eq.s32.totalorder %s10, 0
    %p93 = por %p91, %p92
    %p94 = scmp.ne.s32.totalorder %s86, %s88
    %p95 = scmp.eq.s32.totalorder %s15, 1
    %p96 = por %p94, %p95
    %p97 = scmp.ne.s32.totalorder %s88, %s89
    %p98 = scmp.eq.s32.totalorder %s15, 0
    %p99 = por %p97, %p98
    %p100 = scmp.ne.s32.totalorder %s88, %s89
    %p101 = scmp.eq.s32.totalorder %s16, 1
    %p102 = por %p100, %p101
    %p104 = scmp.ne.s32.totalorder %s89, %s103
    %p105 = scmp.eq.s32.totalorder %s16, 0
    %p106 = por %p104, %p105
    %s107 = ssub.s32 %s10, %s17
    %p108 = scmp.eq.s32.totalorder %s107, 0
    %s110 = sadd.s32 %s109, 1
    %s111 = scalar_select %p108, %s109, %s110
    %p114 = pneg %p108
    %p115 = scmp.eq.s32.totalorder %s10, 1
    %p116 = por %p114, %p115
    %p117 = scmp.ne.s32.totalorder %s109, %s112
    %p118 = scmp.eq.s32.totalorder %s10, 0
    %p119 = por %p117, %p118
    %p120 = scmp.ne.s32.totalorder %s109, %s112
    %p121 = scmp.eq.s32.totalorder %s15, 1
    %p122 = por %p120, %p121
    %p123 = scmp.ne.s32.totalorder %s112, %s113
    %p124 = scmp.eq.s32.totalorder %s15, 0
    %p125 = por %p123, %p124
    %p126 = scmp.ne.s32.totalorder %s112, %s113
    %p127 = scmp.eq.s32.totalorder %s16, 1
    %p128 = por %p126, %p127
    %p130 = scmp.ne.s32.totalorder %s113, %s129
    %p131 = scmp.eq.s32.totalorder %s16, 0
    %p132 = por %p130, %p131
    %p133 = scmp.le.s32.totalorder 1, %s10
    %p134 = scmp.lt.s32.totalorder %s10, 3
    %p135 = pnand %p133, %p134
    %p136 = pneg %p135
    // Predicated region
    $region9: #{convnet_forward.2} parent=5 // pred_check
      _
    $region10: #{convnet_forward.2} parent=5 // pred_check_branch
      %138 = sbr.rel (%p135) target = $region12
    $region11: #{convnet_forward.2} parent=5 // pred_region
      %s139 = ssub.s32 %s10, 1
      // Predicated region
      $region13: #{convnet_forward.2} parent=11 // pred_check
        %p140 = pneg %p31
      $region14: #{convnet_forward.2} parent=11 // pred_check_branch
        %142 = sbr.rel (%p140) target = $region16
      $region15: #{convnet_forward.2} parent=11 // pred_region
        _
      $region16: #{convnet_forward.2} parent=11 // pred_fallthru
        _
      // Predicated region
      $region17: #{convnet_forward.2} parent=11 // pred_check
        %p143 = pneg %p78
      $region18: #{convnet_forward.2} parent=11 // pred_check_branch
        %145 = sbr.rel (%p143) target = $region20
      $region19: #{convnet_forward.2} parent=11 // pred_region
        _
      $region20: #{convnet_forward.2} parent=11 // pred_fallthru
        _
      // Predicated region
      $region21: #{convnet_forward.2} parent=11 // pred_check
        %p146 = pneg %p99
      $region22: #{convnet_forward.2} parent=11 // pred_check_branch
        %148 = sbr.rel (%p146) target = $region24
      $region23: #{convnet_forward.2} parent=11 // pred_region
        _
      $region24: #{convnet_forward.2} parent=11 // pred_fallthru
        _
    $region12: #{convnet_forward.2} parent=5 // pred_fallthru
      _
    %p149 = scmp.lt.s32.totalorder %s10, 2
    // Predicated region
    $region25: #{convnet_forward.2} parent=5 // pred_check
      %p150 = pneg %p149
    $region26: #{convnet_forward.2} parent=5 // pred_check_branch
      %152 = sbr.rel (%p150) target = $region28
    $region27: #{convnet_forward.2} parent=5 // pred_region
      // Predicated region
      $region29: #{convnet_forward.2} parent=27 // pred_check
        %p153 = pneg %p51
      $region30: #{convnet_forward.2} parent=27 // pred_check_branch
        %155 = sbr.rel (%p153) target = $region32
      $region31: #{convnet_forward.2} parent=27 // pred_region
        %p156 = scmp.lt.s32.totalorder %s10, 1
        %s157 = scalar_select %p156, %s10, 1
        %s158 = smul.addr %s157, 70
        %s159 = smul.addr %s158, 4
        %s160 = scalar_lea.vmem %s1, %s159
      $region32: #{convnet_forward.2} parent=27 // pred_fallthru
        _
    $region28: #{convnet_forward.2} parent=5 // pred_fallthru
      _
    %p161 = scmp.le.s32.totalorder 1, %s10
    %p162 = scmp.lt.s32.totalorder %s10, 3
    %p163 = pnand %p161, %p162
    %p164 = pneg %p163
    // Predicated region
    $region33: #{convnet_forward.2} parent=5 // pred_check
      _
    $region34: #{convnet_forward.2} parent=5 // pred_check_branch
      %166 = sbr.rel (%p163) target = $region36
    $region35: #{convnet_forward.2} parent=5 // pred_region
      %s167 = ssub.s32 %s10, 1
      %p168 = pneg %p31
      %p169 = pneg %p28
      %p170 = scmp.lt.s32.totalorder %s15, 1
      %s171 = scalar_select %p170, %s15, 1
      %s172 = smul.addr %s171, 70
      %s173 = smul.addr %s172, 4
      %s174 = scalar_lea.vmem %s1, %s173
      %p175 = pneg %p57
      %p176 = pneg %p54
      %p177 = pneg %p78
      %p178 = pneg %p75
      %p179 = pneg %p99
      %p180 = pneg %p96
      %p181 = pneg %p125
      %p182 = pneg %p122
      %p183 = scmp.lt.s32.totalorder %s15, 1
      %s184 = scalar_select %p183, %s15, 1
      %s185 = smul.addr %s184, 2
      %s186 = smul.addr %s185, 4
      %s187 = scalar_lea.vmem %s4, %s186
      %p188 = scmp.lt.s32.totalorder %s15, 1
      %s189 = scalar_select %p188, %s15, 1
      %s190 = smul.addr %s189, 70
      %s191 = smul.addr %s190, 4
      %s192 = scalar_lea.vmem %s1, %s191
      %p193 = scmp.lt.s32.totalorder %s15, 1
      %s194 = scalar_select %p193, %s15, 1
      %s195 = smul.addr %s194, 2
      %s196 = smul.addr %s195, 4
      %s197 = scalar_lea.vmem %s4, %s196
      %v199 = vld [vmem:[%s0] sm:$0x7]
      %v200 = vld [vmem:[%s192] sm:$0xff]
      %v201 = vld [vmem:[%s192 + $0x8] sm:$0xff]
      %v202 = vld [vmem:[%s192 + $0x10] sm:$0xff]
      %v203 = vld [vmem:[%s192 + $0x18] sm:$0xf]
      %v204 = vld [vmem:[%s192 + $0x1c] sm:$0xff]
      %v205 = vld [vmem:[%s192 + $0x24] sm:$0xff]
      %v206 = vld [vmem:[%s192 + $0x2c] sm:$0xff]
      %v207 = vld [vmem:[%s192 + $0x34] sm:$0xf]
      %v208 = vld [vmem:[%s192 + $0x38] sm:$0xff]
      %v209 = vld [vmem:[%s192 + $0x40] sm:$0xff]
      %v210 = vld [vmem:[%s192 + $0x48] sm:$0xff]
      %v211 = vld [vmem:[%s192 + $0x50] sm:$0xf]
      %v212 = vld [vmem:[%s192 + $0x54] sm:$0xff]
      %v213 = vld [vmem:[%s192 + $0x5c] sm:$0xff]
      %v214 = vld [vmem:[%s192 + $0x64] sm:$0xff]
      %v215 = vld [vmem:[%s192 + $0x6c] sm:$0xf]
      %v216 = vld [vmem:[%s192 + $0x70] sm:$0xff]
      %v217 = vld [vmem:[%s192 + $0x78] sm:$0xff]
      %v218 = vld [vmem:[%s192 + $0x80] sm:$0xff]
      %v219 = vld [vmem:[%s192 + $0x88] sm:$0xf]
      %v220 = vld [vmem:[%s192 + $0x8c] sm:$0xff]
      %v221 = vld [vmem:[%s192 + $0x94] sm:$0xff]
      %v222 = vld [vmem:[%s192 + $0x9c] sm:$0xff]
      %v223 = vld [vmem:[%s192 + $0xa4] sm:$0xf]
      %v224 = vld [vmem:[%s192 + $0xa8] sm:$0xff]
      %v225 = vld [vmem:[%s192 + $0xb0] sm:$0xff]
      %v226 = vld [vmem:[%s192 + $0xb8] sm:$0xff]
      %v227 = vld [vmem:[%s192 + $0xc0] sm:$0xf]
      %v228 = vld [vmem:[%s192 + $0xc4] sm:$0xff]
      %v229 = vld [vmem:[%s192 + $0xcc] sm:$0xff]
      %v230 = vld [vmem:[%s192 + $0xd4] sm:$0xff]
      %v231 = vld [vmem:[%s192 + $0xdc] sm:$0xf]
      %v232 = vld [vmem:[%s192 + $0xe0] sm:$0xff]
      %v233 = vld [vmem:[%s192 + $0xe8] sm:$0xff]
      %v234 = vld [vmem:[%s192 + $0xf0] sm:$0xff]
      %v235 = vld [vmem:[%s192 + $0xf8] sm:$0xf]
      %v236 = vld [vmem:[%s192 + $0xfc] sm:$0x33]
      %v237 = vld [vmem:[%s192 + $0x104] sm:$0x33]
      %v238 = vld [vmem:[%s192 + $0x10c] sm:$0x33]
      %v239 = vld [vmem:[%s192 + $0x114] sm:$0x3]
      %v240 = vld [vmem:[%s2] sm:$0x3f]
      %242 = vset.pattern.permute.xlu0 0
      %243 = vperm.xlu0 %242, %v240
      %v244 = vpop.permute.xlu0 %243
      %v286 = vunpack.c.l.b16 %v200
      %v287 = vunpack.c.h.b16 %v200
      %v288 = vunpack.c.l.b16 %v201
      %v289 = vunpack.c.h.b16 %v201
      %v290 = vunpack.c.l.b16 %v202
      %v291 = vunpack.c.h.b16 %v202
      %v292 = vunpack.c.l.b16 %v203
      %v293 = vunpack.c.l.b16 %v204
      %v294 = vunpack.c.h.b16 %v204
      %v295 = vunpack.c.l.b16 %v205
      %v296 = vunpack.c.h.b16 %v205
      %v297 = vunpack.c.l.b16 %v206
      %v298 = vunpack.c.h.b16 %v206
      %v299 = vunpack.c.l.b16 %v207
      %v300 = vunpack.c.l.b16 %v208
      %v301 = vunpack.c.h.b16 %v208
      %v302 = vunpack.c.l.b16 %v209
      %v303 = vunpack.c.h.b16 %v209
      %v304 = vunpack.c.l.b16 %v210
      %v305 = vunpack.c.h.b16 %v210
      %v306 = vunpack.c.l.b16 %v211
      %v307 = vunpack.c.l.b16 %v212
      %v308 = vunpack.c.h.b16 %v212
      %v309 = vunpack.c.l.b16 %v213
      %v310 = vunpack.c.h.b16 %v213
      %v311 = vunpack.c.l.b16 %v214
      %v312 = vunpack.c.h.b16 %v214
      %v313 = vunpack.c.l.b16 %v215
      %v314 = vunpack.c.l.b16 %v216
      %v315 = vunpack.c.h.b16 %v216
      %v316 = vunpack.c.l.b16 %v217
      %v317 = vunpack.c.h.b16 %v217
      %v318 = vunpack.c.l.b16 %v218
      %v319 = vunpack.c.h.b16 %v218
      %v320 = vunpack.c.l.b16 %v219
      %v321 = vunpack.c.l.b16 %v220
      %v322 = vunpack.c.h.b16 %v220
      %v323 = vunpack.c.l.b16 %v221
      %v324 = vunpack.c.h.b16 %v221
      %v325 = vunpack.c.l.b16 %v222
      %v326 = vunpack.c.h.b16 %v222
      %v327 = vunpack.c.l.b16 %v223
      %v328 = vunpack.c.l.b16 %v224
      %v329 = vunpack.c.h.b16 %v224
      %v330 = vunpack.c.l.b16 %v225
      %v331 = vunpack.c.h.b16 %v225
      %v332 = vunpack.c.l.b16 %v226
      %v333 = vunpack.c.h.b16 %v226
      %v334 = vunpack.c.l.b16 %v227
      %v335 = vunpack.c.l.b16 %v228
      %v336 = vunpack.c.h.b16 %v228
      %v337 = vunpack.c.l.b16 %v229
      %v338 = vunpack.c.h.b16 %v229
      %v339 = vunpack.c.l.b16 %v230
      %v340 = vunpack.c.h.b16 %v230
      %v341 = vunpack.c.l.b16 %v231
      %v342 = vunpack.c.l.b16 %v232
      %v343 = vunpack.c.h.b16 %v232
      %v344 = vunpack.c.l.b16 %v233
      %v345 = vunpack.c.h.b16 %v233
      %v346 = vunpack.c.l.b16 %v234
      %v347 = vunpack.c.h.b16 %v234
      %v348 = vunpack.c.l.b16 %v235
      %v349 = vunpack.c.l.b16 %v236
      %v350 = vunpack.c.h.b16 %v236
      %v351 = vunpack.c.l.b16 %v237
      %v352 = vunpack.c.h.b16 %v237
      %v353 = vunpack.c.l.b16 %v238
      %v354 = vunpack.c.h.b16 %v238
      %v355 = vunpack.c.l.b16 %v239
      %v356 = vpack.c.b16 %v293, %v286
      %v357 = vpack.c.b16 %v294, %v287
      %v358 = vpack.c.b16 %v295, %v288
      %v359 = vpack.c.b16 %v296, %v289
      %v360 = vpack.c.b16 %v297, %v290
      %v361 = vpack.c.b16 %v298, %v291
      %v362 = vpack.c.b16 %v299, %v292
      %v363 = vpack.c.b16 %v307, %v300
      %v364 = vpack.c.b16 %v308, %v301
      %v365 = vpack.c.b16 %v309, %v302
      %v366 = vpack.c.b16 %v310, %v303
      %v367 = vpack.c.b16 %v311, %v304
      %v368 = vpack.c.b16 %v312, %v305
      %v369 = vpack.c.b16 %v313, %v306
      %v370 = vpack.c.b16 %v321, %v314
      %v371 = vpack.c.b16 %v322, %v315
      %v372 = vpack.c.b16 %v323, %v316
      %v373 = vpack.c.b16 %v324, %v317
      %v374 = vpack.c.b16 %v325, %v318
      %v375 = vpack.c.b16 %v326, %v319
      %v376 = vpack.c.b16 %v327, %v320
      %v377 = vpack.c.b16 %v335, %v328
      %v378 = vpack.c.b16 %v336, %v329
      %v379 = vpack.c.b16 %v337, %v330
      %v380 = vpack.c.b16 %v338, %v331
      %v381 = vpack.c.b16 %v339, %v332
      %v382 = vpack.c.b16 %v340, %v333
      %v383 = vpack.c.b16 %v341, %v334
      %v384 = vpack.c.b16 %v349, %v342
      %v385 = vpack.c.b16 %v350, %v343
      %v386 = vpack.c.b16 %v351, %v344
      %v387 = vpack.c.b16 %v352, %v345
      %v388 = vpack.c.b16 %v353, %v346
      %v389 = vpack.c.b16 %v354, %v347
      %v390 = vpack.c.b16 %v355, %v348
      %vm419 = vcmask 613376
      %v421 = vsel %vm419, %v199, 0
      %vm423 = vcmask 1044480
      %vm424 = vcmask 1045504
      %v425 = vsel %vm423, 4294967295, 65535
      %v426 = vsel %vm424, %v425, 0
      %v428 = vand.u32 %v384, %v426
      %v431 = vand.u32 %v385, %v426
      %v434 = vand.u32 %v386, %v426
      %v437 = vand.u32 %v387, %v426
      %v440 = vand.u32 %v388, %v426
      %v443 = vand.u32 %v389, %v426
      %v446 = vand.u32 %v390, %v426
      %448 = vmatprep.subr.bf16.mxu0 %v357
      %449 = vmatpush1.bf16.msra.mxu0 %v356
      %450 = vmatprep.subr.bf16.mxu0 %v364
      %451 = vmatpush1.bf16.msra.mxu0 %v363
      %452 = vmatprep.subr.bf16.mxu0 %v371
      %453 = vmatpush1.bf16.msra.mxu0 %v370
      %454 = vmatprep.subr.bf16.mxu0 %v378
      %455 = vmatpush1.bf16.msra.mxu0 %v377
      %456 = vmatprep.subr.bf16.mxu0 %v431
      %457 = vmatpush1.bf16.msra.mxu0 %v428
      %458 = vmatprep.subr.bf16.mxu0 0
      %459 = vmatpush1.bf16.msra.mxu0 0
      %460 = vmatprep.subr.bf16.mxu0 0
      %461 = vmatpush1.bf16.msra.mxu0 0
      %462 = vmatprep.subr.bf16.mxu0 0
      %463 = vmatpush1.bf16.msra.mxu0 0
      %464 = vmatprep.subr.bf16.mxu0 0
      %465 = vmatpush1.bf16.msra.mxu0 0
      %466 = vmatprep.subr.bf16.mxu0 0
      %467 = vmatpush1.bf16.msra.mxu0 0
      %468 = vmatprep.subr.bf16.mxu0 0
      %469 = vmatpush1.bf16.msra.mxu0 0
      %470 = vmatprep.subr.bf16.mxu0 0
      %471 = vmatpush1.bf16.msra.mxu0 0
      %472 = vmatprep.subr.bf16.mxu0 0
      %473 = vmatpush1.bf16.msra.mxu0 0
      %474 = vmatprep.subr.bf16.mxu0 0
      %475 = vmatpush1.bf16.msra.mxu0 0
      %476 = vmatprep.subr.bf16.mxu0 0
      %477 = vmatpush1.bf16.msra.mxu0 0
      %478 = vmatprep.subr.bf16.mxu0 0
      %479 = vmatpush1.bf16.msra.mxu0 0
      %480 = vmatprep.mubr.bf16.mxu0 0
      %481 = vmatmul.mubr.bf16.gmra.mrb[0].mxu0 %v421
      %v482 = vpop.f32.mrb[0].mxu0
      %v483 = vadd.f32 %v244, %v482
      %v484 = vpop.f32.mrb[0].mxu0
      %v485 = vadd.f32 %v244, %v484
      %v486 = vpop.f32.mrb[0].mxu0
      %v487 = vpop.f32.mrb[0].mxu0
      %488 = vdwg.mxu0
      %489 = vmatprep.subr.bf16.mxu0 %v359
      %490 = vmatpush1.bf16.msra.mxu0 %v358
      %491 = vmatprep.subr.bf16.mxu0 %v366
      %492 = vmatpush1.bf16.msra.mxu0 %v365
      %493 = vmatprep.subr.bf16.mxu0 %v373
      %494 = vmatpush1.bf16.msra.mxu0 %v372
      %495 = vmatprep.subr.bf16.mxu0 %v380
      %496 = vmatpush1.bf16.msra.mxu0 %v379
      %497 = vmatprep.subr.bf16.mxu0 %v437
      %498 = vmatpush1.bf16.msra.mxu0 %v434
      %499 = vmatprep.subr.bf16.mxu0 0
      %500 = vmatpush1.bf16.msra.mxu0 0
      %501 = vmatprep.subr.bf16.mxu0 0
      %502 = vmatpush1.bf16.msra.mxu0 0
      %503 = vmatprep.subr.bf16.mxu0 0
      %504 = vmatpush1.bf16.msra.mxu0 0
      %505 = vmatprep.subr.bf16.mxu0 0
      %506 = vmatpush1.bf16.msra.mxu0 0
      %507 = vmatprep.subr.bf16.mxu0 0
      %508 = vmatpush1.bf16.msra.mxu0 0
      %509 = vmatprep.subr.bf16.mxu0 0
      %510 = vmatpush1.bf16.msra.mxu0 0
      %511 = vmatprep.subr.bf16.mxu0 0
      %512 = vmatpush1.bf16.msra.mxu0 0
      %513 = vmatprep.subr.bf16.mxu0 0
      %514 = vmatpush1.bf16.msra.mxu0 0
      %515 = vmatprep.subr.bf16.mxu0 0
      %516 = vmatpush1.bf16.msra.mxu0 0
      %517 = vmatprep.subr.bf16.mxu0 0
      %518 = vmatpush1.bf16.msra.mxu0 0
      %519 = vmatprep.subr.bf16.mxu0 0
      %520 = vmatpush1.bf16.msra.mxu0 0
      %521 = vmatprep.mubr.bf16.mxu0 0
      %522 = vmatmul.mubr.bf16.gmra.mrb[0].mxu0 %v421
      %v523 = vpop.f32.mrb[0].mxu0
      %v524 = vadd.f32 %v244, %v523
      %v525 = vpop.f32.mrb[0].mxu0
      %v526 = vadd.f32 %v244, %v525
      %v527 = vpop.f32.mrb[0].mxu0
      %v528 = vpop.f32.mrb[0].mxu0
      %529 = vdwg.mxu0
      %530 = vmatprep.subr.bf16.mxu0 %v361
      %531 = vmatpush1.bf16.msra.mxu0 %v360
      %532 = vmatprep.subr.bf16.mxu0 %v368
      %533 = vmatpush1.bf16.msra.mxu0 %v367
      %534 = vmatprep.subr.bf16.mxu0 %v375
      %535 = vmatpush1.bf16.msra.mxu0 %v374
      %536 = vmatprep.subr.bf16.mxu0 %v382
      %537 = vmatpush1.bf16.msra.mxu0 %v381
      %538 = vmatprep.subr.bf16.mxu0 %v443
      %539 = vmatpush1.bf16.msra.mxu0 %v440
      %540 = vmatprep.subr.bf16.mxu0 0
      %541 = vmatpush1.bf16.msra.mxu0 0
      %542 = vmatprep.subr.bf16.mxu0 0
      %543 = vmatpush1.bf16.msra.mxu0 0
      %544 = vmatprep.subr.bf16.mxu0 0
      %545 = vmatpush1.bf16.msra.mxu0 0
      %546 = vmatprep.subr.bf16.mxu0 0
      %547 = vmatpush1.bf16.msra.mxu0 0
      %548 = vmatprep.subr.bf16.mxu0 0
      %549 = vmatpush1.bf16.msra.mxu0 0
      %550 = vmatprep.subr.bf16.mxu0 0
      %551 = vmatpush1.bf16.msra.mxu0 0
      %552 = vmatprep.subr.bf16.mxu0 0
      %553 = vmatpush1.bf16.msra.mxu0 0
      %554 = vmatprep.subr.bf16.mxu0 0
      %555 = vmatpush1.bf16.msra.mxu0 0
      %556 = vmatprep.subr.bf16.mxu0 0
      %557 = vmatpush1.bf16.msra.mxu0 0
      %558 = vmatprep.subr.bf16.mxu0 0
      %559 = vmatpush1.bf16.msra.mxu0 0
      %560 = vmatprep.subr.bf16.mxu0 0
      %561 = vmatpush1.bf16.msra.mxu0 0
      %562 = vmatprep.mubr.bf16.mxu0 0
      %563 = vmatmul.mubr.bf16.gmra.mrb[0].mxu0 %v421
      %v564 = vpop.f32.mrb[0].mxu0
      %v565 = vadd.f32 %v244, %v564
      %v566 = vpop.f32.mrb[0].mxu0
      %v567 = vadd.f32 %v244, %v566
      %v568 = vpop.f32.mrb[0].mxu0
      %v569 = vpop.f32.mrb[0].mxu0
      %570 = vdwg.mxu0
      %571 = vmatprep.subr.bf16.mxu0 0
      %572 = vmatpush1.bf16.msra.mxu0 %v362
      %573 = vmatprep.subr.bf16.mxu0 0
      %574 = vmatpush1.bf16.msra.mxu0 %v369
      %575 = vmatprep.subr.bf16.mxu0 0
      %576 = vmatpush1.bf16.msra.mxu0 %v376
      %577 = vmatprep.subr.bf16.mxu0 0
      %578 = vmatpush1.bf16.msra.mxu0 %v383
      %579 = vmatprep.subr.bf16.mxu0 0
      %580 = vmatpush1.bf16.msra.mxu0 %v446
      %581 = vmatprep.subr.bf16.mxu0 0
      %582 = vmatpush1.bf16.msra.mxu0 0
      %583 = vmatprep.subr.bf16.mxu0 0
      %584 = vmatpush1.bf16.msra.mxu0 0
      %585 = vmatprep.subr.bf16.mxu0 0
      %586 = vmatpush1.bf16.msra.mxu0 0
      %587 = vmatprep.subr.bf16.mxu0 0
      %588 = vmatpush1.bf16.msra.mxu0 0
      %589 = vmatprep.subr.bf16.mxu0 0
      %590 = vmatpush1.bf16.msra.mxu0 0
      %591 = vmatprep.subr.bf16.mxu0 0
      %592 = vmatpush1.bf16.msra.mxu0 0
      %593 = vmatprep.subr.bf16.mxu0 0
      %594 = vmatpush1.bf16.msra.mxu0 0
      %595 = vmatprep.subr.bf16.mxu0 0
      %596 = vmatpush1.bf16.msra.mxu0 0
      %597 = vmatprep.subr.bf16.mxu0 0
      %598 = vmatpush1.bf16.msra.mxu0 0
      %599 = vmatprep.subr.bf16.mxu0 0
      %600 = vmatpush1.bf16.msra.mxu0 0
      %601 = vmatprep.subr.bf16.mxu0 0
      %602 = vmatpush1.bf16.msra.mxu0 0
      %603 = vmatprep.mubr.bf16.mxu0 0
      %604 = vmatmul.mubr.bf16.gmra.mrb[0].mxu0 %v421
      %v605 = vpop.f32.mrb[0].mxu0
      %v606 = vadd.f32 %v244, %v605
      %v607 = vpop.f32.mrb[0].mxu0
      %v608 = vpop.f32.mrb[0].mxu0
      %v609 = vpop.f32.mrb[0].mxu0
      %610 = vdwg.mxu0
      %v611 = vmax.f32 %v483, 0.0
      %v612 = vmax.f32 %v485, 0.0
      %v613 = vmax.f32 %v524, 0.0
      %v614 = vmax.f32 %v526, 0.0
      %v615 = vmax.f32 %v565, 0.0
      %v616 = vmax.f32 %v567, 0.0
      %v617 = vmax.f32 %v606, 0.0
      %v618 = vpack.c.bf16 %v611, %v611
      %v619 = vpack.c.bf16 %v612, %v612
      %v620 = vpack.c.bf16 %v613, %v613
      %v621 = vpack.c.bf16 %v614, %v614
      %v622 = vpack.c.bf16 %v615, %v615
      %v623 = vpack.c.bf16 %v616, %v616
      %v624 = vpack.c.bf16 %v617, %v617
      %v625 = vld [vmem:[%s3] sm:$0xff]
      %v626 = vld [vmem:[%s3 + $0x8] sm:$0xff]
      %v627 = vld [vmem:[%s3 + $0x10] sm:$0xff]
      %v628 = vld [vmem:[%s3 + $0x18] sm:$0xff]
      %v629 = vld [vmem:[%s3 + $0x20] sm:$0xff]
      %v630 = vld [vmem:[%s3 + $0x28] sm:$0xff]
      %v631 = vld [vmem:[%s3 + $0x30] sm:$0xff]
      %v632 = vld [vmem:[%s3 + $0x38] sm:$0xff]
      %v633 = vld [vmem:[%s3 + $0x40] sm:$0xff]
      %v634 = vld [vmem:[%s3 + $0x48] sm:$0xff]
      %v635 = vld [vmem:[%s3 + $0x50] sm:$0xff]
      %v636 = vld [vmem:[%s3 + $0x58] sm:$0xff]
      %v637 = vld [vmem:[%s3 + $0x60] sm:$0xff]
      %v638 = vld [vmem:[%s3 + $0x68] sm:$0xff]
      %v639 = vld [vmem:[%s3 + $0x70] sm:$0xff]
      %v640 = vld [vmem:[%s3 + $0x78] sm:$0xff]
      %v641 = vld [vmem:[%s3 + $0x80] sm:$0xff]
      %v642 = vld [vmem:[%s3 + $0x88] sm:$0xff]
      %v643 = vld [vmem:[%s3 + $0x90] sm:$0xff]
      %v644 = vld [vmem:[%s3 + $0x98] sm:$0xff]
      %v645 = vld [vmem:[%s3 + $0xa0] sm:$0xff]
      %v646 = vld [vmem:[%s3 + $0xa8] sm:$0xff]
      %v647 = vld [vmem:[%s3 + $0xb0] sm:$0xff]
      %v648 = vld [vmem:[%s3 + $0xb8] sm:$0xff]
      %v649 = vld [vmem:[%s3 + $0xc0] sm:$0xff]
      %v650 = vld [vmem:[%s3 + $0xc8] sm:$0xff]
      %v651 = vld [vmem:[%s3 + $0xd0] sm:$0xff]
      %v652 = vld [vmem:[%s3 + $0xd8] sm:$0xff]
      %v653 = vld [vmem:[%s3 + $0xe0] sm:$0xff]
      %v654 = vld [vmem:[%s3 + $0xe8] sm:$0xff]
      %v655 = vld [vmem:[%s3 + $0xf0] sm:$0xff]
      %v656 = vld [vmem:[%s3 + $0xf8] sm:$0xff]
      %v657 = vld [vmem:[%s3 + $0x100] sm:$0xff]
      %v658 = vld [vmem:[%s3 + $0x108] sm:$0xff]
      %v659 = vld [vmem:[%s3 + $0x110] sm:$0xff]
      %v660 = vld [vmem:[%s3 + $0x118] sm:$0xff]
      %v661 = vld [vmem:[%s3 + $0x120] sm:$0xff]
      %v662 = vld [vmem:[%s3 + $0x128] sm:$0xff]
      %v663 = vld [vmem:[%s3 + $0x130] sm:$0xff]
      %v664 = vld [vmem:[%s3 + $0x138] sm:$0xff]
      %v665 = vld [vmem:[%s3 + $0x140] sm:$0xff]
      %v666 = vld [vmem:[%s3 + $0x148] sm:$0xff]
      %v667 = vld [vmem:[%s3 + $0x150] sm:$0xff]
      %v668 = vld [vmem:[%s3 + $0x158] sm:$0xff]
      %v669 = vld [vmem:[%s3 + $0x160] sm:$0xff]
      %v670 = vld [vmem:[%s3 + $0x168] sm:$0xff]
      %v671 = vld [vmem:[%s3 + $0x170] sm:$0xff]
      %v672 = vld [vmem:[%s3 + $0x178] sm:$0xff]
      %v673 = vld [vmem:[%s3 + $0x180] sm:$0xff]
      %v674 = vld [vmem:[%s3 + $0x188] sm:$0xff]
      %v675 = vld [vmem:[%s3 + $0x190] sm:$0xff]
      %v676 = vld [vmem:[%s3 + $0x198] sm:$0xff]
      %v677 = vld [vmem:[%s3 + $0x1a0] sm:$0xff]
      %v678 = vld [vmem:[%s3 + $0x1a8] sm:$0xff]
      %v679 = vld [vmem:[%s3 + $0x1b0] sm:$0xff]
      %v680 = vld [vmem:[%s3 + $0x1b8] sm:$0xff]
      %v681 = vld [vmem:[%s3 + $0x1c0] sm:$0xff]
      %v682 = vld [vmem:[%s3 + $0x1c8] sm:$0xff]
      %v683 = vld [vmem:[%s3 + $0x1d0] sm:$0xff]
      %v684 = vld [vmem:[%s3 + $0x1d8] sm:$0xff]
      %v685 = vld [vmem:[%s3 + $0x1e0] sm:$0xff]
      %v686 = vld [vmem:[%s3 + $0x1e8] sm:$0xff]
      %v687 = vld [vmem:[%s3 + $0x1f0] sm:$0xff]
      %v688 = vld [vmem:[%s3 + $0x1f8] sm:$0xff]
      %v689 = vld [vmem:[%s3 + $0x200] sm:$0xff]
      %v690 = vld [vmem:[%s3 + $0x208] sm:$0xff]
      %v691 = vld [vmem:[%s3 + $0x210] sm:$0xff]
      %v692 = vld [vmem:[%s3 + $0x218] sm:$0xff]
      %v693 = vld [vmem:[%s3 + $0x220] sm:$0xff]
      %v694 = vld [vmem:[%s3 + $0x228] sm:$0xff]
      %v695 = vld [vmem:[%s3 + $0x230] sm:$0xff]
      %v696 = vld [vmem:[%s3 + $0x238] sm:$0xff]
      %v697 = vld [vmem:[%s3 + $0x240] sm:$0xff]
      %v698 = vld [vmem:[%s3 + $0x248] sm:$0xff]
      %v699 = vld [vmem:[%s3 + $0x250] sm:$0xff]
      %v700 = vld [vmem:[%s3 + $0x258] sm:$0xff]
      %v701 = vld [vmem:[%s3 + $0x260] sm:$0xff]
      %v702 = vld [vmem:[%s3 + $0x268] sm:$0xff]
      %v703 = vld [vmem:[%s3 + $0x270] sm:$0xff]
      %v704 = vld [vmem:[%s3 + $0x278] sm:$0xff]
      %v705 = vld [vmem:[%s3 + $0x280] sm:$0xff]
      %v706 = vld [vmem:[%s3 + $0x288] sm:$0xff]
      %v707 = vld [vmem:[%s3 + $0x290] sm:$0xff]
      %v708 = vld [vmem:[%s3 + $0x298] sm:$0xff]
      %v709 = vld [vmem:[%s3 + $0x2a0] sm:$0xff]
      %v710 = vld [vmem:[%s3 + $0x2a8] sm:$0xff]
      %v711 = vld [vmem:[%s3 + $0x2b0] sm:$0xff]
      %v712 = vld [vmem:[%s3 + $0x2b8] sm:$0xff]
      %v713 = vld [vmem:[%s3 + $0x2c0] sm:$0xff]
      %v714 = vld [vmem:[%s3 + $0x2c8] sm:$0xff]
      %v715 = vld [vmem:[%s3 + $0x2d0] sm:$0xff]
      %v716 = vld [vmem:[%s3 + $0x2d8] sm:$0xff]
      %v717 = vld [vmem:[%s3 + $0x2e0] sm:$0xff]
      %v718 = vld [vmem:[%s3 + $0x2e8] sm:$0xff]
      %v719 = vld [vmem:[%s3 + $0x2f0] sm:$0xff]
      %v720 = vld [vmem:[%s3 + $0x2f8] sm:$0xff]
      %v721 = vld [vmem:[%s3 + $0x300] sm:$0xff]
      %v722 = vld [vmem:[%s3 + $0x308] sm:$0xff]
      %v821 = vunpack.c.l.b16 %v625
      %v822 = vunpack.c.h.b16 %v625
      %v823 = vunpack.c.l.b16 %v626
      %v824 = vunpack.c.h.b16 %v626
      %v825 = vunpack.c.l.b16 %v627
      %v826 = vunpack.c.h.b16 %v627
      %v827 = vunpack.c.l.b16 %v628
      %v828 = vunpack.c.h.b16 %v628
      %v829 = vunpack.c.l.b16 %v629
      %v830 = vunpack.c.h.b16 %v629
      %v831 = vunpack.c.l.b16 %v630
      %v832 = vunpack.c.h.b16 %v630
      %v833 = vunpack.c.l.b16 %v631
      %v834 = vunpack.c.h.b16 %v631
      %v835 = vunpack.c.l.b16 %v632
      %v836 = vunpack.c.h.b16 %v632
      %v837 = vunpack.c.l.b16 %v633
      %v838 = vunpack.c.h.b16 %v633
      %v839 = vunpack.c.l.b16 %v634
      %v840 = vunpack.c.h.b16 %v634
      %v841 = vunpack.c.l.b16 %v635
      %v842 = vunpack.c.h.b16 %v635
      %v843 = vunpack.c.l.b16 %v636
      %v844 = vunpack.c.h.b16 %v636
      %v845 = vunpack.c.l.b16 %v637
      %v846 = vunpack.c.h.b16 %v637
      %v847 = vunpack.c.l.b16 %v638
      %v848 = vunpack.c.h.b16 %v638
      %v849 = vunpack.c.l.b16 %v639
      %v850 = vunpack.c.h.b16 %v639
      %v851 = vunpack.c.l.b16 %v640
      %v852 = vunpack.c.h.b16 %v640
      %v853 = vunpack.c.l.b16 %v641
      %v854 = vunpack.c.h.b16 %v641
      %v855 = vunpack.c.l.b16 %v642
      %v856 = vunpack.c.h.b16 %v642
      %v857 = vunpack.c.l.b16 %v643
      %v858 = vunpack.c.h.b16 %v643
      %v859 = vunpack.c.l.b16 %v644
      %v860 = vunpack.c.h.b16 %v644
      %v861 = vunpack.c.l.b16 %v645
      %v862 = vunpack.c.h.b16 %v645
      %v863 = vunpack.c.l.b16 %v646
      %v864 = vunpack.c.h.b16 %v646
      %v865 = vunpack.c.l.b16 %v647
      %v866 = vunpack.c.h.b16 %v647
      %v867 = vunpack.c.l.b16 %v648
      %v868 = vunpack.c.h.b16 %v648
      %v869 = vunpack.c.l.b16 %v649
      %v870 = vunpack.c.h.b16 %v649
      %v871 = vunpack.c.l.b16 %v650
      %v872 = vunpack.c.h.b16 %v650
      %v873 = vunpack.c.l.b16 %v651
      %v874 = vunpack.c.h.b16 %v651
      %v875 = vunpack.c.l.b16 %v652
      %v876 = vunpack.c.h.b16 %v652
      %v877 = vunpack.c.l.b16 %v653
      %v878 = vunpack.c.h.b16 %v653
      %v879 = vunpack.c.l.b16 %v654
      %v880 = vunpack.c.h.b16 %v654
      %v881 = vunpack.c.l.b16 %v655
      %v882 = vunpack.c.h.b16 %v655
      %v883 = vunpack.c.l.b16 %v656
      %v884 = vunpack.c.h.b16 %v656
      %v885 = vunpack.c.l.b16 %v657
      %v886 = vunpack.c.h.b16 %v657
      %v887 = vunpack.c.l.b16 %v658
      %v888 = vunpack.c.h.b16 %v658
      %v889 = vunpack.c.l.b16 %v659
      %v890 = vunpack.c.h.b16 %v659
      %v891 = vunpack.c.l.b16 %v660
      %v892 = vunpack.c.h.b16 %v660
      %v893 = vunpack.c.l.b16 %v661
      %v894 = vunpack.c.h.b16 %v661
      %v895 = vunpack.c.l.b16 %v662
      %v896 = vunpack.c.h.b16 %v662
      %v897 = vunpack.c.l.b16 %v663
      %v898 = vunpack.c.h.b16 %v663
      %v899 = vunpack.c.l.b16 %v664
      %v900 = vunpack.c.h.b16 %v664
      %v901 = vunpack.c.l.b16 %v665
      %v902 = vunpack.c.h.b16 %v665
      %v903 = vunpack.c.l.b16 %v666
      %v904 = vunpack.c.h.b16 %v666
      %v905 = vunpack.c.l.b16 %v667
      %v906 = vunpack.c.h.b16 %v667
      %v907 = vunpack.c.l.b16 %v668
      %v908 = vunpack.c.h.b16 %v668
      %v909 = vunpack.c.l.b16 %v669
      %v910 = vunpack.c.h.b16 %v669
      %v911 = vunpack.c.l.b16 %v670
      %v912 = vunpack.c.h.b16 %v670
      %v913 = vunpack.c.l.b16 %v671
      %v914 = vunpack.c.h.b16 %v671
      %v915 = vunpack.c.l.b16 %v672
      %v916 = vunpack.c.h.b16 %v672
      %v917 = vunpack.c.l.b16 %v673
      %v918 = vunpack.c.h.b16 %v673
      %v919 = vunpack.c.l.b16 %v674
      %v920 = vunpack.c.h.b16 %v674
      %v921 = vunpack.c.l.b16 %v675
      %v922 = vunpack.c.h.b16 %v675
      %v923 = vunpack.c.l.b16 %v676
      %v924 = vunpack.c.h.b16 %v676
      %v925 = vunpack.c.l.b16 %v677
      %v926 = vunpack.c.h.b16 %v677
      %v927 = vunpack.c.l.b16 %v678
      %v928 = vunpack.c.h.b16 %v678
      %v929 = vunpack.c.l.b16 %v679
      %v930 = vunpack.c.h.b16 %v679
      %v931 = vunpack.c.l.b16 %v680
      %v932 = vunpack.c.h.b16 %v680
      %v933 = vunpack.c.l.b16 %v681
      %v934 = vunpack.c.h.b16 %v681
      %v935 = vunpack.c.l.b16 %v682
      %v936 = vunpack.c.h.b16 %v682
      %v937 = vunpack.c.l.b16 %v683
      %v938 = vunpack.c.h.b16 %v683
      %v939 = vunpack.c.l.b16 %v684
      %v940 = vunpack.c.h.b16 %v684
      %v941 = vunpack.c.l.b16 %v685
      %v942 = vunpack.c.h.b16 %v685
      %v943 = vunpack.c.l.b16 %v686
      %v944 = vunpack.c.h.b16 %v686
      %v945 = vunpack.c.l.b16 %v687
      %v946 = vunpack.c.h.b16 %v687
      %v947 = vunpack.c.l.b16 %v688
      %v948 = vunpack.c.h.b16 %v688
      %v949 = vunpack.c.l.b16 %v689
      %v950 = vunpack.c.h.b16 %v689
      %v951 = vunpack.c.l.b16 %v690
      %v952 = vunpack.c.h.b16 %v690
      %v953 = vunpack.c.l.b16 %v691
      %v954 = vunpack.c.h.b16 %v691
      %v955 = vunpack.c.l.b16 %v692
      %v956 = vunpack.c.h.b16 %v692
      %v957 = vunpack.c.l.b16 %v693
      %v958 = vunpack.c.h.b16 %v693
      %v959 = vunpack.c.l.b16 %v694
      %v960 = vunpack.c.h.b16 %v694
      %v961 = vunpack.c.l.b16 %v695
      %v962 = vunpack.c.h.b16 %v695
      %v963 = vunpack.c.l.b16 %v696
      %v964 = vunpack.c.h.b16 %v696
      %v965 = vunpack.c.l.b16 %v697
      %v966 = vunpack.c.h.b16 %v697
      %v967 = vunpack.c.l.b16 %v698
      %v968 = vunpack.c.h.b16 %v698
      %v969 = vunpack.c.l.b16 %v699
      %v970 = vunpack.c.h.b16 %v699
      %v971 = vunpack.c.l.b16 %v700
      %v972 = vunpack.c.h.b16 %v700
      %v973 = vunpack.c.l.b16 %v701
      %v974 = vunpack.c.h.b16 %v701
      %v975 = vunpack.c.l.b16 %v702
      %v976 = vunpack.c.h.b16 %v702
      %v977 = vunpack.c.l.b16 %v703
      %v978 = vunpack.c.h.b16 %v703
      %v979 = vunpack.c.l.b16 %v704
      %v980 = vunpack.c.h.b16 %v704
      %v981 = vunpack.c.l.b16 %v705
      %v982 = vunpack.c.h.b16 %v705
      %v983 = vunpack.c.l.b16 %v706
      %v984 = vunpack.c.h.b16 %v706
      %v985 = vunpack.c.l.b16 %v707
      %v986 = vunpack.c.h.b16 %v707
      %v987 = vunpack.c.l.b16 %v708
      %v988 = vunpack.c.h.b16 %v708
      %v989 = vunpack.c.l.b16 %v709
      %v990 = vunpack.c.h.b16 %v709
      %v991 = vunpack.c.l.b16 %v710
      %v992 = vunpack.c.h.b16 %v710
      %v993 = vunpack.c.l.b16 %v711
      %v994 = vunpack.c.h.b16 %v711
      %v995 = vunpack.c.l.b16 %v712
      %v996 = vunpack.c.h.b16 %v712
      %v997 = vunpack.c.l.b16 %v713
      %v998 = vunpack.c.h.b16 %v713
      %v999 = vunpack.c.l.b16 %v714
      %v1000 = vunpack.c.h.b16 %v714
      %v1001 = vunpack.c.l.b16 %v715
      %v1002 = vunpack.c.h.b16 %v715
      %v1003 = vunpack.c.l.b16 %v716
      %v1004 = vunpack.c.h.b16 %v716
      %v1005 = vunpack.c.l.b16 %v717
      %v1006 = vunpack.c.h.b16 %v717
      %v1007 = vunpack.c.l.b16 %v718
      %v1008 = vunpack.c.h.b16 %v718
      %v1009 = vunpack.c.l.b16 %v719
      %v1010 = vunpack.c.h.b16 %v719
      %v1011 = vunpack.c.l.b16 %v720
      %v1012 = vunpack.c.h.b16 %v720
      %v1013 = vunpack.c.l.b16 %v721
      %v1014 = vunpack.c.h.b16 %v721
      %v1015 = vunpack.c.l.b16 %v722
      %v1016 = vunpack.c.h.b16 %v722
      %v1017 = vpack.c.b16 %v823, %v821
      %v1018 = vpack.c.b16 %v824, %v822
      %v1019 = vpack.c.b16 %v827, %v825
      %v1020 = vpack.c.b16 %v828, %v826
      %v1021 = vpack.c.b16 %v831, %v829
      %v1022 = vpack.c.b16 %v832, %v830
      %v1023 = vpack.c.b16 %v835, %v833
      %v1024 = vpack.c.b16 %v836, %v834
      %v1025 = vpack.c.b16 %v839, %v837
      %v1026 = vpack.c.b16 %v840, %v838
      %v1027 = vpack.c.b16 %v843, %v841
      %v1028 = vpack.c.b16 %v844, %v842
      %v1029 = vpack.c.b16 %v847, %v845
      %v1030 = vpack.c.b16 %v848, %v846
      %v1031 = vpack.c.b16 %v851, %v849
      %v1032 = vpack.c.b16 %v852, %v850
      %v1033 = vpack.c.b16 %v855, %v853
      %v1034 = vpack.c.b16 %v856, %v854
      %v1035 = vpack.c.b16 %v859, %v857
      %v1036 = vpack.c.b16 %v860, %v858
      %v1037 = vpack.c.b16 %v863, %v861
      %v1038 = vpack.c.b16 %v864, %v862
      %v1039 = vpack.c.b16 %v867, %v865
      %v1040 = vpack.c.b16 %v868, %v866
      %v1041 = vpack.c.b16 %v871, %v869
      %v1042 = vpack.c.b16 %v872, %v870
      %v1043 = vpack.c.b16 %v875, %v873
      %v1044 = vpack.c.b16 %v876, %v874
      %v1045 = vpack.c.b16 %v879, %v877
      %v1046 = vpack.c.b16 %v880, %v878
      %v1047 = vpack.c.b16 %v883, %v881
      %v1048 = vpack.c.b16 %v884, %v882
      %v1049 = vpack.c.b16 %v887, %v885
      %v1050 = vpack.c.b16 %v888, %v886
      %v1051 = vpack.c.b16 %v891, %v889
      %v1052 = vpack.c.b16 %v892, %v890
      %v1053 = vpack.c.b16 %v895, %v893
      %v1054 = vpack.c.b16 %v896, %v894
      %v1055 = vpack.c.b16 %v899, %v897
      %v1056 = vpack.c.b16 %v900, %v898
      %v1057 = vpack.c.b16 %v903, %v901
      %v1058 = vpack.c.b16 %v904, %v902
      %v1059 = vpack.c.b16 %v907, %v905
      %v1060 = vpack.c.b16 %v908, %v906
      %v1061 = vpack.c.b16 %v911, %v909
      %v1062 = vpack.c.b16 %v912, %v910
      %v1063 = vpack.c.b16 %v915, %v913
      %v1064 = vpack.c.b16 %v916, %v914
      %v1065 = vpack.c.b16 %v919, %v917
      %v1066 = vpack.c.b16 %v920, %v918
      %v1067 = vpack.c.b16 %v923, %v921
      %v1068 = vpack.c.b16 %v924, %v922
      %v1069 = vpack.c.b16 %v927, %v925
      %v1070 = vpack.c.b16 %v928, %v926
      %v1071 = vpack.c.b16 %v931, %v929
      %v1072 = vpack.c.b16 %v932, %v930
      %v1073 = vpack.c.b16 %v935, %v933
      %v1074 = vpack.c.b16 %v936, %v934
      %v1075 = vpack.c.b16 %v939, %v937
      %v1076 = vpack.c.b16 %v940, %v938
      %v1077 = vpack.c.b16 %v943, %v941
      %v1078 = vpack.c.b16 %v944, %v942
      %v1079 = vpack.c.b16 %v947, %v945
      %v1080 = vpack.c.b16 %v948, %v946
      %v1081 = vpack.c.b16 %v951, %v949
      %v1082 = vpack.c.b16 %v952, %v950
      %v1083 = vpack.c.b16 %v955, %v953
      %v1084 = vpack.c.b16 %v956, %v954
      %v1085 = vpack.c.b16 %v959, %v957
      %v1086 = vpack.c.b16 %v960, %v958
      %v1087 = vpack.c.b16 %v963, %v961
      %v1088 = vpack.c.b16 %v964, %v962
      %v1089 = vpack.c.b16 %v967, %v965
      %v1090 = vpack.c.b16 %v968, %v966
      %v1091 = vpack.c.b16 %v971, %v969
      %v1092 = vpack.c.b16 %v972, %v970
      %v1093 = vpack.c.b16 %v975, %v973
      %v1094 = vpack.c.b16 %v976, %v974
      %v1095 = vpack.c.b16 %v979, %v977
      %v1096 = vpack.c.b16 %v980, %v978
      %v1097 = vpack.c.b16 %v983, %v981
      %v1098 = vpack.c.b16 %v984, %v982
      %v1099 = vpack.c.b16 %v987, %v985
      %v1100 = vpack.c.b16 %v988, %v986
      %v1101 = vpack.c.b16 %v991, %v989
      %v1102 = vpack.c.b16 %v992, %v990
      %v1103 = vpack.c.b16 %v995, %v993
      %v1104 = vpack.c.b16 %v996, %v994
      %v1105 = vpack.c.b16 %v999, %v997
      %v1106 = vpack.c.b16 %v1000, %v998
      %v1107 = vpack.c.b16 %v1003, %v1001
      %v1108 = vpack.c.b16 %v1004, %v1002
      %v1109 = vpack.c.b16 %v1007, %v1005
      %v1110 = vpack.c.b16 %v1008, %v1006
      %v1111 = vpack.c.b16 %v1011, %v1009
      %v1112 = vpack.c.b16 %v1012, %v1010
      %v1113 = vpack.c.b16 %v1015, %v1013
      %v1114 = vpack.c.b16 %v1016, %v1014
      %vm1213 = vcmask 130048
      %v1215 = vsel %vm1213, %v624, 0
      %1217 = vmatprep.subr.bf16.mxu0 %v1018
      %1218 = vmatpush1.bf16.msra.mxu0 %v1017
      %1219 = vmatprep.subr.bf16.mxu0 %v1020
      %1220 = vmatpush1.bf16.msra.mxu0 %v1019
      %1221 = vmatprep.subr.bf16.mxu0 %v1022
      %1222 = vmatpush1.bf16.msra.mxu0 %v1021
      %1223 = vmatprep.subr.bf16.mxu0 %v1024
      %1224 = vmatpush1.bf16.msra.mxu0 %v1023
      %1225 = vmatprep.subr.bf16.mxu0 %v1026
      %1226 = vmatpush1.bf16.msra.mxu0 %v1025
      %1227 = vmatprep.subr.bf16.mxu0 %v1028
      %1228 = vmatpush1.bf16.msra.mxu0 %v1027
      %1229 = vmatprep.subr.bf16.mxu0 %v1030
      %1230 = vmatpush1.bf16.msra.mxu0 %v1029
      %1231 = vmatprep.subr.bf16.mxu0 %v1032
      %1232 = vmatpush1.bf16.msra.mxu0 %v1031
      %1233 = vmatprep.subr.bf16.mxu0 %v1034
      %1234 = vmatpush1.bf16.msra.mxu0 %v1033
      %1235 = vmatprep.subr.bf16.mxu0 %v1036
      %1236 = vmatpush1.bf16.msra.mxu0 %v1035
      %1237 = vmatprep.subr.bf16.mxu0 %v1038
      %1238 = vmatpush1.bf16.msra.mxu0 %v1037
      %1239 = vmatprep.subr.bf16.mxu0 %v1040
      %1240 = vmatpush1.bf16.msra.mxu0 %v1039
      %1241 = vmatprep.subr.bf16.mxu0 %v1042
      %1242 = vmatpush1.bf16.msra.mxu0 %v1041
      %1243 = vmatprep.subr.bf16.mxu0 %v1044
      %1244 = vmatpush1.bf16.msra.mxu0 %v1043
      %1245 = vmatprep.subr.bf16.mxu0 %v1046
      %1246 = vmatpush1.bf16.msra.mxu0 %v1045
      %1247 = vmatprep.subr.bf16.mxu0 %v1048
      %1248 = vmatpush1.bf16.msra.mxu0 %v1047
      %1249 = vmatprep.mubr.bf16.mxu0 %v619
      %1250 = vmatmul.mubr.bf16.gmra.mrb[0].mxu0 %v618
      %v1251 = vpop.f32.mrb[0].mxu0
      %v1252 = vadd.f32 0.0, %v1251
      %v1253 = vpop.f32.mrb[0].mxu0
      %v1254 = vadd.f32 0.0, %v1253
      %v1255 = vpop.f32.mrb[0].mxu0
      %v1256 = vpop.f32.mrb[0].mxu0
      %1257 = vdwg.mxu0
      %1258 = vmatprep.subr.bf16.mxu0 %v1050
      %1259 = vmatpush1.bf16.msra.mxu0 %v1049
      %1260 = vmatprep.subr.bf16.mxu0 %v1052
      %1261 = vmatpush1.bf16.msra.mxu0 %v1051
      %1262 = vmatprep.subr.bf16.mxu0 %v1054
      %1263 = vmatpush1.bf16.msra.mxu0 %v1053
      %1264 = vmatprep.subr.bf16.mxu0 %v1056
      %1265 = vmatpush1.bf16.msra.mxu0 %v1055
      %1266 = vmatprep.subr.bf16.mxu0 %v1058
      %1267 = vmatpush1.bf16.msra.mxu0 %v1057
      %1268 = vmatprep.subr.bf16.mxu0 %v1060
      %1269 = vmatpush1.bf16.msra.mxu0 %v1059
      %1270 = vmatprep.subr.bf16.mxu0 %v1062
      %1271 = vmatpush1.bf16.msra.mxu0 %v1061
      %1272 = vmatprep.subr.bf16.mxu0 %v1064
      %1273 = vmatpush1.bf16.msra.mxu0 %v1063
      %1274 = vmatprep.subr.bf16.mxu0 %v1066
      %1275 = vmatpush1.bf16.msra.mxu0 %v1065
      %1276 = vmatprep.subr.bf16.mxu0 %v1068
      %1277 = vmatpush1.bf16.msra.mxu0 %v1067
      %1278 = vmatprep.subr.bf16.mxu0 %v1070
      %1279 = vmatpush1.bf16.msra.mxu0 %v1069
      %1280 = vmatprep.subr.bf16.mxu0 %v1072
      %1281 = vmatpush1.bf16.msra.mxu0 %v1071
      %1282 = vmatprep.subr.bf16.mxu0 %v1074
      %1283 = vmatpush1.bf16.msra.mxu0 %v1073
      %1284 = vmatprep.subr.bf16.mxu0 %v1076
      %1285 = vmatpush1.bf16.msra.mxu0 %v1075
      %1286 = vmatprep.subr.bf16.mxu0 %v1078
      %1287 = vmatpush1.bf16.msra.mxu0 %v1077
      %1288 = vmatprep.subr.bf16.mxu0 %v1080
      %1289 = vmatpush1.bf16.msra.mxu0 %v1079
      %1290 = vmatprep.mubr.bf16.mxu0 %v621
      %1291 = vmatmul.mubr.bf16.gmra.mrb[0].mxu0 %v620
      %v1292 = vpop.f32.mrb[0].mxu0
      %v1293 = vadd.f32 %v1252, %v1292
      %v1294 = vpop.f32.mrb[0].mxu0
      %v1295 = vadd.f32 %v1254, %v1294
      %v1296 = vpop.f32.mrb[0].mxu0
      %v1297 = vpop.f32.mrb[0].mxu0
      %1298 = vdwg.mxu0
      %1299 = vmatprep.subr.bf16.mxu0 %v1082
      %1300 = vmatpush1.bf16.msra.mxu0 %v1081
      %1301 = vmatprep.subr.bf16.mxu0 %v1084
      %1302 = vmatpush1.bf16.msra.mxu0 %v1083
      %1303 = vmatprep.subr.bf16.mxu0 %v1086
      %1304 = vmatpush1.bf16.msra.mxu0 %v1085
      %1305 = vmatprep.subr.bf16.mxu0 %v1088
      %1306 = vmatpush1.bf16.msra.mxu0 %v1087
      %1307 = vmatprep.subr.bf16.mxu0 %v1090
      %1308 = vmatpush1.bf16.msra.mxu0 %v1089
      %1309 = vmatprep.subr.bf16.mxu0 %v1092
      %1310 = vmatpush1.bf16.msra.mxu0 %v1091
      %1311 = vmatprep.subr.bf16.mxu0 %v1094
      %1312 = vmatpush1.bf16.msra.mxu0 %v1093
      %1313 = vmatprep.subr.bf16.mxu0 %v1096
      %1314 = vmatpush1.bf16.msra.mxu0 %v1095
      %1315 = vmatprep.subr.bf16.mxu0 %v1098
      %1316 = vmatpush1.bf16.msra.mxu0 %v1097
      %1317 = vmatprep.subr.bf16.mxu0 %v1100
      %1318 = vmatpush1.bf16.msra.mxu0 %v1099
      %1319 = vmatprep.subr.bf16.mxu0 %v1102
      %1320 = vmatpush1.bf16.msra.mxu0 %v1101
      %1321 = vmatprep.subr.bf16.mxu0 %v1104
      %1322 = vmatpush1.bf16.msra.mxu0 %v1103
      %1323 = vmatprep.subr.bf16.mxu0 %v1106
      %1324 = vmatpush1.bf16.msra.mxu0 %v1105
      %1325 = vmatprep.subr.bf16.mxu0 %v1108
      %1326 = vmatpush1.bf16.msra.mxu0 %v1107
      %1327 = vmatprep.subr.bf16.mxu0 %v1110
      %1328 = vmatpush1.bf16.msra.mxu0 %v1109
      %1329 = vmatprep.subr.bf16.mxu0 %v1112
      %1330 = vmatpush1.bf16.msra.mxu0 %v1111
      %1331 = vmatprep.mubr.bf16.mxu0 %v623
      %1332 = vmatmul.mubr.bf16.gmra.mrb[0].mxu0 %v622
      %v1333 = vpop.f32.mrb[0].mxu0
      %v1334 = vadd.f32 %v1293, %v1333
      %v1335 = vpop.f32.mrb[0].mxu0
      %v1336 = vadd.f32 %v1295, %v1335
      %v1337 = vpop.f32.mrb[0].mxu0
      %v1338 = vpop.f32.mrb[0].mxu0
      %1339 = vdwg.mxu0
      %1340 = vmatprep.subr.bf16.mxu0 %v1114
      %1341 = vmatpush1.bf16.msra.mxu0 %v1113
      %1342 = vmatprep.subr.bf16.mxu0 0
      %1343 = vmatpush1.bf16.msra.mxu0 0
      %1344 = vmatprep.subr.bf16.mxu0 0
      %1345 = vmatpush1.bf16.msra.mxu0 0
      %1346 = vmatprep.subr.bf16.mxu0 0
      %1347 = vmatpush1.bf16.msra.mxu0 0
      %1348 = vmatprep.subr.bf16.mxu0 0
      %1349 = vmatpush1.bf16.msra.mxu0 0
      %1350 = vmatprep.subr.bf16.mxu0 0
      %1351 = vmatpush1.bf16.msra.mxu0 0
      %1352 = vmatprep.subr.bf16.mxu0 0
      %1353 = vmatpush1.bf16.msra.mxu0 0
      %1354 = vmatprep.subr.bf16.mxu0 0
      %1355 = vmatpush1.bf16.msra.mxu0 0
      %1356 = vmatprep.subr.bf16.mxu0 0
      %1357 = vmatpush1.bf16.msra.mxu0 0
      %1358 = vmatprep.subr.bf16.mxu0 0
      %1359 = vmatpush1.bf16.msra.mxu0 0
      %1360 = vmatprep.subr.bf16.mxu0 0
      %1361 = vmatpush1.bf16.msra.mxu0 0
      %1362 = vmatprep.subr.bf16.mxu0 0
      %1363 = vmatpush1.bf16.msra.mxu0 0
      %1364 = vmatprep.subr.bf16.mxu0 0
      %1365 = vmatpush1.bf16.msra.mxu0 0
      %1366 = vmatprep.subr.bf16.mxu0 0
      %1367 = vmatpush1.bf16.msra.mxu0 0
      %1368 = vmatprep.subr.bf16.mxu0 0
      %1369 = vmatpush1.bf16.msra.mxu0 0
      %1370 = vmatprep.subr.bf16.mxu0 0
      %1371 = vmatpush1.bf16.msra.mxu0 0
      %1372 = vmatprep.mubr.bf16.mxu0 0
      %1373 = vmatmul.mubr.bf16.gmra.mrb[0].mxu0 %v1215
      %v1374 = vpop.f32.mrb[0].mxu0
      %v1375 = vadd.f32 %v1334, %v1374
      %v1376 = vpop.f32.mrb[0].mxu0
      %v1377 = vadd.f32 %v1336, %v1376
      %v1378 = vpop.f32.mrb[0].mxu0
      %v1379 = vpop.f32.mrb[0].mxu0
      %1380 = vdwg.mxu0
      %v1381 = vpack.c.bf16 %v1375, %v1375
      %v1382 = vpack.c.bf16 %v1377, %v1377
      %v1385 = vunpack.c.l.b16 %v1381
      %v1386 = vunpack.c.l.b16 %v1382
      %v1387 = vpack.c.b16 %v1386, %v1385
      %vm1389 = vcmask 1042432
      %vm1390 = vcmask 555012
      %vm1391 = vmor %vm1390, %vm1389
      %1392 = vst.msk [vmem:[%s197] sm:$0x77] %vm1391, %v1387
      %p1393 = scmp.lt.s32.totalorder %s15, 1
      %s1394 = scalar_select %p1393, %s15, 1
      %s1395 = smul.addr %s1394, 2
      %s1396 = smul.addr %s1395, 4
      %s1397 = scalar_lea.vmem %s4, %s1396
      // Predicated region
      $region37: #{convnet_forward.2} parent=35 // pred_check
        %p1398 = pneg %p122
      $region38: #{convnet_forward.2} parent=35 // pred_check_branch
        %1400 = sbr.rel (%p1398) target = $region40
      $region39: #{convnet_forward.2} parent=35 // pred_region
        _
      $region40: #{convnet_forward.2} parent=35 // pred_fallthru
        _
    $region36: #{convnet_forward.2} parent=5 // pred_fallthru
      _
    %p1401 = scmp.le.s32.totalorder 2, %s10
    // Predicated region
    $region41: #{convnet_forward.2} parent=5 // pred_check
      %p1402 = pneg %p1401
    $region42: #{convnet_forward.2} parent=5 // pred_check_branch
      %1404 = sbr.rel (%p1402) target = $region44
    $region43: #{convnet_forward.2} parent=5 // pred_region
      %s1405 = ssub.s32 %s10, 2
      // Predicated region
      $region45: #{convnet_forward.2} parent=43 // pred_check
        %p1406 = pneg %p128
      $region46: #{convnet_forward.2} parent=43 // pred_check_branch
        %1408 = sbr.rel (%p1406) target = $region48
      $region47: #{convnet_forward.2} parent=43 // pred_region
        %p1409 = scmp.lt.s32.totalorder %s16, 1
        %s1410 = scalar_select %p1409, %s16, 1
        %s1411 = smul.addr %s1410, 2
        %s1412 = smul.addr %s1411, 4
        %s1413 = scalar_lea.vmem %s4, %s1412
      $region48: #{convnet_forward.2} parent=43 // pred_fallthru
        _
    $region44: #{convnet_forward.2} parent=5 // pred_fallthru
      _
  $region6: #{convnet_forward.2} parent=0 // loop_footer
    %s14 = sadd.s32 1, %s10
  $region7: #{convnet_forward.2} parent=0 // loop_footer_branch
    %9 = sbr.rel target = $region3
  $region8: #{convnet_forward.2} parent=0 // loop_exit
    _

// kernel: mul.8
$region0: #{mul.8}
  %s0 = inlined_call_operand.vmem [shape: f32[6,2,6], index: 0, kind: input, shape index: {}]
  %s1 = inlined_call_operand.vmem [shape: f32[12,6], index: 1, kind: output, shape index: {}]
  $region1: #{mul.8} parent=0
    #allocation0 [shape = 'u8[24576]{0}', space=vmem, size = 0x6000, scoped, tag = 'scoped mem for input reshape']
    %s3 = sshllo.u32 0, 2
    %s4 = smul.addr 2, 5
    %s5 = scalar_lea.vmem %s0, %s4
    %v6 = vld [vmem:[%s5] sm:%s3]
    %s7 = scalar_lea.vmem [#allocation0], 40
    %8 = vst [vmem:[%s7] sm:%s3] %v6
    %s9 = smul.addr 2, 4
    %s10 = scalar_lea.vmem %s0, %s9
    %v11 = vld [vmem:[%s10] sm:%s3]
    %s12 = scalar_lea.vmem [#allocation0], 32
    %13 = vst [vmem:[%s12] sm:%s3] %v11
    %s14 = smul.addr 2, 3
    %s15 = scalar_lea.vmem %s0, %s14
    %v16 = vld [vmem:[%s15] sm:%s3]
    %s17 = scalar_lea.vmem [#allocation0], 24
    %18 = vst [vmem:[%s17] sm:%s3] %v16
    %s19 = smul.addr 2, 2
    %s20 = scalar_lea.vmem %s0, %s19
    %v21 = vld [vmem:[%s20] sm:%s3]
    %s22 = scalar_lea.vmem [#allocation0], 16
    %23 = vst [vmem:[%s22] sm:%s3] %v21
    %s24 = scalar_lea.vmem %s0, 2
    %v25 = vld [vmem:[%s24] sm:%s3]
    %s26 = scalar_lea.vmem [#allocation0], 8
    %27 = vst [vmem:[%s26] sm:%s3] %v25
    %v28 = vld [vmem:[%s0] sm:%s3]
    %29 = vst [vmem:[#allocation0] sm:%s3] %v28
    %v30 = vld [vmem:[#allocation0] sm:$0x3]
    %vm31 = vcmask 48128
    %32 = vst.msk [vmem:[%s1] sm:$0x3] %vm31, %v30
    %s33 = scalar_lea.vmem [#allocation0], 8
    %v34 = vld [vmem:[%s33] sm:$0x3]
    %vm35 = vcmask 48128
    %s36 = scalar_lea.vmem %s1, 2
    %37 = vst.msk [vmem:[%s36] sm:$0x3] %vm35, %v34
    %s38 = scalar_lea.vmem [#allocation0], 16
    %v39 = vld [vmem:[%s38] sm:$0x3]
    %vm40 = vcmask 48128
    %s41 = scalar_lea.vmem %s1, 4
    %42 = vst.msk [vmem:[%s41] sm:$0x3] %vm40, %v39
    %s43 = scalar_lea.vmem [#allocation0], 24
    %v44 = vld [vmem:[%s43] sm:$0x3]
    %vm45 = vcmask 48128
    %s46 = scalar_lea.vmem %s1, 6
    %47 = vst.msk [vmem:[%s46] sm:$0x3] %vm45, %v44
    %s48 = scalar_lea.vmem [#allocation0], 32
    %v49 = vld [vmem:[%s48] sm:$0x3]
    %vm50 = vcmask 48128
    %s51 = scalar_lea.vmem %s1, 8
    %52 = vst.msk [vmem:[%s51] sm:$0x3] %vm50, %v49
    %s53 = scalar_lea.vmem [#allocation0], 40
    %v54 = vld [vmem:[%s53] sm:$0x3]
    %vm55 = vcmask 48128
    %s56 = scalar_lea.vmem %s1, 10
    %57 = vst.msk [vmem:[%s56] sm:$0x3] %vm55, %v54

// kernel: convnet_forward.3
$region0: #{convnet_forward.3}
  #allocation0 [shape = 'u32[]', space=smem, size = 0x4, offset = 0x4, fixed_abs, tag = 'smem constant byte address 0x4 - core index']
  #allocation1 [shape = 'u32[144,128]{1,0:T(1,128)}', space=vmem, size = 0x12000, scoped, tag = 'internal scratch']
  %s0 = inlined_call_operand.vmem [shape: bf16[12,54], index: 0, kind: input, shape index: {}]
  %s1 = inlined_call_operand.vmem [shape: bf16[2,54,144], index: 1, kind: input, shape index: {}]
  %s2 = inlined_call_operand.vmem [shape: f32[12,1], index: 2, kind: input, shape index: {}]
  %s3 = inlined_call_operand.vmem [shape: bf16[144,36], index: 3, kind: input, shape index: {}]
  %s4 = inlined_call_operand.vmem [shape: bf16[12,36,50], index: 4, kind: input, shape index: {}]
  %s5 = inlined_call_operand.vmem [shape: f32[1,50], index: 5, kind: input, shape index: {}]
  %s6 = inlined_call_operand.vmem [shape: bf16[50,10], index: 6, kind: input, shape index: {}]
  %s7 = inlined_call_operand.vmem [shape: f32[1,10], index: 7, kind: input, shape index: {}]
  %s8 = inlined_call_operand.hbm [shape: f32[2,1,10], index: 8, kind: output, shape index: {}]
  %s9 = sld [smem:[#allocation0]]
  $region65: #{convnet_forward.3} parent=0
    _
  %s11 = ssub.s32 1, %s9
  %s12 = scalar_select 0, %s11, %s9
  $region1: #{convnet_forward.3} parent=0
    #allocation2 [shape = 'u8[1024]{0}', space=vmem, size = 0x400, scoped, tag = 'output window, operand 0']
    #allocation3 [shape = 's32[2]{0}', space=sflag, size = 0x8, scoped, tag = 'scoped memory for convnet_forward.3']
    %13 = vsyncpa [#allocation3], 0
    %s14 = scalar_lea.sflag [#allocation3], 1
    %15 = vsyncpa %s14, 0
    loop: start=0, step=1, limit=4
    $region2: #{convnet_forward.3} parent=1 // loop_pre_header
      _
    $region3: #{convnet_forward.3} parent=1 // loop_header
      %s17 = sphi 0, %s21
      %p18 = scmp.ge.s32.totalorder %s17, 4
      %s25 = sphi 0, %s25
      %s27 = sphi 0, %s25
      %s28 = sphi 0, %s27
      %s42 = sphi 0, %s28
      %s48 = sphi 0, %s50
      %s51 = sphi 0, %s48
      %s52 = sphi 0, %s51
      %s68 = sphi 0, %s52
      %s72 = sphi 0, %s72
      %s74 = sphi 0, %s72
      %s75 = sphi 0, %s74
      %s89 = sphi 0, %s75
      %s93 = sphi 0, %s93
      %s95 = sphi 0, %s93
      %s96 = sphi 0, %s95
      %s110 = sphi 0, %s96
      %s114 = sphi 0, %s114
      %s116 = sphi 0, %s114
      %s117 = sphi 0, %s116
      %s131 = sphi 0, %s117
      %s135 = sphi 0, %s135
      %s137 = sphi 0, %s135
      %s138 = sphi 0, %s137
      %s152 = sphi 0, %s138
      %s156 = sphi 0, %s156
      %s158 = sphi 0, %s156
      %s159 = sphi 0, %s158
      %s173 = sphi 0, %s159
      %s177 = sphi 0, %s177
      %s179 = sphi 0, %s177
      %s180 = sphi 0, %s179
      %s194 = sphi 0, %s180
      %s200 = sphi 0, %s202
      %s203 = sphi 0, %s200
      %s204 = sphi 0, %s203
      %s220 = sphi 0, %s204
    $region4: #{convnet_forward.3} parent=1 // loop_header_branch
      %20 = sbr.rel (%p18) target = $region8
    $region5: #{convnet_forward.3} parent=1 // loop_body
      %s22 = ssub.s32 %s17, 1
      %s23 = ssub.s32 %s17, 2
      %s24 = sadd.s32 %s17, 1
      %s26 = sadd.s32 %s25, 1
      %p29 = scmp.eq.s32.totalorder %s17, 1
      %p30 = scmp.ne.s32.totalorder %s25, %s27
      %p31 = scmp.eq.s32.totalorder %s17, 0
      %p32 = por %p30, %p31
      %p33 = scmp.ne.s32.totalorder %s25, %s27
      %p34 = scmp.eq.s32.totalorder %s22, 1
      %p35 = por %p33, %p34
      %p36 = scmp.ne.s32.totalorder %s27, %s28
      %p37 = scmp.eq.s32.totalorder %s22, 0
      %p38 = por %p36, %p37
      %p39 = scmp.ne.s32.totalorder %s27, %s28
      %p40 = scmp.eq.s32.totalorder %s23, 1
      %p41 = por %p39, %p40
      %p43 = scmp.ne.s32.totalorder %s28, %s42
      %p44 = scmp.eq.s32.totalorder %s23, 0
      %p45 = por %p43, %p44
      %s46 = ssub.s32 %s17, %s24
      %p47 = scmp.eq.s32.totalorder %s46, 0
      %s49 = sadd.s32 %s48, 1
      %s50 = scalar_select %p47, %s48, %s49
      %p53 = pneg %p47
      %p54 = scmp.eq.s32.totalorder %s17, 1
      %p55 = por %p53, %p54
      %p56 = scmp.ne.s32.totalorder %s48, %s51
      %p57 = scmp.eq.s32.totalorder %s17, 0
      %p58 = por %p56, %p57
      %p59 = scmp.ne.s32.totalorder %s48, %s51
      %p60 = scmp.eq.s32.totalorder %s22, 1
      %p61 = por %p59, %p60
      %p62 = scmp.ne.s32.totalorder %s51, %s52
      %p63 = scmp.eq.s32.totalorder %s22, 0
      %p64 = por %p62, %p63
      %p65 = scmp.ne.s32.totalorder %s51, %s52
      %p66 = scmp.eq.s32.totalorder %s23, 1
      %p67 = por %p65, %p66
      %p69 = scmp.ne.s32.totalorder %s52, %s68
      %p70 = scmp.eq.s32.totalorder %s23, 0
      %p71 = por %p69, %p70
      %s73 = sadd.s32 %s72, 1
      %p76 = scmp.eq.s32.totalorder %s17, 1
      %p77 = scmp.ne.s32.totalorder %s72, %s74
      %p78 = scmp.eq.s32.totalorder %s17, 0
      %p79 = por %p77, %p78
      %p80 = scmp.ne.s32.totalorder %s72, %s74
      %p81 = scmp.eq.s32.totalorder %s22, 1
      %p82 = por %p80, %p81
      %p83 = scmp.ne.s32.totalorder %s74, %s75
      %p84 = scmp.eq.s32.totalorder %s22, 0
      %p85 = por %p83, %p84
      %p86 = scmp.ne.s32.totalorder %s74, %s75
      %p87 = scmp.eq.s32.totalorder %s23, 1
      %p88 = por %p86, %p87
      %p90 = scmp.ne.s32.totalorder %s75, %s89
      %p91 = scmp.eq.s32.totalorder %s23, 0
      %p92 = por %p90, %p91
      %s94 = sadd.s32 %s93, 1
      %p97 = scmp.eq.s32.totalorder %s17, 1
      %p98 = scmp.ne.s32.totalorder %s93, %s95
      %p99 = scmp.eq.s32.totalorder %s17, 0
      %p100 = por %p98, %p99
      %p101 = scmp.ne.s32.totalorder %s93, %s95
      %p102 = scmp.eq.s32.totalorder %s22, 1
      %p103 = por %p101, %p102
      %p104 = scmp.ne.s32.totalorder %s95, %s96
      %p105 = scmp.eq.s32.totalorder %s22, 0
      %p106 = por %p104, %p105
      %p107 = scmp.ne.s32.totalorder %s95, %s96
      %p108 = scmp.eq.s32.totalorder %s23, 1
      %p109 = por %p107, %p108
      %p111 = scmp.ne.s32.totalorder %s96, %s110
      %p112 = scmp.eq.s32.totalorder %s23, 0
      %p113 = por %p111, %p112
      %s115 = sadd.s32 %s114, 1
      %p118 = scmp.eq.s32.totalorder %s17, 1
      %p119 = scmp.ne.s32.totalorder %s114, %s116
      %p120 = scmp.eq.s32.totalorder %s17, 0
      %p121 = por %p119, %p120
      %p122 = scmp.ne.s32.totalorder %s114, %s116
      %p123 = scmp.eq.s32.totalorder %s22, 1
      %p124 = por %p122, %p123
      %p125 = scmp.ne.s32.totalorder %s116, %s117
      %p126 = scmp.eq.s32.totalorder %s22, 0
      %p127 = por %p125, %p126
      %p128 = scmp.ne.s32.totalorder %s116, %s117
      %p129 = scmp.eq.s32.totalorder %s23, 1
      %p130 = por %p128, %p129
      %p132 = scmp.ne.s32.totalorder %s117, %s131
      %p133 = scmp.eq.s32.totalorder %s23, 0
      %p134 = por %p132, %p133
      %s136 = sadd.s32 %s135, 1
      %p139 = scmp.eq.s32.totalorder %s17, 1
      %p140 = scmp.ne.s32.totalorder %s135, %s137
      %p141 = scmp.eq.s32.totalorder %s17, 0
      %p142 = por %p140, %p141
      %p143 = scmp.ne.s32.totalorder %s135, %s137
      %p144 = scmp.eq.s32.totalorder %s22, 1
      %p145 = por %p143, %p144
      %p146 = scmp.ne.s32.totalorder %s137, %s138
      %p147 = scmp.eq.s32.totalorder %s22, 0
      %p148 = por %p146, %p147
      %p149 = scmp.ne.s32.totalorder %s137, %s138
      %p150 = scmp.eq.s32.totalorder %s23, 1
      %p151 = por %p149, %p150
      %p153 = scmp.ne.s32.totalorder %s138, %s152
      %p154 = scmp.eq.s32.totalorder %s23, 0
      %p155 = por %p153, %p154
      %s157 = sadd.s32 %s156, 1
      %p160 = scmp.eq.s32.totalorder %s17, 1
      %p161 = scmp.ne.s32.totalorder %s156, %s158
      %p162 = scmp.eq.s32.totalorder %s17, 0
      %p163 = por %p161, %p162
      %p164 = scmp.ne.s32.totalorder %s156, %s158
      %p165 = scmp.eq.s32.totalorder %s22, 1
      %p166 = por %p164, %p165
      %p167 = scmp.ne.s32.totalorder %s158, %s159
      %p168 = scmp.eq.s32.totalorder %s22, 0
      %p169 = por %p167, %p168
      %p170 = scmp.ne.s32.totalorder %s158, %s159
      %p171 = scmp.eq.s32.totalorder %s23, 1
      %p172 = por %p170, %p171
      %p174 = scmp.ne.s32.totalorder %s159, %s173
      %p175 = scmp.eq.s32.totalorder %s23, 0
      %p176 = por %p174, %p175
      %s178 = sadd.s32 %s177, 1
      %p181 = scmp.eq.s32.totalorder %s17, 1
      %p182 = scmp.ne.s32.totalorder %s177, %s179
      %p183 = scmp.eq.s32.totalorder %s17, 0
      %p184 = por %p182, %p183
      %p185 = scmp.ne.s32.totalorder %s177, %s179
      %p186 = scmp.eq.s32.totalorder %s22, 1
      %p187 = por %p185, %p186
      %p188 = scmp.ne.s32.totalorder %s179, %s180
      %p189 = scmp.eq.s32.totalorder %s22, 0
      %p190 = por %p188, %p189
      %p191 = scmp.ne.s32.totalorder %s179, %s180
      %p192 = scmp.eq.s32.totalorder %s23, 1
      %p193 = por %p191, %p192
      %p195 = scmp.ne.s32.totalorder %s180, %s194
      %p196 = scmp.eq.s32.totalorder %s23, 0
      %p197 = por %p195, %p196
      %s198 = ssub.s32 %s17, %s24
      %p199 = scmp.eq.s32.totalorder %s198, 0
      %s201 = sadd.s32 %s200, 1
      %s202 = scalar_select %p199, %s200, %s201
      %p205 = pneg %p199
      %p206 = scmp.eq.s32.totalorder %s17, 1
      %p207 = por %p205, %p206
      %p208 = scmp.ne.s32.totalorder %s200, %s203
      %p209 = scmp.eq.s32.totalorder %s17, 0
      %p210 = por %p208, %p209
      %p211 = scmp.ne.s32.totalorder %s200, %s203
      %p212 = scmp.eq.s32.totalorder %s22, 1
      %p213 = por %p211, %p212
      %p214 = scmp.ne.s32.totalorder %s203, %s204
      %p215 = scmp.eq.s32.totalorder %s22, 0
      %p216 = por %p214, %p215
      %p217 = scmp.ne.s32.totalorder %s203, %s204
      %p218 = scmp.eq.s32.totalorder %s23, 1
      %p219 = por %p217, %p218
      %p221 = scmp.ne.s32.totalorder %s204, %s220
      %p222 = scmp.eq.s32.totalorder %s23, 0
      %p223 = por %p221, %p222
      %p224 = scmp.le.s32.totalorder 1, %s17
      %p225 = scmp.lt.s32.totalorder %s17, 3
      %p226 = pnand %p224, %p225
      %p227 = pneg %p226
      // Predicated region
      $region9: #{convnet_forward.3} parent=5 // pred_check
        _
      $region10: #{convnet_forward.3} parent=5 // pred_check_branch
        %229 = sbr.rel (%p226) target = $region12
      $region11: #{convnet_forward.3} parent=5 // pred_region
        %s230 = ssub.s32 %s17, 1
        // Predicated region
        $region13: #{convnet_forward.3} parent=11 // pred_check
          %p231 = pneg %p38
        $region14: #{convnet_forward.3} parent=11 // pred_check_branch
          %233 = sbr.rel (%p231) target = $region16
        $region15: #{convnet_forward.3} parent=11 // pred_region
          _
        $region16: #{convnet_forward.3} parent=11 // pred_fallthru
          _
        // Predicated region
        $region17: #{convnet_forward.3} parent=11 // pred_check
          %p234 = pneg %p85
        $region18: #{convnet_forward.3} parent=11 // pred_check_branch
          %236 = sbr.rel (%p234) target = $region20
        $region19: #{convnet_forward.3} parent=11 // pred_region
          _
        $region20: #{convnet_forward.3} parent=11 // pred_fallthru
          _
        // Predicated region
        $region21: #{convnet_forward.3} parent=11 // pred_check
          %p237 = pneg %p106
        $region22: #{convnet_forward.3} parent=11 // pred_check_branch
          %239 = sbr.rel (%p237) target = $region24
        $region23: #{convnet_forward.3} parent=11 // pred_region
          _
        $region24: #{convnet_forward.3} parent=11 // pred_fallthru
          _
        // Predicated region
        $region25: #{convnet_forward.3} parent=11 // pred_check
          %p240 = pneg %p127
        $region26: #{convnet_forward.3} parent=11 // pred_check_branch
          %242 = sbr.rel (%p240) target = $region28
        $region27: #{convnet_forward.3} parent=11 // pred_region
          _
        $region28: #{convnet_forward.3} parent=11 // pred_fallthru
          _
        // Predicated region
        $region29: #{convnet_forward.3} parent=11 // pred_check
          %p243 = pneg %p148
        $region30: #{convnet_forward.3} parent=11 // pred_check_branch
          %245 = sbr.rel (%p243) target = $region32
        $region31: #{convnet_forward.3} parent=11 // pred_region
          _
        $region32: #{convnet_forward.3} parent=11 // pred_fallthru
          _
        // Predicated region
        $region33: #{convnet_forward.3} parent=11 // pred_check
          %p246 = pneg %p169
        $region34: #{convnet_forward.3} parent=11 // pred_check_branch
          %248 = sbr.rel (%p246) target = $region36
        $region35: #{convnet_forward.3} parent=11 // pred_region
          _
        $region36: #{convnet_forward.3} parent=11 // pred_fallthru
          _
        // Predicated region
        $region37: #{convnet_forward.3} parent=11 // pred_check
          %p249 = pneg %p190
        $region38: #{convnet_forward.3} parent=11 // pred_check_branch
          %251 = sbr.rel (%p249) target = $region40
        $region39: #{convnet_forward.3} parent=11 // pred_region
          _
        $region40: #{convnet_forward.3} parent=11 // pred_fallthru
          _
      $region12: #{convnet_forward.3} parent=5 // pred_fallthru
        _
      %p252 = scmp.lt.s32.totalorder %s17, 2
      // Predicated region
      $region41: #{convnet_forward.3} parent=5 // pred_check
        %p253 = pneg %p252
      $region42: #{convnet_forward.3} parent=5 // pred_check_branch
        %255 = sbr.rel (%p253) target = $region44
      $region43: #{convnet_forward.3} parent=5 // pred_region
        // Predicated region
        $region45: #{convnet_forward.3} parent=43 // pred_check
          %p256 = pneg %p58
        $region46: #{convnet_forward.3} parent=43 // pred_check_branch
          %258 = sbr.rel (%p256) target = $region48
        $region47: #{convnet_forward.3} parent=43 // pred_region
          %p259 = scmp.lt.s32.totalorder %s17, 1
          %s260 = scalar_select %p259, %s17, 1
          %s261 = smul.addr %s260, 14
          %s262 = smul.addr %s261, 4
          %s263 = scalar_lea.vmem %s1, %s262
        $region48: #{convnet_forward.3} parent=43 // pred_fallthru
          _
      $region44: #{convnet_forward.3} parent=5 // pred_fallthru
        _
      %p264 = scmp.le.s32.totalorder 1, %s17
      %p265 = scmp.lt.s32.totalorder %s17, 3
      %p266 = pnand %p264, %p265
      %p267 = pneg %p266
      // Predicated region
      $region49: #{convnet_forward.3} parent=5 // pred_check
        _
      $region50: #{convnet_forward.3} parent=5 // pred_check_branch
        %269 = sbr.rel (%p266) target = $region52
      $region51: #{convnet_forward.3} parent=5 // pred_region
        %s270 = ssub.s32 %s17, 1
        %p271 = pneg %p38
        %p272 = pneg %p35
        %p273 = scmp.lt.s32.totalorder %s22, 1
        %s274 = scalar_select %p273, %s22, 1
        %s275 = smul.addr %s274, 14
        %s276 = smul.addr %s275, 4
        %s277 = scalar_lea.vmem %s1, %s276
        %p278 = pneg %p64
        %p279 = pneg %p61
        %p280 = pneg %p85
        %p281 = pneg %p82
        %p282 = pneg %p106
        %p283 = pneg %p103
        %p284 = pneg %p127
        %p285 = pneg %p124
        %p286 = pneg %p148
        %p287 = pneg %p145
        %p288 = pneg %p169
        %p289 = pneg %p166
        %p290 = pneg %p190
        %p291 = pneg %p187
        %p292 = pneg %p216
        %p293 = pneg %p213
        %s294 = sand.u32 %s203, 1
        %s295 = scalar_lea.sflag [#allocation3], %s294
        %s296 = sand.u32 %s203, 1
        %s297 = scalar_lea.vmem [#allocation2], %s296
        %p298 = scmp.lt.s32.totalorder %s22, 1
        %s299 = scalar_select %p298, %s22, 1
        %s300 = smul.addr %s299, 14
        %s301 = smul.addr %s300, 4
        %s302 = scalar_lea.vmem %s1, %s301
        %v304 = vld [vmem:[%s0] sm:$0xf]
        %v305 = vld [vmem:[%s0 + $0x4] sm:$0x3]
        %v306 = vld [vmem:[%s302] sm:$0xff]
        %v307 = vld [vmem:[%s302 + $0x8] sm:$0xff]
        %v308 = vld [vmem:[%s302 + $0x10] sm:$0xff]
        %v309 = vld [vmem:[%s302 + $0x18] sm:$0xff]
        %v310 = vld [vmem:[%s302 + $0x20] sm:$0xff]
        %v311 = vld [vmem:[%s302 + $0x28] sm:$0xff]
        %v312 = vld [vmem:[%s302 + $0x30] sm:$0x77]
        %v313 = vld [vmem:[%s2] sm:$0xff]
        %v314 = vld [vmem:[%s2 + $0x8] sm:$0xf]
        %316 = vset.pattern.permute.xlu0 0
        %317 = vperm.xlu0 %316, %v313
        %v318 = vpop.permute.xlu0 %317
        %321 = vset.pattern.permute.xlu0 0
        %322 = vperm.xlu0 %321, %v314
        %v323 = vpop.permute.xlu0 %322
        %v327 = vunpack.c.l.b16 %v304
        %v328 = vunpack.c.l.b16 %v305
        %v329 = vpack.c.b16 %v328, %v327
        %v337 = vunpack.c.l.b16 %v306
        %v338 = vunpack.c.h.b16 %v306
        %v339 = vunpack.c.l.b16 %v307
        %v340 = vunpack.c.h.b16 %v307
        %v341 = vunpack.c.l.b16 %v308
        %v342 = vunpack.c.h.b16 %v308
        %v343 = vunpack.c.l.b16 %v309
        %v344 = vunpack.c.h.b16 %v309
        %v345 = vunpack.c.l.b16 %v310
        %v346 = vunpack.c.h.b16 %v310
        %v347 = vunpack.c.l.b16 %v311
        %v348 = vunpack.c.h.b16 %v311
        %v349 = vunpack.c.l.b16 %v312
        %v350 = vunpack.c.h.b16 %v312
        %v351 = vpack.c.b16 %v339, %v337
        %v352 = vpack.c.b16 %v340, %v338
        %v353 = vpack.c.b16 %v343, %v341
        %v354 = vpack.c.b16 %v344, %v342
        %v355 = vpack.c.b16 %v347, %v345
        %v356 = vpack.c.b16 %v348, %v346
        %v357 = vpack.c.b16 %v349, %v349
        %v358 = vpack.c.b16 %v350, %v350
        %vm365 = vcmask 441344
        %v367 = vsel %vm365, %v329, 0
        %vm369 = vcmask 1042432
        %v371 = vsel %vm369, %v357, 0
        %v374 = vsel %vm369, %v358, 0
        %376 = vmatprep.subr.bf16.mxu0 %v352
        %377 = vmatpush1.bf16.msra.mxu0 %v351
        %378 = vmatprep.subr.bf16.mxu0 %v354
        %379 = vmatpush1.bf16.msra.mxu0 %v353
        %380 = vmatprep.subr.bf16.mxu0 %v356
        %381 = vmatpush1.bf16.msra.mxu0 %v355
        %382 = vmatprep.subr.bf16.mxu0 %v374
        %383 = vmatpush1.bf16.msra.mxu0 %v371
        %384 = vmatprep.subr.bf16.mxu0 0
        %385 = vmatpush1.bf16.msra.mxu0 0
        %386 = vmatprep.subr.bf16.mxu0 0
        %387 = vmatpush1.bf16.msra.mxu0 0
        %388 = vmatprep.subr.bf16.mxu0 0
        %389 = vmatpush1.bf16.msra.mxu0 0
        %390 = vmatprep.subr.bf16.mxu0 0
        %391 = vmatpush1.bf16.msra.mxu0 0
        %392 = vmatprep.subr.bf16.mxu0 0
        %393 = vmatpush1.bf16.msra.mxu0 0
        %394 = vmatprep.subr.bf16.mxu0 0
        %395 = vmatpush1.bf16.msra.mxu0 0
        %396 = vmatprep.subr.bf16.mxu0 0
        %397 = vmatpush1.bf16.msra.mxu0 0
        %398 = vmatprep.subr.bf16.mxu0 0
        %399 = vmatpush1.bf16.msra.mxu0 0
        %400 = vmatprep.subr.bf16.mxu0 0
        %401 = vmatpush1.bf16.msra.mxu0 0
        %402 = vmatprep.subr.bf16.mxu0 0
        %403 = vmatpush1.bf16.msra.mxu0 0
        %404 = vmatprep.subr.bf16.mxu0 0
        %405 = vmatpush1.bf16.msra.mxu0 0
        %406 = vmatprep.subr.bf16.mxu0 0
        %407 = vmatpush1.bf16.msra.mxu0 0
        %408 = vmatprep.mubr.bf16.mxu0 0
        %409 = vmatmul.mubr.bf16.gmra.mrb[0].mxu0 %v367
        %v410 = vpop.f32.mrb[0].mxu0
        %v411 = vadd.f32 %v318, %v410
        %v412 = vpop.f32.mrb[0].mxu0
        %v413 = vadd.f32 %v318, %v412
        %v414 = vpop.f32.mrb[0].mxu0
        %v415 = vadd.f32 %v323, %v414
        %v416 = vpop.f32.mrb[0].mxu0
        %v417 = vadd.f32 %v323, %v416
        %418 = vdwg.mxu0
        %v419 = vmax.f32 %v411, 0.0
        %v420 = vmax.f32 %v413, 0.0
        %v421 = vmax.f32 %v415, 0.0
        %v422 = vmax.f32 %v417, 0.0
        %v423 = vpack.c.bf16 %v421, %v419
        %v424 = vpack.c.bf16 %v422, %v420
        %v425 = vld [vmem:[%s3] sm:$0xf]
        %v426 = vld [vmem:[%s3 + $0x4] sm:$0xf]
        %v427 = vld [vmem:[%s3 + $0x8] sm:$0xf]
        %v428 = vld [vmem:[%s3 + $0xc] sm:$0xf]
        %v429 = vld [vmem:[%s3 + $0x10] sm:$0xf]
        %v430 = vld [vmem:[%s3 + $0x14] sm:$0xf]
        %v431 = vld [vmem:[%s3 + $0x18] sm:$0xf]
        %v432 = vld [vmem:[%s3 + $0x1c] sm:$0xf]
        %v433 = vld [vmem:[%s3 + $0x20] sm:$0xf]
        %v434 = vld [vmem:[%s3 + $0x24] sm:$0xf]
        %v435 = vld [vmem:[%s3 + $0x28] sm:$0xf]
        %v436 = vld [vmem:[%s3 + $0x2c] sm:$0xf]
        %v437 = vld [vmem:[%s3 + $0x30] sm:$0xf]
        %v438 = vld [vmem:[%s3 + $0x34] sm:$0xf]
        %v439 = vld [vmem:[%s3 + $0x38] sm:$0xf]
        %v440 = vld [vmem:[%s3 + $0x3c] sm:$0xf]
        %v441 = vld [vmem:[%s3 + $0x40] sm:$0xf]
        %v442 = vld [vmem:[%s3 + $0x44] sm:$0xf]
        %v461 = vunpack.c.l.b16 %v425
        %v462 = vunpack.c.l.b16 %v426
        %v463 = vunpack.c.l.b16 %v427
        %v464 = vunpack.c.l.b16 %v428
        %v465 = vunpack.c.l.b16 %v429
        %v466 = vunpack.c.l.b16 %v430
        %v467 = vunpack.c.l.b16 %v431
        %v468 = vunpack.c.l.b16 %v432
        %v469 = vunpack.c.l.b16 %v433
        %v470 = vunpack.c.l.b16 %v434
        %v471 = vunpack.c.l.b16 %v435
        %v472 = vunpack.c.l.b16 %v436
        %v473 = vunpack.c.l.b16 %v437
        %v474 = vunpack.c.l.b16 %v438
        %v475 = vunpack.c.l.b16 %v439
        %v476 = vunpack.c.l.b16 %v440
        %v477 = vunpack.c.l.b16 %v441
        %v478 = vunpack.c.l.b16 %v442
        %v479 = vpack.c.b16 %v462, %v461
        %v480 = vpack.c.b16 %v464, %v463
        %v481 = vpack.c.b16 %v466, %v465
        %v482 = vpack.c.b16 %v468, %v467
        %v483 = vpack.c.b16 %v470, %v469
        %v484 = vpack.c.b16 %v472, %v471
        %v485 = vpack.c.b16 %v474, %v473
        %v486 = vpack.c.b16 %v476, %v475
        %v487 = vpack.c.b16 %v478, %v477
        %vm497 = vcmask 130048
        %v499 = vsel %vm497, %v424, 0
        %501 = vmatprep.subr.bf16.mxu0 0
        %502 = vmatpush1.bf16.msra.mxu0 %v479
        %503 = vmatprep.subr.bf16.mxu0 0
        %504 = vmatpush1.bf16.msra.mxu0 %v480
        %505 = vmatprep.subr.bf16.mxu0 0
        %506 = vmatpush1.bf16.msra.mxu0 %v481
        %507 = vmatprep.subr.bf16.mxu0 0
        %508 = vmatpush1.bf16.msra.mxu0 %v482
        %509 = vmatprep.subr.bf16.mxu0 0
        %510 = vmatpush1.bf16.msra.mxu0 %v483
        %511 = vmatprep.subr.bf16.mxu0 0
        %512 = vmatpush1.bf16.msra.mxu0 %v484
        %513 = vmatprep.subr.bf16.mxu0 0
        %514 = vmatpush1.bf16.msra.mxu0 %v485
        %515 = vmatprep.subr.bf16.mxu0 0
        %516 = vmatpush1.bf16.msra.mxu0 %v486
        %517 = vmatprep.subr.bf16.mxu0 0
        %518 = vmatpush1.bf16.msra.mxu0 %v487
        %519 = vmatprep.subr.bf16.mxu0 0
        %520 = vmatpush1.bf16.msra.mxu0 0
        %521 = vmatprep.subr.bf16.mxu0 0
        %522 = vmatpush1.bf16.msra.mxu0 0
        %523 = vmatprep.subr.bf16.mxu0 0
        %524 = vmatpush1.bf16.msra.mxu0 0
        %525 = vmatprep.subr.bf16.mxu0 0
        %526 = vmatpush1.bf16.msra.mxu0 0
        %527 = vmatprep.subr.bf16.mxu0 0
        %528 = vmatpush1.bf16.msra.mxu0 0
        %529 = vmatprep.subr.bf16.mxu0 0
        %530 = vmatpush1.bf16.msra.mxu0 0
        %531 = vmatprep.subr.bf16.mxu0 0
        %532 = vmatpush1.bf16.msra.mxu0 0
        %533 = vmatprep.mubr.bf16.mxu0 %v499
        %534 = vmatmul.mubr.bf16.gmra.mrb[0].mxu0 %v423
        %v535 = vpop.f32.mrb[0].mxu0
        %v536 = vadd.f32 0.0, %v535
        %v537 = vpop.f32.mrb[0].mxu0
        %v538 = vpop.f32.mrb[0].mxu0
        %v539 = vadd.f32 0.0, %v538
        %v540 = vpop.f32.mrb[0].mxu0
        %541 = vdwg.mxu0
        %v542 = vpack.c.bf16 %v536, %v536
        %v543 = vld [vmem:[%s4] sm:$0xf]
        %v544 = vld [vmem:[%s4 + $0x4] sm:$0xf]
        %v545 = vld [vmem:[%s4 + $0x8] sm:$0xf]
        %v546 = vld [vmem:[%s4 + $0xc] sm:$0xf]
        %v547 = vld [vmem:[%s4 + $0x10] sm:$0x3]
        %s548 = scalar_lea.vmem %s4, 20
        %v549 = vld [vmem:[%s548] sm:$0xf]
        %v550 = vld [vmem:[%s548 + $0x4] sm:$0xf]
        %v551 = vld [vmem:[%s548 + $0x8] sm:$0xf]
        %v552 = vld [vmem:[%s548 + $0xc] sm:$0xf]
        %v553 = vld [vmem:[%s548 + $0x10] sm:$0x3]
        %v555 = vshrl.u32 %v542, 16
        %v562 = vunpack.c.l.b16 %v549
        %v563 = vunpack.c.l.b16 %v550
        %v564 = vunpack.c.l.b16 %v551
        %v565 = vunpack.c.l.b16 %v552
        %v566 = vunpack.c.l.b16 %v553
        %v567 = vpack.c.b16 %v563, %v562
        %v568 = vpack.c.b16 %v565, %v564
        %v569 = vpack.c.b16 %v566, %v566
        %vm572 = vcmask 293888
        %v574 = vsel %vm572, %v555, 0
        %vm576 = vcmask 1041408
        %v578 = vsel %vm576, %v569, 0
        %580 = vmatprep.subr.bf16.mxu0 0
        %581 = vmatpush1.bf16.msra.mxu0 %v567
        %582 = vmatprep.subr.bf16.mxu0 0
        %583 = vmatpush1.bf16.msra.mxu0 %v568
        %584 = vmatprep.subr.bf16.mxu0 0
        %585 = vmatpush1.bf16.msra.mxu0 %v578
        %586 = vmatprep.subr.bf16.mxu0 0
        %587 = vmatpush1.bf16.msra.mxu0 0
        %588 = vmatprep.subr.bf16.mxu0 0
        %589 = vmatpush1.bf16.msra.mxu0 0
        %590 = vmatprep.subr.bf16.mxu0 0
        %591 = vmatpush1.bf16.msra.mxu0 0
        %592 = vmatprep.subr.bf16.mxu0 0
        %593 = vmatpush1.bf16.msra.mxu0 0
        %594 = vmatprep.subr.bf16.mxu0 0
        %595 = vmatpush1.bf16.msra.mxu0 0
        %596 = vmatprep.subr.bf16.mxu0 0
        %597 = vmatpush1.bf16.msra.mxu0 0
        %598 = vmatprep.subr.bf16.mxu0 0
        %599 = vmatpush1.bf16.msra.mxu0 0
        %600 = vmatprep.subr.bf16.mxu0 0
        %601 = vmatpush1.bf16.msra.mxu0 0
        %602 = vmatprep.subr.bf16.mxu0 0
        %603 = vmatpush1.bf16.msra.mxu0 0
        %604 = vmatprep.subr.bf16.mxu0 0
        %605 = vmatpush1.bf16.msra.mxu0 0
        %606 = vmatprep.subr.bf16.mxu0 0
        %607 = vmatpush1.bf16.msra.mxu0 0
        %608 = vmatprep.subr.bf16.mxu0 0
        %609 = vmatpush1.bf16.msra.mxu0 0
        %610 = vmatprep.subr.bf16.mxu0 0
        %611 = vmatpush1.bf16.msra.mxu0 0
        %612 = vmatprep.mubr.bf16.mxu0 0
        %613 = vmatmul.mubr.bf16.gmra.mrb[0].mxu0 %v574
        %v614 = vpop.f32.mrb[0].mxu0
        %v615 = vadd.f32 0.0, %v614
        %v616 = vpop.f32.mrb[0].mxu0
        %v617 = vpop.f32.mrb[0].mxu0
        %v618 = vpop.f32.mrb[0].mxu0
        %619 = vdwg.mxu0
        %v625 = vunpack.c.l.b16 %v543
        %v626 = vunpack.c.l.b16 %v544
        %v627 = vunpack.c.l.b16 %v545
        %v628 = vunpack.c.l.b16 %v546
        %v629 = vunpack.c.l.b16 %v547
        %v630 = vpack.c.b16 %v626, %v625
        %v631 = vpack.c.b16 %v628, %v627
        %v632 = vpack.c.b16 %v629, %v629
        %v635 = vsel %vm572, %v542, 0
        %v638 = vsel %vm576, %v632, 0
        %640 = vmatprep.subr.bf16.mxu0 0
        %641 = vmatpush1.bf16.msra.mxu0 %v630
        %642 = vmatprep.subr.bf16.mxu0 0
        %643 = vmatpush1.bf16.msra.mxu0 %v631
        %644 = vmatprep.subr.bf16.mxu0 0
        %645 = vmatpush1.bf16.msra.mxu0 %v638
        %646 = vmatprep.subr.bf16.mxu0 0
        %647 = vmatpush1.bf16.msra.mxu0 0
        %648 = vmatprep.subr.bf16.mxu0 0
        %649 = vmatpush1.bf16.msra.mxu0 0
        %650 = vmatprep.subr.bf16.mxu0 0
        %651 = vmatpush1.bf16.msra.mxu0 0
        %652 = vmatprep.subr.bf16.mxu0 0
        %653 = vmatpush1.bf16.msra.mxu0 0
        %654 = vmatprep.subr.bf16.mxu0 0
        %655 = vmatpush1.bf16.msra.mxu0 0
        %656 = vmatprep.subr.bf16.mxu0 0
        %657 = vmatpush1.bf16.msra.mxu0 0
        %658 = vmatprep.subr.bf16.mxu0 0
        %659 = vmatpush1.bf16.msra.mxu0 0
        %660 = vmatprep.subr.bf16.mxu0 0
        %661 = vmatpush1.bf16.msra.mxu0 0
        %662 = vmatprep.subr.bf16.mxu0 0
        %663 = vmatpush1.bf16.msra.mxu0 0
        %664 = vmatprep.subr.bf16.mxu0 0
        %665 = vmatpush1.bf16.msra.mxu0 0
        %666 = vmatprep.subr.bf16.mxu0 0
        %667 = vmatpush1.bf16.msra.mxu0 0
        %668 = vmatprep.subr.bf16.mxu0 0
        %669 = vmatpush1.bf16.msra.mxu0 0
        %670 = vmatprep.subr.bf16.mxu0 0
        %671 = vmatpush1.bf16.msra.mxu0 0
        %672 = vmatprep.mubr.bf16.mxu0 0
        %673 = vmatmul.mubr.bf16.gmra.mrb[0].mxu0 %v635
        %v674 = vpop.f32.mrb[0].mxu0
        %v675 = vadd.f32 %v615, %v674
        %v676 = vpop.f32.mrb[0].mxu0
        %v677 = vpop.f32.mrb[0].mxu0
        %v678 = vpop.f32.mrb[0].mxu0
        %679 = vdwg.mxu0
        %s680 = scalar_lea.vmem %s4, 40
        %v681 = vld [vmem:[%s680] sm:$0xf]
        %v682 = vld [vmem:[%s680 + $0x4] sm:$0xf]
        %v683 = vld [vmem:[%s680 + $0x8] sm:$0xf]
        %v684 = vld [vmem:[%s680 + $0xc] sm:$0xf]
        %v685 = vld [vmem:[%s680 + $0x10] sm:$0x3]
        %v687 = vrot.slane %v542, 1
        %v693 = vunpack.c.l.b16 %v681
        %v694 = vunpack.c.l.b16 %v682
        %v695 = vunpack.c.l.b16 %v683
        %v696 = vunpack.c.l.b16 %v684
        %v697 = vunpack.c.l.b16 %v685
        %v698 = vpack.c.b16 %v694, %v693
        %v699 = vpack.c.b16 %v696, %v695
        %v700 = vpack.c.b16 %v697, %v697
        %v704 = vsel %vm572, %v687, 0
        %v707 = vsel %vm576, %v700, 0
        %709 = vmatprep.subr.bf16.mxu0 0
        %710 = vmatpush1.bf16.msra.mxu0 %v698
        %711 = vmatprep.subr.bf16.mxu0 0
        %712 = vmatpush1.bf16.msra.mxu0 %v699
        %713 = vmatprep.subr.bf16.mxu0 0
        %714 = vmatpush1.bf16.msra.mxu0 %v707
        %715 = vmatprep.subr.bf16.mxu0 0
        %716 = vmatpush1.bf16.msra.mxu0 0
        %717 = vmatprep.subr.bf16.mxu0 0
        %718 = vmatpush1.bf16.msra.mxu0 0
        %719 = vmatprep.subr.bf16.mxu0 0
        %720 = vmatpush1.bf16.msra.mxu0 0
        %721 = vmatprep.subr.bf16.mxu0 0
        %722 = vmatpush1.bf16.msra.mxu0 0
        %723 = vmatprep.subr.bf16.mxu0 0
        %724 = vmatpush1.bf16.msra.mxu0 0
        %725 = vmatprep.subr.bf16.mxu0 0
        %726 = vmatpush1.bf16.msra.mxu0 0
        %727 = vmatprep.subr.bf16.mxu0 0
        %728 = vmatpush1.bf16.msra.mxu0 0
        %729 = vmatprep.subr.bf16.mxu0 0
        %730 = vmatpush1.bf16.msra.mxu0 0
        %731 = vmatprep.subr.bf16.mxu0 0
        %732 = vmatpush1.bf16.msra.mxu0 0
        %733 = vmatprep.subr.bf16.mxu0 0
        %734 = vmatpush1.bf16.msra.mxu0 0
        %735 = vmatprep.subr.bf16.mxu0 0
        %736 = vmatpush1.bf16.msra.mxu0 0
        %737 = vmatprep.subr.bf16.mxu0 0
        %738 = vmatpush1.bf16.msra.mxu0 0
        %739 = vmatprep.subr.bf16.mxu0 0
        %740 = vmatpush1.bf16.msra.mxu0 0
        %741 = vmatprep.mubr.bf16.mxu0 0
        %742 = vmatmul.mubr.bf16.gmra.mrb[0].mxu0 %v704
        %v743 = vpop.f32.mrb[0].mxu0
        %v744 = vadd.f32 0.0, %v743
        %v745 = vpop.f32.mrb[0].mxu0
        %v746 = vpop.f32.mrb[0].mxu0
        %v747 = vpop.f32.mrb[0].mxu0
        %748 = vdwg.mxu0
        %v749 = vadd.f32 %v675, %v744
        %s750 = scalar_lea.vmem %s4, 60
        %v751 = vld [vmem:[%s750] sm:$0xf]
        %v752 = vld [vmem:[%s750 + $0x4] sm:$0xf]
        %v753 = vld [vmem:[%s750 + $0x8] sm:$0xf]
        %v754 = vld [vmem:[%s750 + $0xc] sm:$0xf]
        %v755 = vld [vmem:[%s750 + $0x10] sm:$0x3]
        %v756 = vrot.slane %v555, 1
        %v762 = vunpack.c.l.b16 %v751
        %v763 = vunpack.c.l.b16 %v752
        %v764 = vunpack.c.l.b16 %v753
        %v765 = vunpack.c.l.b16 %v754
        %v766 = vunpack.c.l.b16 %v755
        %v767 = vpack.c.b16 %v763, %v762
        %v768 = vpack.c.b16 %v765, %v764
        %v769 = vpack.c.b16 %v766, %v766
        %v773 = vsel %vm572, %v756, 0
        %v776 = vsel %vm576, %v769, 0
        %778 = vmatprep.subr.bf16.mxu0 0
        %779 = vmatpush1.bf16.msra.mxu0 %v767
        %780 = vmatprep.subr.bf16.mxu0 0
        %781 = vmatpush1.bf16.msra.mxu0 %v768
        %782 = vmatprep.subr.bf16.mxu0 0
        %783 = vmatpush1.bf16.msra.mxu0 %v776
        %784 = vmatprep.subr.bf16.mxu0 0
        %785 = vmatpush1.bf16.msra.mxu0 0
        %786 = vmatprep.subr.bf16.mxu0 0
        %787 = vmatpush1.bf16.msra.mxu0 0
        %788 = vmatprep.subr.bf16.mxu0 0
        %789 = vmatpush1.bf16.msra.mxu0 0
        %790 = vmatprep.subr.bf16.mxu0 0
        %791 = vmatpush1.bf16.msra.mxu0 0
        %792 = vmatprep.subr.bf16.mxu0 0
        %793 = vmatpush1.bf16.msra.mxu0 0
        %794 = vmatprep.subr.bf16.mxu0 0
        %795 = vmatpush1.bf16.msra.mxu0 0
        %796 = vmatprep.subr.bf16.mxu0 0
        %797 = vmatpush1.bf16.msra.mxu0 0
        %798 = vmatprep.subr.bf16.mxu0 0
        %799 = vmatpush1.bf16.msra.mxu0 0
        %800 = vmatprep.subr.bf16.mxu0 0
        %801 = vmatpush1.bf16.msra.mxu0 0
        %802 = vmatprep.subr.bf16.mxu0 0
        %803 = vmatpush1.bf16.msra.mxu0 0
        %804 = vmatprep.subr.bf16.mxu0 0
        %805 = vmatpush1.bf16.msra.mxu0 0
        %806 = vmatprep.subr.bf16.mxu0 0
        %807 = vmatpush1.bf16.msra.mxu0 0
        %808 = vmatprep.subr.bf16.mxu0 0
        %809 = vmatpush1.bf16.msra.mxu0 0
        %810 = vmatprep.mubr.bf16.mxu0 0
        %811 = vmatmul.mubr.bf16.gmra.mrb[0].mxu0 %v773
        %v812 = vpop.f32.mrb[0].mxu0
        %v813 = vadd.f32 0.0, %v812
        %v814 = vpop.f32.mrb[0].mxu0
        %v815 = vpop.f32.mrb[0].mxu0
        %v816 = vpop.f32.mrb[0].mxu0
        %817 = vdwg.mxu0
        %v818 = vadd.f32 %v749, %v813
        %s819 = scalar_lea.vmem %s4, 80
        %v820 = vld [vmem:[%s819] sm:$0xf]
        %v821 = vld [vmem:[%s819 + $0x4] sm:$0xf]
        %v822 = vld [vmem:[%s819 + $0x8] sm:$0xf]
        %v823 = vld [vmem:[%s819 + $0xc] sm:$0xf]
        %v824 = vld [vmem:[%s819 + $0x10] sm:$0x3]
        %v825 = vrot.slane %v542, 2
        %v831 = vunpack.c.l.b16 %v820
        %v832 = vunpack.c.l.b16 %v821
        %v833 = vunpack.c.l.b16 %v822
        %v834 = vunpack.c.l.b16 %v823
        %v835 = vunpack.c.l.b16 %v824
        %v836 = vpack.c.b16 %v832, %v831
        %v837 = vpack.c.b16 %v834, %v833
        %v838 = vpack.c.b16 %v835, %v835
        %v842 = vsel %vm572, %v825, 0
        %v845 = vsel %vm576, %v838, 0
        %847 = vmatprep.subr.bf16.mxu0 0
        %848 = vmatpush1.bf16.msra.mxu0 %v836
        %849 = vmatprep.subr.bf16.mxu0 0
        %850 = vmatpush1.bf16.msra.mxu0 %v837
        %851 = vmatprep.subr.bf16.mxu0 0
        %852 = vmatpush1.bf16.msra.mxu0 %v845
        %853 = vmatprep.subr.bf16.mxu0 0
        %854 = vmatpush1.bf16.msra.mxu0 0
        %855 = vmatprep.subr.bf16.mxu0 0
        %856 = vmatpush1.bf16.msra.mxu0 0
        %857 = vmatprep.subr.bf16.mxu0 0
        %858 = vmatpush1.bf16.msra.mxu0 0
        %859 = vmatprep.subr.bf16.mxu0 0
        %860 = vmatpush1.bf16.msra.mxu0 0
        %861 = vmatprep.subr.bf16.mxu0 0
        %862 = vmatpush1.bf16.msra.mxu0 0
        %863 = vmatprep.subr.bf16.mxu0 0
        %864 = vmatpush1.bf16.msra.mxu0 0
        %865 = vmatprep.subr.bf16.mxu0 0
        %866 = vmatpush1.bf16.msra.mxu0 0
        %867 = vmatprep.subr.bf16.mxu0 0
        %868 = vmatpush1.bf16.msra.mxu0 0
        %869 = vmatprep.subr.bf16.mxu0 0
        %870 = vmatpush1.bf16.msra.mxu0 0
        %871 = vmatprep.subr.bf16.mxu0 0
        %872 = vmatpush1.bf16.msra.mxu0 0
        %873 = vmatprep.subr.bf16.mxu0 0
        %874 = vmatpush1.bf16.msra.mxu0 0
        %875 = vmatprep.subr.bf16.mxu0 0
        %876 = vmatpush1.bf16.msra.mxu0 0
        %877 = vmatprep.subr.bf16.mxu0 0
        %878 = vmatpush1.bf16.msra.mxu0 0
        %879 = vmatprep.mubr.bf16.mxu0 0
        %880 = vmatmul.mubr.bf16.gmra.mrb[0].mxu0 %v842
        %v881 = vpop.f32.mrb[0].mxu0
        %v882 = vadd.f32 0.0, %v881
        %v883 = vpop.f32.mrb[0].mxu0
        %v884 = vpop.f32.mrb[0].mxu0
        %v885 = vpop.f32.mrb[0].mxu0
        %886 = vdwg.mxu0
        %v887 = vadd.f32 %v818, %v882
        %s888 = scalar_lea.vmem %s4, 100
        %v889 = vld [vmem:[%s888] sm:$0xf]
        %v890 = vld [vmem:[%s888 + $0x4] sm:$0xf]
        %v891 = vld [vmem:[%s888 + $0x8] sm:$0xf]
        %v892 = vld [vmem:[%s888 + $0xc] sm:$0xf]
        %v893 = vld [vmem:[%s888 + $0x10] sm:$0x3]
        %v894 = vrot.slane %v555, 2
        %v900 = vunpack.c.l.b16 %v889
        %v901 = vunpack.c.l.b16 %v890
        %v902 = vunpack.c.l.b16 %v891
        %v903 = vunpack.c.l.b16 %v892
        %v904 = vunpack.c.l.b16 %v893
        %v905 = vpack.c.b16 %v901, %v900
        %v906 = vpack.c.b16 %v903, %v902
        %v907 = vpack.c.b16 %v904, %v904
        %v911 = vsel %vm572, %v894, 0
        %v914 = vsel %vm576, %v907, 0
        %916 = vmatprep.subr.bf16.mxu0 0
        %917 = vmatpush1.bf16.msra.mxu0 %v905
        %918 = vmatprep.subr.bf16.mxu0 0
        %919 = vmatpush1.bf16.msra.mxu0 %v906
        %920 = vmatprep.subr.bf16.mxu0 0
        %921 = vmatpush1.bf16.msra.mxu0 %v914
        %922 = vmatprep.subr.bf16.mxu0 0
        %923 = vmatpush1.bf16.msra.mxu0 0
        %924 = vmatprep.subr.bf16.mxu0 0
        %925 = vmatpush1.bf16.msra.mxu0 0
        %926 = vmatprep.subr.bf16.mxu0 0
        %927 = vmatpush1.bf16.msra.mxu0 0
        %928 = vmatprep.subr.bf16.mxu0 0
        %929 = vmatpush1.bf16.msra.mxu0 0
        %930 = vmatprep.subr.bf16.mxu0 0
        %931 = vmatpush1.bf16.msra.mxu0 0
        %932 = vmatprep.subr.bf16.mxu0 0
        %933 = vmatpush1.bf16.msra.mxu0 0
        %934 = vmatprep.subr.bf16.mxu0 0
        %935 = vmatpush1.bf16.msra.mxu0 0
        %936 = vmatprep.subr.bf16.mxu0 0
        %937 = vmatpush1.bf16.msra.mxu0 0
        %938 = vmatprep.subr.bf16.mxu0 0
        %939 = vmatpush1.bf16.msra.mxu0 0
        %940 = vmatprep.subr.bf16.mxu0 0
        %941 = vmatpush1.bf16.msra.mxu0 0
        %942 = vmatprep.subr.bf16.mxu0 0
        %943 = vmatpush1.bf16.msra.mxu0 0
        %944 = vmatprep.subr.bf16.mxu0 0
        %945 = vmatpush1.bf16.msra.mxu0 0
        %946 = vmatprep.subr.bf16.mxu0 0
        %947 = vmatpush1.bf16.msra.mxu0 0
        %948 = vmatprep.mubr.bf16.mxu0 0
        %949 = vmatmul.mubr.bf16.gmra.mrb[0].mxu0 %v911
        %v950 = vpop.f32.mrb[0].mxu0
        %v951 = vadd.f32 0.0, %v950
        %v952 = vpop.f32.mrb[0].mxu0
        %v953 = vpop.f32.mrb[0].mxu0
        %v954 = vpop.f32.mrb[0].mxu0
        %955 = vdwg.mxu0
        %v956 = vadd.f32 %v887, %v951
        %s957 = scalar_lea.vmem %s4, 120
        %v958 = vld [vmem:[%s957] sm:$0xf]
        %v959 = vld [vmem:[%s957 + $0x4] sm:$0xf]
        %v960 = vld [vmem:[%s957 + $0x8] sm:$0xf]
        %v961 = vld [vmem:[%s957 + $0xc] sm:$0xf]
        %v962 = vld [vmem:[%s957 + $0x10] sm:$0x3]
        %v963 = vrot.slane %v542, 3
        %v969 = vunpack.c.l.b16 %v958
        %v970 = vunpack.c.l.b16 %v959
        %v971 = vunpack.c.l.b16 %v960
        %v972 = vunpack.c.l.b16 %v961
        %v973 = vunpack.c.l.b16 %v962
        %v974 = vpack.c.b16 %v970, %v969
        %v975 = vpack.c.b16 %v972, %v971
        %v976 = vpack.c.b16 %v973, %v973
        %v980 = vsel %vm572, %v963, 0
        %v983 = vsel %vm576, %v976, 0
        %985 = vmatprep.subr.bf16.mxu0 0
        %986 = vmatpush1.bf16.msra.mxu0 %v974
        %987 = vmatprep.subr.bf16.mxu0 0
        %988 = vmatpush1.bf16.msra.mxu0 %v975
        %989 = vmatprep.subr.bf16.mxu0 0
        %990 = vmatpush1.bf16.msra.mxu0 %v983
        %991 = vmatprep.subr.bf16.mxu0 0
        %992 = vmatpush1.bf16.msra.mxu0 0
        %993 = vmatprep.subr.bf16.mxu0 0
        %994 = vmatpush1.bf16.msra.mxu0 0
        %995 = vmatprep.subr.bf16.mxu0 0
        %996 = vmatpush1.bf16.msra.mxu0 0
        %997 = vmatprep.subr.bf16.mxu0 0
        %998 = vmatpush1.bf16.msra.mxu0 0
        %999 = vmatprep.subr.bf16.mxu0 0
        %1000 = vmatpush1.bf16.msra.mxu0 0
        %1001 = vmatprep.subr.bf16.mxu0 0
        %1002 = vmatpush1.bf16.msra.mxu0 0
        %1003 = vmatprep.subr.bf16.mxu0 0
        %1004 = vmatpush1.bf16.msra.mxu0 0
        %1005 = vmatprep.subr.bf16.mxu0 0
        %1006 = vmatpush1.bf16.msra.mxu0 0
        %1007 = vmatprep.subr.bf16.mxu0 0
        %1008 = vmatpush1.bf16.msra.mxu0 0
        %1009 = vmatprep.subr.bf16.mxu0 0
        %1010 = vmatpush1.bf16.msra.mxu0 0
        %1011 = vmatprep.subr.bf16.mxu0 0
        %1012 = vmatpush1.bf16.msra.mxu0 0
        %1013 = vmatprep.subr.bf16.mxu0 0
        %1014 = vmatpush1.bf16.msra.mxu0 0
        %1015 = vmatprep.subr.bf16.mxu0 0
        %1016 = vmatpush1.bf16.msra.mxu0 0
        %1017 = vmatprep.mubr.bf16.mxu0 0
        %1018 = vmatmul.mubr.bf16.gmra.mrb[0].mxu0 %v980
        %v1019 = vpop.f32.mrb[0].mxu0
        %v1020 = vadd.f32 0.0, %v1019
        %v1021 = vpop.f32.mrb[0].mxu0
        %v1022 = vpop.f32.mrb[0].mxu0
        %v1023 = vpop.f32.mrb[0].mxu0
        %1024 = vdwg.mxu0
        %v1025 = vadd.f32 %v956, %v1020
        %s1026 = scalar_lea.vmem %s4, 140
        %v1027 = vld [vmem:[%s1026] sm:$0xf]
        %v1028 = vld [vmem:[%s1026 + $0x4] sm:$0xf]
        %v1029 = vld [vmem:[%s1026 + $0x8] sm:$0xf]
        %v1030 = vld [vmem:[%s1026 + $0xc] sm:$0xf]
        %v1031 = vld [vmem:[%s1026 + $0x10] sm:$0x3]
        %v1032 = vrot.slane %v555, 3
        %v1038 = vunpack.c.l.b16 %v1027
        %v1039 = vunpack.c.l.b16 %v1028
        %v1040 = vunpack.c.l.b16 %v1029
        %v1041 = vunpack.c.l.b16 %v1030
        %v1042 = vunpack.c.l.b16 %v1031
        %v1043 = vpack.c.b16 %v1039, %v1038
        %v1044 = vpack.c.b16 %v1041, %v1040
        %v1045 = vpack.c.b16 %v1042, %v1042
        %v1049 = vsel %vm572, %v1032, 0
        %v1052 = vsel %vm576, %v1045, 0
        %1054 = vmatprep.subr.bf16.mxu0 0
        %1055 = vmatpush1.bf16.msra.mxu0 %v1043
        %1056 = vmatprep.subr.bf16.mxu0 0
        %1057 = vmatpush1.bf16.msra.mxu0 %v1044
        %1058 = vmatprep.subr.bf16.mxu0 0
        %1059 = vmatpush1.bf16.msra.mxu0 %v1052
        %1060 = vmatprep.subr.bf16.mxu0 0
        %1061 = vmatpush1.bf16.msra.mxu0 0
        %1062 = vmatprep.subr.bf16.mxu0 0
        %1063 = vmatpush1.bf16.msra.mxu0 0
        %1064 = vmatprep.subr.bf16.mxu0 0
        %1065 = vmatpush1.bf16.msra.mxu0 0
        %1066 = vmatprep.subr.bf16.mxu0 0
        %1067 = vmatpush1.bf16.msra.mxu0 0
        %1068 = vmatprep.subr.bf16.mxu0 0
        %1069 = vmatpush1.bf16.msra.mxu0 0
        %1070 = vmatprep.subr.bf16.mxu0 0
        %1071 = vmatpush1.bf16.msra.mxu0 0
        %1072 = vmatprep.subr.bf16.mxu0 0
        %1073 = vmatpush1.bf16.msra.mxu0 0
        %1074 = vmatprep.subr.bf16.mxu0 0
        %1075 = vmatpush1.bf16.msra.mxu0 0
        %1076 = vmatprep.subr.bf16.mxu0 0
        %1077 = vmatpush1.bf16.msra.mxu0 0
        %1078 = vmatprep.subr.bf16.mxu0 0
        %1079 = vmatpush1.bf16.msra.mxu0 0
        %1080 = vmatprep.subr.bf16.mxu0 0
        %1081 = vmatpush1.bf16.msra.mxu0 0
        %1082 = vmatprep.subr.bf16.mxu0 0
        %1083 = vmatpush1.bf16.msra.mxu0 0
        %1084 = vmatprep.subr.bf16.mxu0 0
        %1085 = vmatpush1.bf16.msra.mxu0 0
        %1086 = vmatprep.mubr.bf16.mxu0 0
        %1087 = vmatmul.mubr.bf16.gmra.mrb[0].mxu0 %v1049
        %v1088 = vpop.f32.mrb[0].mxu0
        %v1089 = vadd.f32 0.0, %v1088
        %v1090 = vpop.f32.mrb[0].mxu0
        %v1091 = vpop.f32.mrb[0].mxu0
        %v1092 = vpop.f32.mrb[0].mxu0
        %1093 = vdwg.mxu0
        %v1094 = vadd.f32 %v1025, %v1089
        %v1095 = vpack.c.bf16 %v539, %v539
        %s1096 = scalar_lea.vmem %s4, 160
        %v1097 = vld [vmem:[%s1096] sm:$0xf]
        %v1098 = vld [vmem:[%s1096 + $0x4] sm:$0xf]
        %v1099 = vld [vmem:[%s1096 + $0x8] sm:$0xf]
        %v1100 = vld [vmem:[%s1096 + $0xc] sm:$0xf]
        %v1101 = vld [vmem:[%s1096 + $0x10] sm:$0x3]
        %v1107 = vunpack.c.l.b16 %v1097
        %v1108 = vunpack.c.l.b16 %v1098
        %v1109 = vunpack.c.l.b16 %v1099
        %v1110 = vunpack.c.l.b16 %v1100
        %v1111 = vunpack.c.l.b16 %v1101
        %v1112 = vpack.c.b16 %v1108, %v1107
        %v1113 = vpack.c.b16 %v1110, %v1109
        %v1114 = vpack.c.b16 %v1111, %v1111
        %v1118 = vsel %vm572, %v1095, 0
        %v1121 = vsel %vm576, %v1114, 0
        %1123 = vmatprep.subr.bf16.mxu0 0
        %1124 = vmatpush1.bf16.msra.mxu0 %v1112
        %1125 = vmatprep.subr.bf16.mxu0 0
        %1126 = vmatpush1.bf16.msra.mxu0 %v1113
        %1127 = vmatprep.subr.bf16.mxu0 0
        %1128 = vmatpush1.bf16.msra.mxu0 %v1121
        %1129 = vmatprep.subr.bf16.mxu0 0
        %1130 = vmatpush1.bf16.msra.mxu0 0
        %1131 = vmatprep.subr.bf16.mxu0 0
        %1132 = vmatpush1.bf16.msra.mxu0 0
        %1133 = vmatprep.subr.bf16.mxu0 0
        %1134 = vmatpush1.bf16.msra.mxu0 0
        %1135 = vmatprep.subr.bf16.mxu0 0
        %1136 = vmatpush1.bf16.msra.mxu0 0
        %1137 = vmatprep.subr.bf16.mxu0 0
        %1138 = vmatpush1.bf16.msra.mxu0 0
        %1139 = vmatprep.subr.bf16.mxu0 0
        %1140 = vmatpush1.bf16.msra.mxu0 0
        %1141 = vmatprep.subr.bf16.mxu0 0
        %1142 = vmatpush1.bf16.msra.mxu0 0
        %1143 = vmatprep.subr.bf16.mxu0 0
        %1144 = vmatpush1.bf16.msra.mxu0 0
        %1145 = vmatprep.subr.bf16.mxu0 0
        %1146 = vmatpush1.bf16.msra.mxu0 0
        %1147 = vmatprep.subr.bf16.mxu0 0
        %1148 = vmatpush1.bf16.msra.mxu0 0
        %1149 = vmatprep.subr.bf16.mxu0 0
        %1150 = vmatpush1.bf16.msra.mxu0 0
        %1151 = vmatprep.subr.bf16.mxu0 0
        %1152 = vmatpush1.bf16.msra.mxu0 0
        %1153 = vmatprep.subr.bf16.mxu0 0
        %1154 = vmatpush1.bf16.msra.mxu0 0
        %1155 = vmatprep.mubr.bf16.mxu0 0
        %1156 = vmatmul.mubr.bf16.gmra.mrb[0].mxu0 %v1118
        %v1157 = vpop.f32.mrb[0].mxu0
        %v1158 = vadd.f32 0.0, %v1157
        %v1159 = vpop.f32.mrb[0].mxu0
        %v1160 = vpop.f32.mrb[0].mxu0
        %v1161 = vpop.f32.mrb[0].mxu0
        %1162 = vdwg.mxu0
        %v1163 = vadd.f32 %v1094, %v1158
        %s1164 = scalar_lea.vmem %s4, 180
        %v1165 = vld [vmem:[%s1164] sm:$0xf]
        %v1166 = vld [vmem:[%s1164 + $0x4] sm:$0xf]
        %v1167 = vld [vmem:[%s1164 + $0x8] sm:$0xf]
        %v1168 = vld [vmem:[%s1164 + $0xc] sm:$0xf]
        %v1169 = vld [vmem:[%s1164 + $0x10] sm:$0x3]
        %v1170 = vshrl.u32 %v1095, 16
        %v1177 = vunpack.c.l.b16 %v1165
        %v1178 = vunpack.c.l.b16 %v1166
        %v1179 = vunpack.c.l.b16 %v1167
        %v1180 = vunpack.c.l.b16 %v1168
        %v1181 = vunpack.c.l.b16 %v1169
        %v1182 = vpack.c.b16 %v1178, %v1177
        %v1183 = vpack.c.b16 %v1180, %v1179
        %v1184 = vpack.c.b16 %v1181, %v1181
        %v1188 = vsel %vm572, %v1170, 0
        %v1191 = vsel %vm576, %v1184, 0
        %1193 = vmatprep.subr.bf16.mxu0 0
        %1194 = vmatpush1.bf16.msra.mxu0 %v1182
        %1195 = vmatprep.subr.bf16.mxu0 0
        %1196 = vmatpush1.bf16.msra.mxu0 %v1183
        %1197 = vmatprep.subr.bf16.mxu0 0
        %1198 = vmatpush1.bf16.msra.mxu0 %v1191
        %1199 = vmatprep.subr.bf16.mxu0 0
        %1200 = vmatpush1.bf16.msra.mxu0 0
        %1201 = vmatprep.subr.bf16.mxu0 0
        %1202 = vmatpush1.bf16.msra.mxu0 0
        %1203 = vmatprep.subr.bf16.mxu0 0
        %1204 = vmatpush1.bf16.msra.mxu0 0
        %1205 = vmatprep.subr.bf16.mxu0 0
        %1206 = vmatpush1.bf16.msra.mxu0 0
        %1207 = vmatprep.subr.bf16.mxu0 0
        %1208 = vmatpush1.bf16.msra.mxu0 0
        %1209 = vmatprep.subr.bf16.mxu0 0
        %1210 = vmatpush1.bf16.msra.mxu0 0
        %1211 = vmatprep.subr.bf16.mxu0 0
        %1212 = vmatpush1.bf16.msra.mxu0 0
        %1213 = vmatprep.subr.bf16.mxu0 0
        %1214 = vmatpush1.bf16.msra.mxu0 0
        %1215 = vmatprep.subr.bf16.mxu0 0
        %1216 = vmatpush1.bf16.msra.mxu0 0
        %1217 = vmatprep.subr.bf16.mxu0 0
        %1218 = vmatpush1.bf16.msra.mxu0 0
        %1219 = vmatprep.subr.bf16.mxu0 0
        %1220 = vmatpush1.bf16.msra.mxu0 0
        %1221 = vmatprep.subr.bf16.mxu0 0
        %1222 = vmatpush1.bf16.msra.mxu0 0
        %1223 = vmatprep.subr.bf16.mxu0 0
        %1224 = vmatpush1.bf16.msra.mxu0 0
        %1225 = vmatprep.mubr.bf16.mxu0 0
        %1226 = vmatmul.mubr.bf16.gmra.mrb[0].mxu0 %v1188
        %v1227 = vpop.f32.mrb[0].mxu0
        %v1228 = vadd.f32 0.0, %v1227
        %v1229 = vpop.f32.mrb[0].mxu0
        %v1230 = vpop.f32.mrb[0].mxu0
        %v1231 = vpop.f32.mrb[0].mxu0
        %1232 = vdwg.mxu0
        %v1233 = vadd.f32 %v1163, %v1228
        %s1234 = scalar_lea.vmem %s4, 200
        %v1235 = vld [vmem:[%s1234] sm:$0xf]
        %v1236 = vld [vmem:[%s1234 + $0x4] sm:$0xf]
        %v1237 = vld [vmem:[%s1234 + $0x8] sm:$0xf]
        %v1238 = vld [vmem:[%s1234 + $0xc] sm:$0xf]
        %v1239 = vld [vmem:[%s1234 + $0x10] sm:$0x3]
        %v1241 = vrot.slane %v1095, 1
        %v1247 = vunpack.c.l.b16 %v1235
        %v1248 = vunpack.c.l.b16 %v1236
        %v1249 = vunpack.c.l.b16 %v1237
        %v1250 = vunpack.c.l.b16 %v1238
        %v1251 = vunpack.c.l.b16 %v1239
        %v1252 = vpack.c.b16 %v1248, %v1247
        %v1253 = vpack.c.b16 %v1250, %v1249
        %v1254 = vpack.c.b16 %v1251, %v1251
        %v1258 = vsel %vm572, %v1241, 0
        %v1261 = vsel %vm576, %v1254, 0
        %1263 = vmatprep.subr.bf16.mxu0 0
        %1264 = vmatpush1.bf16.msra.mxu0 %v1252
        %1265 = vmatprep.subr.bf16.mxu0 0
        %1266 = vmatpush1.bf16.msra.mxu0 %v1253
        %1267 = vmatprep.subr.bf16.mxu0 0
        %1268 = vmatpush1.bf16.msra.mxu0 %v1261
        %1269 = vmatprep.subr.bf16.mxu0 0
        %1270 = vmatpush1.bf16.msra.mxu0 0
        %1271 = vmatprep.subr.bf16.mxu0 0
        %1272 = vmatpush1.bf16.msra.mxu0 0
        %1273 = vmatprep.subr.bf16.mxu0 0
        %1274 = vmatpush1.bf16.msra.mxu0 0
        %1275 = vmatprep.subr.bf16.mxu0 0
        %1276 = vmatpush1.bf16.msra.mxu0 0
        %1277 = vmatprep.subr.bf16.mxu0 0
        %1278 = vmatpush1.bf16.msra.mxu0 0
        %1279 = vmatprep.subr.bf16.mxu0 0
        %1280 = vmatpush1.bf16.msra.mxu0 0
        %1281 = vmatprep.subr.bf16.mxu0 0
        %1282 = vmatpush1.bf16.msra.mxu0 0
        %1283 = vmatprep.subr.bf16.mxu0 0
        %1284 = vmatpush1.bf16.msra.mxu0 0
        %1285 = vmatprep.subr.bf16.mxu0 0
        %1286 = vmatpush1.bf16.msra.mxu0 0
        %1287 = vmatprep.subr.bf16.mxu0 0
        %1288 = vmatpush1.bf16.msra.mxu0 0
        %1289 = vmatprep.subr.bf16.mxu0 0
        %1290 = vmatpush1.bf16.msra.mxu0 0
        %1291 = vmatprep.subr.bf16.mxu0 0
        %1292 = vmatpush1.bf16.msra.mxu0 0
        %1293 = vmatprep.subr.bf16.mxu0 0
        %1294 = vmatpush1.bf16.msra.mxu0 0
        %1295 = vmatprep.mubr.bf16.mxu0 0
        %1296 = vmatmul.mubr.bf16.gmra.mrb[0].mxu0 %v1258
        %v1297 = vpop.f32.mrb[0].mxu0
        %v1298 = vadd.f32 0.0, %v1297
        %v1299 = vpop.f32.mrb[0].mxu0
        %v1300 = vpop.f32.mrb[0].mxu0
        %v1301 = vpop.f32.mrb[0].mxu0
        %1302 = vdwg.mxu0
        %v1303 = vadd.f32 %v1233, %v1298
        %s1304 = scalar_lea.vmem %s4, 220
        %v1305 = vld [vmem:[%s1304] sm:$0xf]
        %v1306 = vld [vmem:[%s1304 + $0x4] sm:$0xf]
        %v1307 = vld [vmem:[%s1304 + $0x8] sm:$0xf]
        %v1308 = vld [vmem:[%s1304 + $0xc] sm:$0xf]
        %v1309 = vld [vmem:[%s1304 + $0x10] sm:$0x3]
        %v1310 = vrot.slane %v1170, 1
        %v1316 = vunpack.c.l.b16 %v1305
        %v1317 = vunpack.c.l.b16 %v1306
        %v1318 = vunpack.c.l.b16 %v1307
        %v1319 = vunpack.c.l.b16 %v1308
        %v1320 = vunpack.c.l.b16 %v1309
        %v1321 = vpack.c.b16 %v1317, %v1316
        %v1322 = vpack.c.b16 %v1319, %v1318
        %v1323 = vpack.c.b16 %v1320, %v1320
        %v1327 = vsel %vm572, %v1310, 0
        %v1330 = vsel %vm576, %v1323, 0
        %1332 = vmatprep.subr.bf16.mxu0 0
        %1333 = vmatpush1.bf16.msra.mxu0 %v1321
        %1334 = vmatprep.subr.bf16.mxu0 0
        %1335 = vmatpush1.bf16.msra.mxu0 %v1322
        %1336 = vmatprep.subr.bf16.mxu0 0
        %1337 = vmatpush1.bf16.msra.mxu0 %v1330
        %1338 = vmatprep.subr.bf16.mxu0 0
        %1339 = vmatpush1.bf16.msra.mxu0 0
        %1340 = vmatprep.subr.bf16.mxu0 0
        %1341 = vmatpush1.bf16.msra.mxu0 0
        %1342 = vmatprep.subr.bf16.mxu0 0
        %1343 = vmatpush1.bf16.msra.mxu0 0
        %1344 = vmatprep.subr.bf16.mxu0 0
        %1345 = vmatpush1.bf16.msra.mxu0 0
        %1346 = vmatprep.subr.bf16.mxu0 0
        %1347 = vmatpush1.bf16.msra.mxu0 0
        %1348 = vmatprep.subr.bf16.mxu0 0
        %1349 = vmatpush1.bf16.msra.mxu0 0
        %1350 = vmatprep.subr.bf16.mxu0 0
        %1351 = vmatpush1.bf16.msra.mxu0 0
        %1352 = vmatprep.subr.bf16.mxu0 0
        %1353 = vmatpush1.bf16.msra.mxu0 0
        %1354 = vmatprep.subr.bf16.mxu0 0
        %1355 = vmatpush1.bf16.msra.mxu0 0
        %1356 = vmatprep.subr.bf16.mxu0 0
        %1357 = vmatpush1.bf16.msra.mxu0 0
        %1358 = vmatprep.subr.bf16.mxu0 0
        %1359 = vmatpush1.bf16.msra.mxu0 0
        %1360 = vmatprep.subr.bf16.mxu0 0
        %1361 = vmatpush1.bf16.msra.mxu0 0
        %1362 = vmatprep.subr.bf16.mxu0 0
        %1363 = vmatpush1.bf16.msra.mxu0 0
        %1364 = vmatprep.mubr.bf16.mxu0 0
        %1365 = vmatmul.mubr.bf16.gmra.mrb[0].mxu0 %v1327
        %v1366 = vpop.f32.mrb[0].mxu0
        %v1367 = vadd.f32 0.0, %v1366
        %v1368 = vpop.f32.mrb[0].mxu0
        %v1369 = vpop.f32.mrb[0].mxu0
        %v1370 = vpop.f32.mrb[0].mxu0
        %1371 = vdwg.mxu0
        %v1372 = vadd.f32 %v1303, %v1367
        %v1373 = vld [vmem:[%s5] sm:$0x1]
        %v1374 = vadd.f32 %v1372, %v1373
        %v1375 = vmax.f32 %v1374, 0.0
        %v1376 = vpack.c.bf16 %v1375, %v1375
        %v1377 = vld [vmem:[%s6] sm:$0xf]
        %v1378 = vld [vmem:[%s6 + $0x4] sm:$0xf]
        %v1379 = vld [vmem:[%s6 + $0x8] sm:$0xf]
        %v1380 = vld [vmem:[%s6 + $0xc] sm:$0xf]
        %v1381 = vld [vmem:[%s6 + $0x10] sm:$0xf]
        %v1382 = vld [vmem:[%s6 + $0x14] sm:$0xf]
        %v1383 = vld [vmem:[%s6 + $0x18] sm:$0x1]
        %v1384 = vld [vmem:[%s7] sm:$0x1]
        %v1392 = vunpack.c.l.b16 %v1377
        %v1393 = vunpack.c.l.b16 %v1378
        %v1394 = vunpack.c.l.b16 %v1379
        %v1395 = vunpack.c.l.b16 %v1380
        %v1396 = vunpack.c.l.b16 %v1381
        %v1397 = vunpack.c.l.b16 %v1382
        %v1398 = vunpack.c.l.b16 %v1383
        %v1399 = vpack.c.b16 %v1393, %v1392
        %v1400 = vpack.c.b16 %v1395, %v1394
        %v1401 = vpack.c.b16 %v1397, %v1396
        %v1402 = vpack.c.b16 %v1398, %v1398
        %vm1406 = vcmask 408576
        %v1408 = vsel %vm1406, %v1376, 0
        %vm1410 = vcmask 1040384
        %v1412 = vsel %vm1410, %v1402, 0
        %1414 = vmatprep.subr.bf16.mxu0 0
        %1415 = vmatpush1.bf16.msra.mxu0 %v1399
        %1416 = vmatprep.subr.bf16.mxu0 0
        %1417 = vmatpush1.bf16.msra.mxu0 %v1400
        %1418 = vmatprep.subr.bf16.mxu0 0
        %1419 = vmatpush1.bf16.msra.mxu0 %v1401
        %1420 = vmatprep.subr.bf16.mxu0 0
        %1421 = vmatpush1.bf16.msra.mxu0 %v1412
        %1422 = vmatprep.subr.bf16.mxu0 0
        %1423 = vmatpush1.bf16.msra.mxu0 0
        %1424 = vmatprep.subr.bf16.mxu0 0
        %1425 = vmatpush1.bf16.msra.mxu0 0
        %1426 = vmatprep.subr.bf16.mxu0 0
        %1427 = vmatpush1.bf16.msra.mxu0 0
        %1428 = vmatprep.subr.bf16.mxu0 0
        %1429 = vmatpush1.bf16.msra.mxu0 0
        %1430 = vmatprep.subr.bf16.mxu0 0
        %1431 = vmatpush1.bf16.msra.mxu0 0
        %1432 = vmatprep.subr.bf16.mxu0 0
        %1433 = vmatpush1.bf16.msra.mxu0 0
        %1434 = vmatprep.subr.bf16.mxu0 0
        %1435 = vmatpush1.bf16.msra.mxu0 0
        %1436 = vmatprep.subr.bf16.mxu0 0
        %1437 = vmatpush1.bf16.msra.mxu0 0
        %1438 = vmatprep.subr.bf16.mxu0 0
        %1439 = vmatpush1.bf16.msra.mxu0 0
        %1440 = vmatprep.subr.bf16.mxu0 0
        %1441 = vmatpush1.bf16.msra.mxu0 0
        %1442 = vmatprep.subr.bf16.mxu0 0
        %1443 = vmatpush1.bf16.msra.mxu0 0
        %1444 = vmatprep.subr.bf16.mxu0 0
        %1445 = vmatpush1.bf16.msra.mxu0 0
        %1446 = vmatprep.mubr.bf16.mxu0 0
        %1447 = vmatmul.mubr.bf16.gmra.mrb[0].mxu0 %v1408
        %v1448 = vpop.f32.mrb[0].mxu0
        %v1449 = vadd.f32 %v1384, %v1448
        %v1450 = vpop.f32.mrb[0].mxu0
        %v1451 = vpop.f32.mrb[0].mxu0
        %v1452 = vpop.f32.mrb[0].mxu0
        %1453 = vdwg.mxu0
        %vm1454 = vcmask 73728
        %v1455 = vsel %vm1454, %v1449, -inf
        %1456 = vmax.xlane.f32.xlu0 %v1455
        %v1457 = vpop.xlane.xlu0 %1456
        %v1458 = vsub.f32 %v1449, %v1457
        %v1459 = vmul.f32 %v1458, 1.442695
        %v1460 = vpow.pop %v1459
        %v1461 = vsel %vm1454, %v1460, 0.0
        %1462 = vadd.xlane.f32.xlu0 %v1461
        %v1463 = vpop.xlane.xlu0 %1462
        %v1464 = vlog2.pop %v1463
        %v1465 = vmul.f32 %v1464, 0.6931472
        %v1466 = vadd.f32 %v1465, %v1457
        %v1467 = vsub.f32 %v1449, %v1466
        %1468 = vst.msk [vmem:[%s297] sm:$0x1] %vm1454, %v1467
        %s1469 = sand.u32 %s203, 1
        %s1470 = scalar_lea.sflag [#allocation3], %s1469
        %s1471 = sand.u32 %s203, 1
        %s1472 = scalar_lea.vmem [#allocation2], %s1471
        // Predicated region
        $region53: #{convnet_forward.3} parent=51 // pred_check
          %p1473 = pneg %p213
        $region54: #{convnet_forward.3} parent=51 // pred_check_branch
          %1475 = sbr.rel (%p1473) target = $region56
        $region55: #{convnet_forward.3} parent=51 // pred_region
          %s1477 = ssub.s32 16, 16
          %1478 = vsyncadd %s1470, %s1477
          %s1479 = smul.addr %s22, 16
          %s1480 = scalar_lea.hbm %s8, %s1479
          %s1482 = sshll.u32 %s1472, 4
          %s1483 = int_to_ptr.vmem [resolvable:$true] %s1482
          %1485 = dma.vmem_to_hbm [thread:$0]  %s1483, 16, %s1480, %s1470
        $region56: #{convnet_forward.3} parent=51 // pred_fallthru
          _
      $region52: #{convnet_forward.3} parent=5 // pred_fallthru
        _
      %p1486 = scmp.le.s32.totalorder 2, %s17
      // Predicated region
      $region57: #{convnet_forward.3} parent=5 // pred_check
        %p1487 = pneg %p1486
      $region58: #{convnet_forward.3} parent=5 // pred_check_branch
        %1489 = sbr.rel (%p1487) target = $region60
      $region59: #{convnet_forward.3} parent=5 // pred_region
        %s1490 = ssub.s32 %s17, 2
        // Predicated region
        $region61: #{convnet_forward.3} parent=59 // pred_check
          %p1491 = pneg %p219
        $region62: #{convnet_forward.3} parent=59 // pred_check_branch
          %1493 = sbr.rel (%p1491) target = $region64
        $region63: #{convnet_forward.3} parent=59 // pred_region
          %s1494 = sand.u32 %s204, 1
          %s1495 = scalar_lea.sflag [#allocation3], %s1494
          %s1496 = sand.u32 %s204, 1
          %s1497 = scalar_lea.vmem [#allocation2], %s1496
          %1498 = dma.done %s1495, 16
        $region64: #{convnet_forward.3} parent=59 // pred_fallthru
          _
      $region60: #{convnet_forward.3} parent=5 // pred_fallthru
        _
    $region6: #{convnet_forward.3} parent=1 // loop_footer
      %s21 = sadd.s32 1, %s17
    $region7: #{convnet_forward.3} parent=1 // loop_footer_branch
      %16 = sbr.rel target = $region3
    $region8: #{convnet_forward.3} parent=1 // loop_exit
      _
    %1499 = vsyncpa [#allocation3], 1
    %s1500 = scalar_lea.sflag [#allocation3], 1
    %1501 = vsyncpa %s1500, 1

</llo_original>
